<compile_context>
chip_gen: v6e
topology: v6e:2x2x1
jax: 0.10.0
libtpu: 0.0.40
codegen_flags: <defaults>
</compile_context>

<pallas_src>
import functools
import math

import jax
import jax.numpy as jnp
from jax.experimental import pallas as pl
from jax.experimental.pallas import tpu as pltpu

T_SOFTMAX = 0.2   # GCN.forward default temperature
LANE = 128
TM_PREF = 512     # row tile (multiple of 128)
TK_PREF = 2048    # reduction (adj-column) tile (multiple of 128)


def _round_up(x, m):
    return ((x + m - 1) // m) * m


def _choose_tiles(n, tile_m=None, tile_k=None):
    """Pick (npad, tm, tk) with tm, tk multiples of 128 and npad a multiple of
    both, so large tiles never collapse for awkward N."""
    r = _round_up(n, LANE)
    tm = tile_m if tile_m is not None else min(TM_PREF, r)
    tk = tile_k if tile_k is not None else min(TK_PREF, _round_up(r, tm))
    assert tm % LANE == 0 and tk % LANE == 0
    lcm = tm * tk // math.gcd(tm, tk)
    npad = _round_up(n, lcm)
    return npad, tm, tk


def _vmem_limit(est_bytes):
    # Explicit scoped-VMEM budget: large enough for the big-tile / resident-U
    # configuration (past the 16/32 MiB defaults), capped at 48 MiB so it is
    # always below v7x's 64 MiB physical VMEM (128 MiB on v5e/v6e).
    return int(min(max(2 * est_bytes, 32 * 1024 * 1024), 48 * 1024 * 1024))


# --------------------------------------------------------------------------
# Kernel 1 (fused): stream f32 adj once ->
#   adj_p = zero-padded bf16 copy of adj        (feeds both aggregations)
#   dis   = rsqrt(rowsum(adj) + 1)              (degree with self-loop folded)
# Degree is accumulated from the exact f32 values (not the bf16 copy).
# --------------------------------------------------------------------------
def _pad_cast_degree_kernel(adj_ref, adjp_ref, dis_ref, acc_ref, *, n, tm, tk):
    i = pl.program_id(0)
    k = pl.program_id(1)

    @pl.when(k == 0)
    def _():
        acc_ref[...] = jnp.zeros(acc_ref.shape, acc_ref.dtype)

    # Mask against the true (unpadded) extent: handles both the zero padding
    # of adj_p and any stale data in partially-covered input blocks.
    row = i * tm + jax.lax.broadcasted_iota(jnp.int32, (tm, tk), 0)
    col = k * tk + jax.lax.broadcasted_iota(jnp.int32, (tm, tk), 1)
    a = jnp.where((row < n) & (col < n), adj_ref[...], 0.0)    # f32, exact

    adjp_ref[...] = a.astype(adjp_ref.dtype)                   # padded bf16

    # Lane-dense partial rowsums (pure VPU adds, unmasked lane-dense scratch);
    # the single cross-lane reduce happens once at finalize.
    for j in range(tk // LANE):
        acc_ref[...] += a[:, j * LANE:(j + 1) * LANE]

    @pl.when(k == pl.num_programs(1) - 1)
    def _():
        deg = jnp.sum(acc_ref[...], axis=1, keepdims=True) + 1.0   # + self-loop
        dis_ref[...] = jax.lax.rsqrt(deg)                          # deg >= 1


def _pad_cast_degree(adj, npad, tm, tk):
    n = adj.shape[0]
    # Clamp block indices so fully-padded grid cells never address past adj;
    # the in-kernel mask makes the values irrelevant there anyway.
    bi_max = max((n + tm - 1) // tm - 1, 0)
    bk_max = max((n + tk - 1) // tk - 1, 0)
    kernel = functools.partial(_pad_cast_degree_kernel, n=n, tm=tm, tk=tk)
    est = 2 * tm * tk * 4 + 2 * tm * tk * 2 + tm * LANE * 4
    return pl.pallas_call(
        kernel,
        out_shape=(jax.ShapeDtypeStruct((npad, npad), jnp.bfloat16),
                   jax.ShapeDtypeStruct((npad, 1), jnp.float32)),
        grid_spec=pltpu.PrefetchScalarGridSpec(
            num_scalar_prefetch=0,
            grid=(npad // tm, npad // tk),
            in_specs=[pl.BlockSpec(
                (tm, tk),
                lambda i, k, _bi=bi_max, _bk=bk_max:
                    (jnp.minimum(i, _bi), jnp.minimum(k, _bk)))],
            out_specs=[pl.BlockSpec((tm, tk), lambda i, k: (i, k)),
                       pl.BlockSpec((tm, 1), lambda i, k: (i, 0))],
            scratch_shapes=[pltpu.VMEM((tm, LANE), jnp.float32)],
        ),
        compiler_params=pltpu.CompilerParams(
            dimension_semantics=("parallel", "arbitrary"),
            vmem_limit_bytes=_vmem_limit(est)),
        cost_estimate=pl.CostEstimate(
            flops=int(npad * npad),
            transcendentals=int(npad),
            bytes_accessed=int(n * n * 4 + npad * npad * 2 + npad * 4)),
    )(adj)


# --------------------------------------------------------------------------
# Kernel 2: U = dis * (X @ W)   (small per-row feature transform, hoisted out
# of the adjacency loop; bf16 x bf16 MXU, f32 accumulation, bf16 output).
# --------------------------------------------------------------------------
def _feature_kernel(x_ref, w_ref, dis_ref, u_ref):
    xw = jnp.dot(x_ref[...], w_ref[...], preferred_element_type=jnp.float32)
    u_ref[...] = (dis_ref[...] * xw).astype(u_ref.dtype)


def _feature_transform(x, w, dis, tm):
    npad, fin = x.shape
    dpad = w.shape[1]
    return pl.pallas_call(
        _feature_kernel,
        out_shape=jax.ShapeDtypeStruct((npad, dpad), jnp.bfloat16),
        grid_spec=pltpu.PrefetchScalarGridSpec(
            num_scalar_prefetch=0,
            grid=(npad // tm,),
            in_specs=[
                pl.BlockSpec((tm, fin), lambda i: (i, 0)),
                pl.BlockSpec((fin, dpad), lambda i: (0, 0)),
                pl.BlockSpec((tm, 1), lambda i: (i, 0)),
            ],
            out_specs=pl.BlockSpec((tm, dpad), lambda i: (i, 0)),
        ),
        compiler_params=pltpu.CompilerParams(dimension_semantics=("parallel",)),
        cost_estimate=pl.CostEstimate(
            flops=int(2 * npad * fin * dpad),
            transcendentals=0,
            bytes_accessed=int(npad * fin * 2 + fin * dpad * 2
                               + npad * 4 + npad * dpad * 2)),
    )(x, w, dis)


# --------------------------------------------------------------------------
# Kernel 3: out = epilogue( dis * (A @ U + U) + b )
#   epilogue = relu (layer 1, bf16 out)  or  log_softmax((.)/T) (layer 2, f32)
# U is fully VMEM-resident (constant index_map); adj tiles stream over a
# 2-D grid (row tiles parallel, reduction tiles last / arbitrary).
# --------------------------------------------------------------------------
def _aggregate_kernel(adj_ref, u_ref, dis_ref, b_ref, o_ref, acc_ref,
                      *, tm, tk, nclass, epilogue):
    i = pl.program_id(0)
    k = pl.program_id(1)

    @pl.when(k == 0)
    def _():
        acc_ref[...] = jnp.zeros(acc_ref.shape, acc_ref.dtype)

    # bf16 x bf16 -> f32 accumulation on the MXU; U sliced from the resident copy.
    col0 = pl.multiple_of(k * tk, tk)
    acc_ref[...] += jnp.dot(adj_ref[...], u_ref[pl.ds(col0, tk), :],
                            preferred_element_type=jnp.float32)

    @pl.when(k == pl.num_programs(1) - 1)
    def _():
        # A_hat @ V = dis * (A @ U + U), U = dis * V (self-loop folded in).
        row0 = pl.multiple_of(i * tm, tm)
        u_self = u_ref[pl.ds(row0, tm), :].astype(jnp.float32)
        z = dis_ref[...] * (acc_ref[...] + u_self) + b_ref[...]
        if epilogue == "relu":
            o_ref[...] = jnp.maximum(z, 0.0).astype(o_ref.dtype)
        else:  # log_softmax(z / T) over the first `nclass` (real) columns
            z = z * (1.0 / T_SOFTMAX)
            col = jax.lax.broadcasted_iota(jnp.int32, z.shape, 1)
            # Padded class columns get -inf; they are sliced off outside and
            # must never be consumed directly.
            z = jnp.where(col < nclass, z, -jnp.inf)
            m = jnp.max(z, axis=1, keepdims=True)
            zs = z - m
            lse = jnp.log(jnp.sum(jnp.exp(zs), axis=1, keepdims=True))
            o_ref[...] = (zs - lse).astype(o_ref.dtype)


def _aggregate(adj_p, u, dis, bias, epilogue, nclass, out_dtype, tm, tk):
    npad = adj_p.shape[0]
    dpad = u.shape[1]
    osize = jnp.dtype(out_dtype).itemsize
    kernel = functools.partial(_aggregate_kernel, tm=tm, tk=tk,
                               nclass=nclass, epilogue=epilogue)
    est = (2 * tm * tk * 2          # double-buffered bf16 adj tiles
           + 2 * npad * dpad * 2    # resident U (allow for 2 buffers)
           + tm * dpad * 4          # f32 accumulator scratch
           + 2 * tm * dpad * 4      # output blocks
           + 4 * tm + 4 * dpad)     # dis / bias
    return pl.pallas_call(
        kernel,
        out_shape=jax.ShapeDtypeStruct((npad, dpad), out_dtype),
        grid_spec=pltpu.PrefetchScalarGridSpec(
            num_scalar_prefetch=0,
            grid=(npad // tm, npad // tk),
            in_specs=[
                pl.BlockSpec((tm, tk), lambda i, k: (i, k)),      # adj tile (bf16)
                pl.BlockSpec((npad, dpad), lambda i, k: (0, 0)),  # U, VMEM-resident
                pl.BlockSpec((tm, 1), lambda i, k: (i, 0)),       # dis rows i
                pl.BlockSpec((1, dpad), lambda i, k: (0, 0)),     # bias
            ],
            out_specs=pl.BlockSpec((tm, dpad), lambda i, k: (i, 0)),
            scratch_shapes=[pltpu.VMEM((tm, dpad), jnp.float32)],
        ),
        compiler_params=pltpu.CompilerParams(
            dimension_semantics=("parallel", "arbitrary"),
            vmem_limit_bytes=_vmem_limit(est)),
        cost_estimate=pl.CostEstimate(
            flops=int(2 * npad * npad * dpad),
            transcendentals=0 if epilogue == "relu" else int(npad * dpad),
            bytes_accessed=int(npad * npad * 2          # adj stream (bf16)
                               + npad * dpad * 2        # U loaded once (resident)
                               + npad * 4 + dpad * 4    # dis + bias
                               + npad * dpad * osize)), # output
    )(adj_p, u, dis, bias)


# --------------------------------------------------------------------------
# Forward wrapper
# --------------------------------------------------------------------------
def cog_forward(x, adj, w1, b1, w2, b2, tile_m=None, tile_k=None):
    """x: (N, nfeat) f32, adj: (N, N) dense weighted adjacency (no self-loops).
    Returns log-softmax logits (N, nclass) of the eval-mode CoG/GCN forward."""
    n, nfeat = x.shape
    nhid = w1.shape[1]
    nclass = w2.shape[1]

    npad, tm, tk = _choose_tiles(n, tile_m, tile_k)
    fpad = _round_up(nfeat, LANE)
    hpad = _round_up(nhid, LANE)
    cpad = _round_up(nclass, LANE)

    # Resident-U aggregation: (npad, 128) bf16 must fit VMEM comfortably.
    # TODO(synk): add a streaming-U / larger-tm fallback for graphs beyond
    # ~32k nodes (8 MiB resident U), per the v7x 64 MiB VMEM budget.
    assert npad * max(hpad, cpad) * 2 <= 8 * 1024 * 1024

    # Small operands padded/cast in XLA — O(N*128) bytes, negligible vs adj.
    # Zero padding keeps the math exact: padded nodes have zero adj rows/cols
    # (degree 1 via the self-loop) and zero features; padded hidden/class
    # columns carry zeros through the MXU; padded rows never leak into real
    # rows and are sliced off at the end.
    x_p = jnp.zeros((npad, fpad), jnp.bfloat16).at[:n, :nfeat].set(
        x.astype(jnp.bfloat16))
    w1_p = jnp.zeros((fpad, hpad), jnp.bfloat16).at[:nfeat, :nhid].set(
        w1.astype(jnp.bfloat16))
    b1_p = jnp.zeros((1, hpad), jnp.float32).at[:, :nhid].set(
        jnp.reshape(b1, (1, -1)).astype(jnp.float32))
    w2_p = jnp.zeros((hpad, cpad), jnp.bfloat16).at[:nhid, :nclass].set(
        w2.astype(jnp.bfloat16))
    b2_p = jnp.zeros((1, cpad), jnp.float32).at[:, :nclass].set(
        jnp.reshape(b2, (1, -1)).astype(jnp.float32))

    # One fused pass over adj: zero-pad + cast to bf16 + degree -> dis.
    # (adj moves through HBM exactly once here and once per aggregation.)
    adj_p, dis = _pad_cast_degree(adj.astype(jnp.float32), npad, tm, tk)

    # Layer 1: h = relu(A_hat @ (X @ W1) + b1)   (h kept bf16)
    u1 = _feature_transform(x_p, w1_p, dis, tm)
    h = _aggregate(adj_p, u1, dis, b1_p, "relu", nclass, jnp.bfloat16, tm, tk)
    # F.dropout(..., training=False) -> identity in eval/predict mode.

    # Layer 2: log_softmax((A_hat @ (h @ W2) + b2) / T)
    u2 = _feature_transform(h, w2_p, dis, tm)
    z = _aggregate(adj_p, u2, dis, b2_p, "log_softmax", nclass,
                   jnp.float32, tm, tk)

    # forward_classifier slices logits[:n_real]; here n_real == n.
    return z[:n, :nclass]


# --------------------------------------------------------------------------
# Pure-JAX reference (dense GCN) for the correctness check.
# --------------------------------------------------------------------------
def _reference(x, adj, w1, b1, w2, b2):
    n = x.shape[0]
    a = adj + jnp.eye(n, dtype=adj.dtype)
    deg = a.sum(axis=1, keepdims=True)
    dis = jax.lax.rsqrt(deg)
    a_hat = dis * a * dis.reshape(1, n)
    h = jnp.maximum(a_hat @ (x @ w1) + b1, 0.0)
    z = a_hat @ (h @ w2) + b2
    return jax.nn.log_softmax(z / T_SOFTMAX, axis=1)


if __name__ == "__main__":
    # Small shapes implied by CoG(nfeat, nhid, nclass) on an N-node graph.
    N, NFEAT, NHID, NCLASS = 512, 96, 64, 7

    key = jax.random.PRNGKey(0)
    kx, ka, kw1, kb1, kw2, kb2 = jax.random.split(key, 6)

    x = jax.random.normal(kx, (N, NFEAT), dtype=jnp.float32)

    # Symmetric random binary adjacency without self-loops (edge weights = 1).
    a_rand = jax.random.uniform(ka, (N, N))
    adj = (a_rand < 0.05).astype(jnp.float32)
    adj = jnp.maximum(adj, adj.T)
    adj = adj * (1.0 - jnp.eye(N, dtype=jnp.float32))

    # GCNConv parameters (linear weight + bias per layer), deterministic init.
    w1 = jax.random.normal(kw1, (NFEAT, NHID), dtype=jnp.float32) * 0.1
    b1 = jax.random.normal(kb1, (1, NHID), dtype=jnp.float32) * 0.1
    w2 = jax.random.normal(kw2, (NHID, NCLASS), dtype=jnp.float32) * 0.1
    b2 = jax.random.normal(kb2, (1, NCLASS), dtype=jnp.float32) * 0.1

    ref = _reference(x, adj, w1, b1, w2, b2)

    # Run both the default (large-tile) configuration and an explicit
    # multi-tile configuration (4x2 grid) to exercise accumulation, the
    # parallel row axis and the resident-U dynamic slicing.
    out_a = jax.block_until_ready(cog_forward(x, adj, w1, b1, w2, b2))
    out_b = jax.block_until_ready(
        cog_forward(x, adj, w1, b1, w2, b2, tile_m=128, tile_k=256))

    for out in (out_a, out_b):
        assert out.shape == (N, NCLASS)
        assert bool(jnp.all(jnp.isfinite(out)))
        # bf16 MXU operands (f32 accumulation) -> compare to the f32 reference
        # at a bf16-appropriate tolerance.
        assert jnp.allclose(out, ref, atol=5e-2, rtol=5e-2), \
            "mismatch vs JAX reference"

    print("KERNEL_OK")
</pallas_src>

<mosaic_0001>
module attributes {stable_mosaic.version = 11 : i64} {
  func.func @_pad_cast_degree_kernel(%arg0: i32, %arg1: i32, %arg2: memref<512x512xf32, #tpu.memory_space<vmem>>, %arg3: memref<512x512xbf16, #tpu.memory_space<vmem>>, %arg4: memref<512x1xf32, #tpu.memory_space<vmem>>, %arg5: memref<512x128xf32, #tpu.memory_space<vmem>>) attributes {dimension_semantics = [#tpu.dimension_semantics<parallel>, #tpu.dimension_semantics<arbitrary>], iteration_bounds = array<i64: 1, 1>, scalar_prefetch = 0 : i64, scratch_operands = 1 : i64, tpu.core_type = #tpu.core_type<tc>, window_params = [{transform_indices = @transform_0, window_bounds = array<i64: 512, 512>}, {transform_indices = @transform_1, window_bounds = array<i64: 512, 512>}, {transform_indices = @transform_2, window_bounds = array<i64: 512, 1>}]} {
    %c0_i32 = arith.constant 0 : i32
    %0 = arith.cmpi eq, %arg1, %c0_i32 : i32
    %1 = arith.extui %0 : i1 to i32
    %c0_i32_0 = arith.constant 0 : i32
    %2 = arith.cmpi ne, %1, %c0_i32_0 : i32
    scf.if %2 {
      %cst_25 = arith.constant 0.000000e+00 : f32
      %40 = vector.broadcast %cst_25 : f32 to vector<512x128xf32>
      %c0_26 = arith.constant 0 : index
      %c0_27 = arith.constant 0 : index
      %41 = vector.load %arg5[%c0_26, %c0_27] : memref<512x128xf32, #tpu.memory_space<vmem>>, vector<512x128xf32>
      tpu.vector_store %arg5[%c0_26, %c0_27], %40 {strides = array<i32>} : memref<512x128xf32, #tpu.memory_space<vmem>>, vector<512x128xf32>,
    } else {
    }
    %c512_i32 = arith.constant 512 : i32
    %3 = arith.muli %arg0, %c512_i32 : i32
    %4 = tpu.iota {dimensions = array<i32: 0>} : vector<512x512xi32>
    %5 = vector.broadcast %3 : i32 to vector<512x512xi32>
    %6 = arith.addi %5, %4 : vector<512x512xi32>
    %c512_i32_1 = arith.constant 512 : i32
    %7 = arith.muli %arg1, %c512_i32_1 : i32
    %8 = tpu.iota {dimensions = array<i32: 1>} : vector<512x512xi32>
    %9 = vector.broadcast %7 : i32 to vector<512x512xi32>
    %10 = arith.addi %9, %8 : vector<512x512xi32>
    %c512_i32_2 = arith.constant 512 : i32
    %11 = vector.broadcast %c512_i32_2 : i32 to vector<512x512xi32>
    %12 = arith.cmpi slt, %6, %11 : vector<512x512xi32>
    %c512_i32_3 = arith.constant 512 : i32
    %13 = vector.broadcast %c512_i32_3 : i32 to vector<512x512xi32>
    %14 = arith.cmpi slt, %10, %13 : vector<512x512xi32>
    %15 = arith.andi %12, %14 : vector<512x512xi1>
    %c0 = arith.constant 0 : index
    %c0_4 = arith.constant 0 : index
    %16 = vector.load %arg2[%c0, %c0_4] : memref<512x512xf32, #tpu.memory_space<vmem>>, vector<512x512xf32>
    %cst = arith.constant 0.000000e+00 : f32
    %17 = vector.broadcast %cst : f32 to vector<512x512xf32>
    %18 = arith.select %15, %16, %17 : vector<512x512xi1>, vector<512x512xf32>
    %19 = arith.truncf %18 : vector<512x512xf32> to vector<512x512xbf16>
    %c0_5 = arith.constant 0 : index
    %c0_6 = arith.constant 0 : index
    %20 = vector.load %arg3[%c0_5, %c0_6] : memref<512x512xbf16, #tpu.memory_space<vmem>>, vector<512x512xbf16>
    tpu.vector_store %arg3[%c0_5, %c0_6], %19 {strides = array<i32>} : memref<512x512xbf16, #tpu.memory_space<vmem>>, vector<512x512xbf16>,
    %c0_7 = arith.constant 0 : index
    %c0_8 = arith.constant 0 : index
    %21 = vector.load %arg5[%c0_7, %c0_8] : memref<512x128xf32, #tpu.memory_space<vmem>>, vector<512x128xf32>
    %22 = vector.extract_strided_slice %18 {offsets = [0, 0], sizes = [512, 128], strides = [1, 1]} : vector<512x512xf32> to vector<512x128xf32>
    %23 = arith.addf %21, %22 : vector<512x128xf32>
    %c0_9 = arith.constant 0 : index
    %c0_10 = arith.constant 0 : index
    %24 = vector.load %arg5[%c0_9, %c0_10] : memref<512x128xf32, #tpu.memory_space<vmem>>, vector<512x128xf32>
    tpu.vector_store %arg5[%c0_9, %c0_10], %23 {strides = array<i32>} : memref<512x128xf32, #tpu.memory_space<vmem>>, vector<512x128xf32>,
    %c0_11 = arith.constant 0 : index
    %c0_12 = arith.constant 0 : index
    %25 = vector.load %arg5[%c0_11, %c0_12] : memref<512x128xf32, #tpu.memory_space<vmem>>, vector<512x128xf32>
    %26 = vector.extract_strided_slice %18 {offsets = [0, 128], sizes = [512, 128], strides = [1, 1]} : vector<512x512xf32> to vector<512x128xf32>
    %27 = arith.addf %25, %26 : vector<512x128xf32>
    %c0_13 = arith.constant 0 : index
    %c0_14 = arith.constant 0 : index
    %28 = vector.load %arg5[%c0_13, %c0_14] : memref<512x128xf32, #tpu.memory_space<vmem>>, vector<512x128xf32>
    tpu.vector_store %arg5[%c0_13, %c0_14], %27 {strides = array<i32>} : memref<512x128xf32, #tpu.memory_space<vmem>>, vector<512x128xf32>,
    %c0_15 = arith.constant 0 : index
    %c0_16 = arith.constant 0 : index
    %29 = vector.load %arg5[%c0_15, %c0_16] : memref<512x128xf32, #tpu.memory_space<vmem>>, vector<512x128xf32>
    %30 = vector.extract_strided_slice %18 {offsets = [0, 256], sizes = [512, 128], strides = [1, 1]} : vector<512x512xf32> to vector<512x128xf32>
    %31 = arith.addf %29, %30 : vector<512x128xf32>
    %c0_17 = arith.constant 0 : index
    %c0_18 = arith.constant 0 : index
    %32 = vector.load %arg5[%c0_17, %c0_18] : memref<512x128xf32, #tpu.memory_space<vmem>>, vector<512x128xf32>
    tpu.vector_store %arg5[%c0_17, %c0_18], %31 {strides = array<i32>} : memref<512x128xf32, #tpu.memory_space<vmem>>, vector<512x128xf32>,
    %c0_19 = arith.constant 0 : index
    %c0_20 = arith.constant 0 : index
    %33 = vector.load %arg5[%c0_19, %c0_20] : memref<512x128xf32, #tpu.memory_space<vmem>>, vector<512x128xf32>
    %34 = vector.extract_strided_slice %18 {offsets = [0, 384], sizes = [512, 128], strides = [1, 1]} : vector<512x512xf32> to vector<512x128xf32>
    %35 = arith.addf %33, %34 : vector<512x128xf32>
    %c0_21 = arith.constant 0 : index
    %c0_22 = arith.constant 0 : index
    %36 = vector.load %arg5[%c0_21, %c0_22] : memref<512x128xf32, #tpu.memory_space<vmem>>, vector<512x128xf32>
    tpu.vector_store %arg5[%c0_21, %c0_22], %35 {strides = array<i32>} : memref<512x128xf32, #tpu.memory_space<vmem>>, vector<512x128xf32>,
    %c0_i32_23 = arith.constant 0 : i32
    %37 = arith.cmpi eq, %arg1, %c0_i32_23 : i32
    %38 = arith.extui %37 : i1 to i32
    %c0_i32_24 = arith.constant 0 : i32
    %39 = arith.cmpi ne, %38, %c0_i32_24 : i32
    scf.if %39 {
      %c0_25 = arith.constant 0 : index
      %c0_26 = arith.constant 0 : index
      %40 = vector.load %arg5[%c0_25, %c0_26] : memref<512x128xf32, #tpu.memory_space<vmem>>, vector<512x128xf32>
      %cst_27 = arith.constant dense<0.000000e+00> : vector<512xf32>
      %41 = vector.multi_reduction <add>, %40, %cst_27 [1] : vector<512x128xf32> to vector<512xf32>
      %42 = vector.shape_cast %41 : vector<512xf32> to vector<512x1xf32>
      %cst_28 = arith.constant 1.000000e+00 : f32
      %43 = vector.broadcast %cst_28 : f32 to vector<512x1xf32>
      %44 = arith.addf %42, %43 : vector<512x1xf32>
      %45 = math.rsqrt %44 : vector<512x1xf32>
      %c0_29 = arith.constant 0 : index
      %c0_30 = arith.constant 0 : index
      %46 = vector.load %arg4[%c0_29, %c0_30] : memref<512x1xf32, #tpu.memory_space<vmem>>, vector<512x1xf32>
      tpu.vector_store %arg4[%c0_29, %c0_30], %45 {strides = array<i32>} : memref<512x1xf32, #tpu.memory_space<vmem>>, vector<512x1xf32>,
    } else {
    }
    return
  }
  func.func @transform_0(%arg0: i32, %arg1: i32) -> (i32, i32) {
    %c0_i32 = arith.constant 0 : i32
    %0 = arith.minsi %arg0, %c0_i32 : i32
    %c0_i32_0 = arith.constant 0 : i32
    %1 = arith.minsi %arg1, %c0_i32_0 : i32
    %c0_i32_1 = arith.constant 0 : i32
    return %0, %1 : i32, i32
  }
  func.func @transform_1(%arg0: i32, %arg1: i32) -> (i32, i32) {
    %c0_i32 = arith.constant 0 : i32
    return %arg0, %arg1 : i32, i32
  }
  func.func @transform_2(%arg0: i32, %arg1: i32) -> (i32, i32) {
    %c0_i32 = arith.constant 0 : i32
    %c0_i32_0 = arith.constant 0 : i32
    return %arg0, %c0_i32 : i32, i32
  }
}

</mosaic_0001>

<llo_original>
// kernel: tpu_custom_call.1
$region0: #{tpu_custom_call.1}
  #allocation0 [shape = 'u32[]', space=smem, size = 0x4, offset = 0x4, fixed_abs, tag = 'smem constant byte address 0x4 - core index']
  #allocation1 [shape = 'u32[144,128]{1,0:T(1,128)}', space=vmem, size = 0x12000, scoped, tag = 'internal scratch']
  #allocation2 [shape = 'f32[512,128]{1,0:T(8,128)}', space=vmem, size = 0x40000, scoped, tag = 'scratch operand']
  %s0 = inlined_call_operand.hbm [shape: f32[512,512], index: 0, kind: input, shape index: {}]
  %s1 = inlined_call_operand.hbm [shape: bf16[512,512], index: 1, kind: output, shape index: {0}]
  %s2 = inlined_call_operand.vmem [shape: f32[512,1], index: 2, kind: output, shape index: {1}]
  %3 = xla_tuple %s1, %s2
  %s4 = sld [smem:[#allocation0]]
  $region34: #{tpu_custom_call.1} parent=0
    _
  %s6 = ssub.s32 1, %s4
  %s7 = scalar_select 0, %s6, %s4
  $region1: #{tpu_custom_call.1} parent=0
    #allocation3 [shape = 'u8[1048576]{0}', space=vmem, size = 0x100000, scoped, tag = 'input window, operand 0, single buffered']
    #allocation4 [shape = 's32[1]{0}', space=sflag, size = 0x4, scoped, tag = 'scoped memory for tpu_custom_call.1']
    #allocation5 [shape = 's32[1]{0}', space=sflag, size = 0x4, scoped, tag = 'scoped memory for tpu_custom_call.1']
    #allocation6 [shape = 'u8[524288]{0}', space=vmem, size = 0x80000, scoped, tag = 'output window, operand 0, single buffered']
    %8 = vsyncpa [#allocation4], 0
    %9 = vsyncpa [#allocation5], 0
    // Predicated region
    $region2: #{tpu_custom_call.1} parent=1 // pred_check
      _
    $region3: #{tpu_custom_call.1} parent=1 // pred_check_branch
      %11 = sbr.rel (0) target = $region5
    $region4: #{tpu_custom_call.1} parent=1 // pred_region
      %s13 = ssub.s32 32768, 32768
      %14 = vsyncadd [#allocation4], %s13
      %s15 = sshll.u32 [#allocation3], 4
      %s16 = int_to_ptr.vmem [resolvable:$true] %s15
      %21 = dma.hbm_to_vmem [thread:$0]  %s0, 32768, %s16, [#allocation4], 512, 512, 32
    $region5: #{tpu_custom_call.1} parent=1 // pred_fallthru
      _
    // Predicated region
    $region6: #{tpu_custom_call.1} parent=1 // pred_check
      _
    $region7: #{tpu_custom_call.1} parent=1 // pred_check_branch
      %23 = sbr.rel (0) target = $region9
    $region8: #{tpu_custom_call.1} parent=1 // pred_region
      %24 = dma.done [#allocation4], 32768
    $region9: #{tpu_custom_call.1} parent=1 // pred_fallthru
      _
    %p25 = scmp.eq.s32.totalorder 0, 0
    // Predicated region
    $region10: #{tpu_custom_call.1} parent=1 // pred_check
      %p26 = pneg %p25
    $region11: #{tpu_custom_call.1} parent=1 // pred_check_branch
      %28 = sbr.rel (%p26) target = $region13
    $region12: #{tpu_custom_call.1} parent=1 // pred_region
      %29 = vst [vmem:[#allocation2] sm:$0xff] 0.0
      %30 = vst [vmem:[#allocation2 + $0x8] sm:$0xff] 0.0
      %31 = vst [vmem:[#allocation2 + $0x10] sm:$0xff] 0.0
      %32 = vst [vmem:[#allocation2 + $0x18] sm:$0xff] 0.0
      %33 = vst [vmem:[#allocation2 + $0x20] sm:$0xff] 0.0
      %34 = vst [vmem:[#allocation2 + $0x28] sm:$0xff] 0.0
      %35 = vst [vmem:[#allocation2 + $0x30] sm:$0xff] 0.0
      %36 = vst [vmem:[#allocation2 + $0x38] sm:$0xff] 0.0
      %37 = vst [vmem:[#allocation2 + $0x40] sm:$0xff] 0.0
      %38 = vst [vmem:[#allocation2 + $0x48] sm:$0xff] 0.0
      %39 = vst [vmem:[#allocation2 + $0x50] sm:$0xff] 0.0
      %40 = vst [vmem:[#allocation2 + $0x58] sm:$0xff] 0.0
      %41 = vst [vmem:[#allocation2 + $0x60] sm:$0xff] 0.0
      %42 = vst [vmem:[#allocation2 + $0x68] sm:$0xff] 0.0
      %43 = vst [vmem:[#allocation2 + $0x70] sm:$0xff] 0.0
      %44 = vst [vmem:[#allocation2 + $0x78] sm:$0xff] 0.0
      %45 = vst [vmem:[#allocation2 + $0x80] sm:$0xff] 0.0
      %46 = vst [vmem:[#allocation2 + $0x88] sm:$0xff] 0.0
      %47 = vst [vmem:[#allocation2 + $0x90] sm:$0xff] 0.0
      %48 = vst [vmem:[#allocation2 + $0x98] sm:$0xff] 0.0
      %49 = vst [vmem:[#allocation2 + $0xa0] sm:$0xff] 0.0
      %50 = vst [vmem:[#allocation2 + $0xa8] sm:$0xff] 0.0
      %51 = vst [vmem:[#allocation2 + $0xb0] sm:$0xff] 0.0
      %52 = vst [vmem:[#allocation2 + $0xb8] sm:$0xff] 0.0
      %53 = vst [vmem:[#allocation2 + $0xc0] sm:$0xff] 0.0
      %54 = vst [vmem:[#allocation2 + $0xc8] sm:$0xff] 0.0
      %55 = vst [vmem:[#allocation2 + $0xd0] sm:$0xff] 0.0
      %56 = vst [vmem:[#allocation2 + $0xd8] sm:$0xff] 0.0
      %57 = vst [vmem:[#allocation2 + $0xe0] sm:$0xff] 0.0
      %58 = vst [vmem:[#allocation2 + $0xe8] sm:$0xff] 0.0
      %59 = vst [vmem:[#allocation2 + $0xf0] sm:$0xff] 0.0
      %60 = vst [vmem:[#allocation2 + $0xf8] sm:$0xff] 0.0
      %61 = vst [vmem:[#allocation2 + $0x100] sm:$0xff] 0.0
      %62 = vst [vmem:[#allocation2 + $0x108] sm:$0xff] 0.0
      %63 = vst [vmem:[#allocation2 + $0x110] sm:$0xff] 0.0
      %64 = vst [vmem:[#allocation2 + $0x118] sm:$0xff] 0.0
      %65 = vst [vmem:[#allocation2 + $0x120] sm:$0xff] 0.0
      %66 = vst [vmem:[#allocation2 + $0x128] sm:$0xff] 0.0
      %67 = vst [vmem:[#allocation2 + $0x130] sm:$0xff] 0.0
      %68 = vst [vmem:[#allocation2 + $0x138] sm:$0xff] 0.0
      %69 = vst [vmem:[#allocation2 + $0x140] sm:$0xff] 0.0
      %70 = vst [vmem:[#allocation2 + $0x148] sm:$0xff] 0.0
      %71 = vst [vmem:[#allocation2 + $0x150] sm:$0xff] 0.0
      %72 = vst [vmem:[#allocation2 + $0x158] sm:$0xff] 0.0
      %73 = vst [vmem:[#allocation2 + $0x160] sm:$0xff] 0.0
      %74 = vst [vmem:[#allocation2 + $0x168] sm:$0xff] 0.0
      %75 = vst [vmem:[#allocation2 + $0x170] sm:$0xff] 0.0
      %76 = vst [vmem:[#allocation2 + $0x178] sm:$0xff] 0.0
      %77 = vst [vmem:[#allocation2 + $0x180] sm:$0xff] 0.0
      %78 = vst [vmem:[#allocation2 + $0x188] sm:$0xff] 0.0
      %79 = vst [vmem:[#allocation2 + $0x190] sm:$0xff] 0.0
      %80 = vst [vmem:[#allocation2 + $0x198] sm:$0xff] 0.0
      %81 = vst [vmem:[#allocation2 + $0x1a0] sm:$0xff] 0.0
      %82 = vst [vmem:[#allocation2 + $0x1a8] sm:$0xff] 0.0
      %83 = vst [vmem:[#allocation2 + $0x1b0] sm:$0xff] 0.0
      %84 = vst [vmem:[#allocation2 + $0x1b8] sm:$0xff] 0.0
      %85 = vst [vmem:[#allocation2 + $0x1c0] sm:$0xff] 0.0
      %86 = vst [vmem:[#allocation2 + $0x1c8] sm:$0xff] 0.0
      %87 = vst [vmem:[#allocation2 + $0x1d0] sm:$0xff] 0.0
      %88 = vst [vmem:[#allocation2 + $0x1d8] sm:$0xff] 0.0
      %89 = vst [vmem:[#allocation2 + $0x1e0] sm:$0xff] 0.0
      %90 = vst [vmem:[#allocation2 + $0x1e8] sm:$0xff] 0.0
      %91 = vst [vmem:[#allocation2 + $0x1f0] sm:$0xff] 0.0
      %92 = vst [vmem:[#allocation2 + $0x1f8] sm:$0xff] 0.0
    $region13: #{tpu_custom_call.1} parent=1 // pred_fallthru
      _
    %s93 = smul.u32 0, 512
    %v94 = vlaneseq
    %v95 = vshrl.u32 %v94, 7
    %v96 = vadd.s32 %v95, 8
    %v97 = vadd.s32 %v95, 16
    %v98 = vadd.s32 %v95, 24
    %v99 = vadd.s32 %v95, 32
    %v100 = vadd.s32 %v95, 40
    %v101 = vadd.s32 %v95, 48
    %v102 = vadd.s32 %v95, 56
    %v103 = vadd.s32 %v95, 64
    %v104 = vadd.s32 %v95, 72
    %v105 = vadd.s32 %v95, 80
    %v106 = vadd.s32 %v95, 88
    %v107 = vadd.s32 %v95, 96
    %v108 = vadd.s32 %v95, 104
    %v109 = vadd.s32 %v95, 112
    %v110 = vadd.s32 %v95, 120
    %v111 = vadd.s32 %v95, 128
    %v112 = vadd.s32 %v95, 136
    %v113 = vadd.s32 %v95, 144
    %v114 = vadd.s32 %v95, 152
    %v115 = vadd.s32 %v95, 160
    %v116 = vadd.s32 %v95, 168
    %v117 = vadd.s32 %v95, 176
    %v118 = vadd.s32 %v95, 184
    %v119 = vadd.s32 %v95, 192
    %v120 = vadd.s32 %v95, 200
    %v121 = vadd.s32 %v95, 208
    %v122 = vadd.s32 %v95, 216
    %v123 = vadd.s32 %v95, 224
    %v124 = vadd.s32 %v95, 232
    %v125 = vadd.s32 %v95, 240
    %v126 = vadd.s32 %v95, 248
    %v127 = vadd.s32 %v95, 256
    %v128 = vadd.s32 %v95, 264
    %v129 = vadd.s32 %v95, 272
    %v130 = vadd.s32 %v95, 280
    %v131 = vadd.s32 %v95, 288
    %v132 = vadd.s32 %v95, 296
    %v133 = vadd.s32 %v95, 304
    %v134 = vadd.s32 %v95, 312
    %v135 = vadd.s32 %v95, 320
    %v136 = vadd.s32 %v95, 328
    %v137 = vadd.s32 %v95, 336
    %v138 = vadd.s32 %v95, 344
    %v139 = vadd.s32 %v95, 352
    %v140 = vadd.s32 %v95, 360
    %v141 = vadd.s32 %v95, 368
    %v142 = vadd.s32 %v95, 376
    %v143 = vadd.s32 %v95, 384
    %v144 = vadd.s32 %v95, 392
    %v145 = vadd.s32 %v95, 400
    %v146 = vadd.s32 %v95, 408
    %v147 = vadd.s32 %v95, 416
    %v148 = vadd.s32 %v95, 424
    %v149 = vadd.s32 %v95, 432
    %v150 = vadd.s32 %v95, 440
    %v151 = vadd.s32 %v95, 448
    %v152 = vadd.s32 %v95, 456
    %v153 = vadd.s32 %v95, 464
    %v154 = vadd.s32 %v95, 472
    %v155 = vadd.s32 %v95, 480
    %v156 = vadd.s32 %v95, 488
    %v157 = vadd.s32 %v95, 496
    %v158 = vadd.s32 %v95, 504
    %v159 = vstv %s93
    %v160 = vadd.s32 %v159, %v95
    %v161 = vadd.s32 %v159, %v96
    %v162 = vadd.s32 %v159, %v97
    %v163 = vadd.s32 %v159, %v98
    %v164 = vadd.s32 %v159, %v99
    %v165 = vadd.s32 %v159, %v100
    %v166 = vadd.s32 %v159, %v101
    %v167 = vadd.s32 %v159, %v102
    %v168 = vadd.s32 %v159, %v103
    %v169 = vadd.s32 %v159, %v104
    %v170 = vadd.s32 %v159, %v105
    %v171 = vadd.s32 %v159, %v106
    %v172 = vadd.s32 %v159, %v107
    %v173 = vadd.s32 %v159, %v108
    %v174 = vadd.s32 %v159, %v109
    %v175 = vadd.s32 %v159, %v110
    %v176 = vadd.s32 %v159, %v111
    %v177 = vadd.s32 %v159, %v112
    %v178 = vadd.s32 %v159, %v113
    %v179 = vadd.s32 %v159, %v114
    %v180 = vadd.s32 %v159, %v115
    %v181 = vadd.s32 %v159, %v116
    %v182 = vadd.s32 %v159, %v117
    %v183 = vadd.s32 %v159, %v118
    %v184 = vadd.s32 %v159, %v119
    %v185 = vadd.s32 %v159, %v120
    %v186 = vadd.s32 %v159, %v121
    %v187 = vadd.s32 %v159, %v122
    %v188 = vadd.s32 %v159, %v123
    %v189 = vadd.s32 %v159, %v124
    %v190 = vadd.s32 %v159, %v125
    %v191 = vadd.s32 %v159, %v126
    %v192 = vadd.s32 %v159, %v127
    %v193 = vadd.s32 %v159, %v128
    %v194 = vadd.s32 %v159, %v129
    %v195 = vadd.s32 %v159, %v130
    %v196 = vadd.s32 %v159, %v131
    %v197 = vadd.s32 %v159, %v132
    %v198 = vadd.s32 %v159, %v133
    %v199 = vadd.s32 %v159, %v134
    %v200 = vadd.s32 %v159, %v135
    %v201 = vadd.s32 %v159, %v136
    %v202 = vadd.s32 %v159, %v137
    %v203 = vadd.s32 %v159, %v138
    %v204 = vadd.s32 %v159, %v139
    %v205 = vadd.s32 %v159, %v140
    %v206 = vadd.s32 %v159, %v141
    %v207 = vadd.s32 %v159, %v142
    %v208 = vadd.s32 %v159, %v143
    %v209 = vadd.s32 %v159, %v144
    %v210 = vadd.s32 %v159, %v145
    %v211 = vadd.s32 %v159, %v146
    %v212 = vadd.s32 %v159, %v147
    %v213 = vadd.s32 %v159, %v148
    %v214 = vadd.s32 %v159, %v149
    %v215 = vadd.s32 %v159, %v150
    %v216 = vadd.s32 %v159, %v151
    %v217 = vadd.s32 %v159, %v152
    %v218 = vadd.s32 %v159, %v153
    %v219 = vadd.s32 %v159, %v154
    %v220 = vadd.s32 %v159, %v155
    %v221 = vadd.s32 %v159, %v156
    %v222 = vadd.s32 %v159, %v157
    %v223 = vadd.s32 %v159, %v158
    %s224 = smul.u32 0, 512
    %v225 = vlaneseq
    %v226 = vand.u32 %v225, 127
    %v227 = vadd.s32 %v226, 128
    %v228 = vadd.s32 %v226, 256
    %v229 = vadd.s32 %v226, 384
    %v230 = vstv %s224
    %v231 = vadd.s32 %v230, %v226
    %v232 = vadd.s32 %v230, %v227
    %v233 = vadd.s32 %v230, %v228
    %v234 = vadd.s32 %v230, %v229
    %vm235 = vcmp.lt.s32.totalorder %v160, 512
    %vm236 = vcmp.lt.s32.totalorder %v161, 512
    %vm237 = vcmp.lt.s32.totalorder %v162, 512
    %vm238 = vcmp.lt.s32.totalorder %v163, 512
    %vm239 = vcmp.lt.s32.totalorder %v164, 512
    %vm240 = vcmp.lt.s32.totalorder %v165, 512
    %vm241 = vcmp.lt.s32.totalorder %v166, 512
    %vm242 = vcmp.lt.s32.totalorder %v167, 512
    %vm243 = vcmp.lt.s32.totalorder %v168, 512
    %vm244 = vcmp.lt.s32.totalorder %v169, 512
    %vm245 = vcmp.lt.s32.totalorder %v170, 512
    %vm246 = vcmp.lt.s32.totalorder %v171, 512
    %vm247 = vcmp.lt.s32.totalorder %v172, 512
    %vm248 = vcmp.lt.s32.totalorder %v173, 512
    %vm249 = vcmp.lt.s32.totalorder %v174, 512
    %vm250 = vcmp.lt.s32.totalorder %v175, 512
    %vm251 = vcmp.lt.s32.totalorder %v176, 512
    %vm252 = vcmp.lt.s32.totalorder %v177, 512
    %vm253 = vcmp.lt.s32.totalorder %v178, 512
    %vm254 = vcmp.lt.s32.totalorder %v179, 512
    %vm255 = vcmp.lt.s32.totalorder %v180, 512
    %vm256 = vcmp.lt.s32.totalorder %v181, 512
    %vm257 = vcmp.lt.s32.totalorder %v182, 512
    %vm258 = vcmp.lt.s32.totalorder %v183, 512
    %vm259 = vcmp.lt.s32.totalorder %v184, 512
    %vm260 = vcmp.lt.s32.totalorder %v185, 512
    %vm261 = vcmp.lt.s32.totalorder %v186, 512
    %vm262 = vcmp.lt.s32.totalorder %v187, 512
    %vm263 = vcmp.lt.s32.totalorder %v188, 512
    %vm264 = vcmp.lt.s32.totalorder %v189, 512
    %vm265 = vcmp.lt.s32.totalorder %v190, 512
    %vm266 = vcmp.lt.s32.totalorder %v191, 512
    %vm267 = vcmp.lt.s32.totalorder %v192, 512
    %vm268 = vcmp.lt.s32.totalorder %v193, 512
    %vm269 = vcmp.lt.s32.totalorder %v194, 512
    %vm270 = vcmp.lt.s32.totalorder %v195, 512
    %vm271 = vcmp.lt.s32.totalorder %v196, 512
    %vm272 = vcmp.lt.s32.totalorder %v197, 512
    %vm273 = vcmp.lt.s32.totalorder %v198, 512
    %vm274 = vcmp.lt.s32.totalorder %v199, 512
    %vm275 = vcmp.lt.s32.totalorder %v200, 512
    %vm276 = vcmp.lt.s32.totalorder %v201, 512
    %vm277 = vcmp.lt.s32.totalorder %v202, 512
    %vm278 = vcmp.lt.s32.totalorder %v203, 512
    %vm279 = vcmp.lt.s32.totalorder %v204, 512
    %vm280 = vcmp.lt.s32.totalorder %v205, 512
    %vm281 = vcmp.lt.s32.totalorder %v206, 512
    %vm282 = vcmp.lt.s32.totalorder %v207, 512
    %vm283 = vcmp.lt.s32.totalorder %v208, 512
    %vm284 = vcmp.lt.s32.totalorder %v209, 512
    %vm285 = vcmp.lt.s32.totalorder %v210, 512
    %vm286 = vcmp.lt.s32.totalorder %v211, 512
    %vm287 = vcmp.lt.s32.totalorder %v212, 512
    %vm288 = vcmp.lt.s32.totalorder %v213, 512
    %vm289 = vcmp.lt.s32.totalorder %v214, 512
    %vm290 = vcmp.lt.s32.totalorder %v215, 512
    %vm291 = vcmp.lt.s32.totalorder %v216, 512
    %vm292 = vcmp.lt.s32.totalorder %v217, 512
    %vm293 = vcmp.lt.s32.totalorder %v218, 512
    %vm294 = vcmp.lt.s32.totalorder %v219, 512
    %vm295 = vcmp.lt.s32.totalorder %v220, 512
    %vm296 = vcmp.lt.s32.totalorder %v221, 512
    %vm297 = vcmp.lt.s32.totalorder %v222, 512
    %vm298 = vcmp.lt.s32.totalorder %v223, 512
    %vm299 = vcmp.lt.s32.totalorder %v231, 512
    %vm300 = vcmp.lt.s32.totalorder %v232, 512
    %vm301 = vcmp.lt.s32.totalorder %v233, 512
    %vm302 = vcmp.lt.s32.totalorder %v234, 512
    %vm303 = vmand %vm235, %vm299
    %vm304 = vmand %vm235, %vm300
    %vm305 = vmand %vm235, %vm301
    %vm306 = vmand %vm235, %vm302
    %vm307 = vmand %vm236, %vm299
    %vm308 = vmand %vm236, %vm300
    %vm309 = vmand %vm236, %vm301
    %vm310 = vmand %vm236, %vm302
    %vm311 = vmand %vm237, %vm299
    %vm312 = vmand %vm237, %vm300
    %vm313 = vmand %vm237, %vm301
    %vm314 = vmand %vm237, %vm302
    %vm315 = vmand %vm238, %vm299
    %vm316 = vmand %vm238, %vm300
    %vm317 = vmand %vm238, %vm301
    %vm318 = vmand %vm238, %vm302
    %vm319 = vmand %vm239, %vm299
    %vm320 = vmand %vm239, %vm300
    %vm321 = vmand %vm239, %vm301
    %vm322 = vmand %vm239, %vm302
    %vm323 = vmand %vm240, %vm299
    %vm324 = vmand %vm240, %vm300
    %vm325 = vmand %vm240, %vm301
    %vm326 = vmand %vm240, %vm302
    %vm327 = vmand %vm241, %vm299
    %vm328 = vmand %vm241, %vm300
    %vm329 = vmand %vm241, %vm301
    %vm330 = vmand %vm241, %vm302
    %vm331 = vmand %vm242, %vm299
    %vm332 = vmand %vm242, %vm300
    %vm333 = vmand %vm242, %vm301
    %vm334 = vmand %vm242, %vm302
    %vm335 = vmand %vm243, %vm299
    %vm336 = vmand %vm243, %vm300
    %vm337 = vmand %vm243, %vm301
    %vm338 = vmand %vm243, %vm302
    %vm339 = vmand %vm244, %vm299
    %vm340 = vmand %vm244, %vm300
    %vm341 = vmand %vm244, %vm301
    %vm342 = vmand %vm244, %vm302
    %vm343 = vmand %vm245, %vm299
    %vm344 = vmand %vm245, %vm300
    %vm345 = vmand %vm245, %vm301
    %vm346 = vmand %vm245, %vm302
    %vm347 = vmand %vm246, %vm299
    %vm348 = vmand %vm246, %vm300
    %vm349 = vmand %vm246, %vm301
    %vm350 = vmand %vm246, %vm302
    %vm351 = vmand %vm247, %vm299
    %vm352 = vmand %vm247, %vm300
    %vm353 = vmand %vm247, %vm301
    %vm354 = vmand %vm247, %vm302
    %vm355 = vmand %vm248, %vm299
    %vm356 = vmand %vm248, %vm300
    %vm357 = vmand %vm248, %vm301
    %vm358 = vmand %vm248, %vm302
    %vm359 = vmand %vm249, %vm299
    %vm360 = vmand %vm249, %vm300
    %vm361 = vmand %vm249, %vm301
    %vm362 = vmand %vm249, %vm302
    %vm363 = vmand %vm250, %vm299
    %vm364 = vmand %vm250, %vm300
    %vm365 = vmand %vm250, %vm301
    %vm366 = vmand %vm250, %vm302
    %vm367 = vmand %vm251, %vm299
    %vm368 = vmand %vm251, %vm300
    %vm369 = vmand %vm251, %vm301
    %vm370 = vmand %vm251, %vm302
    %vm371 = vmand %vm252, %vm299
    %vm372 = vmand %vm252, %vm300
    %vm373 = vmand %vm252, %vm301
    %vm374 = vmand %vm252, %vm302
    %vm375 = vmand %vm253, %vm299
    %vm376 = vmand %vm253, %vm300
    %vm377 = vmand %vm253, %vm301
    %vm378 = vmand %vm253, %vm302
    %vm379 = vmand %vm254, %vm299
    %vm380 = vmand %vm254, %vm300
    %vm381 = vmand %vm254, %vm301
    %vm382 = vmand %vm254, %vm302
    %vm383 = vmand %vm255, %vm299
    %vm384 = vmand %vm255, %vm300
    %vm385 = vmand %vm255, %vm301
    %vm386 = vmand %vm255, %vm302
    %vm387 = vmand %vm256, %vm299
    %vm388 = vmand %vm256, %vm300
    %vm389 = vmand %vm256, %vm301
    %vm390 = vmand %vm256, %vm302
    %vm391 = vmand %vm257, %vm299
    %vm392 = vmand %vm257, %vm300
    %vm393 = vmand %vm257, %vm301
    %vm394 = vmand %vm257, %vm302
    %vm395 = vmand %vm258, %vm299
    %vm396 = vmand %vm258, %vm300
    %vm397 = vmand %vm258, %vm301
    %vm398 = vmand %vm258, %vm302
    %vm399 = vmand %vm259, %vm299
    %vm400 = vmand %vm259, %vm300
    %vm401 = vmand %vm259, %vm301
    %vm402 = vmand %vm259, %vm302
    %vm403 = vmand %vm260, %vm299
    %vm404 = vmand %vm260, %vm300
    %vm405 = vmand %vm260, %vm301
    %vm406 = vmand %vm260, %vm302
    %vm407 = vmand %vm261, %vm299
    %vm408 = vmand %vm261, %vm300
    %vm409 = vmand %vm261, %vm301
    %vm410 = vmand %vm261, %vm302
    %vm411 = vmand %vm262, %vm299
    %vm412 = vmand %vm262, %vm300
    %vm413 = vmand %vm262, %vm301
    %vm414 = vmand %vm262, %vm302
    %vm415 = vmand %vm263, %vm299
    %vm416 = vmand %vm263, %vm300
    %vm417 = vmand %vm263, %vm301
    %vm418 = vmand %vm263, %vm302
    %vm419 = vmand %vm264, %vm299
    %vm420 = vmand %vm264, %vm300
    %vm421 = vmand %vm264, %vm301
    %vm422 = vmand %vm264, %vm302
    %vm423 = vmand %vm265, %vm299
    %vm424 = vmand %vm265, %vm300
    %vm425 = vmand %vm265, %vm301
    %vm426 = vmand %vm265, %vm302
    %vm427 = vmand %vm266, %vm299
    %vm428 = vmand %vm266, %vm300
    %vm429 = vmand %vm266, %vm301
    %vm430 = vmand %vm266, %vm302
    %vm431 = vmand %vm267, %vm299
    %vm432 = vmand %vm267, %vm300
    %vm433 = vmand %vm267, %vm301
    %vm434 = vmand %vm267, %vm302
    %vm435 = vmand %vm268, %vm299
    %vm436 = vmand %vm268, %vm300
    %vm437 = vmand %vm268, %vm301
    %vm438 = vmand %vm268, %vm302
    %vm439 = vmand %vm269, %vm299
    %vm440 = vmand %vm269, %vm300
    %vm441 = vmand %vm269, %vm301
    %vm442 = vmand %vm269, %vm302
    %vm443 = vmand %vm270, %vm299
    %vm444 = vmand %vm270, %vm300
    %vm445 = vmand %vm270, %vm301
    %vm446 = vmand %vm270, %vm302
    %vm447 = vmand %vm271, %vm299
    %vm448 = vmand %vm271, %vm300
    %vm449 = vmand %vm271, %vm301
    %vm450 = vmand %vm271, %vm302
    %vm451 = vmand %vm272, %vm299
    %vm452 = vmand %vm272, %vm300
    %vm453 = vmand %vm272, %vm301
    %vm454 = vmand %vm272, %vm302
    %vm455 = vmand %vm273, %vm299
    %vm456 = vmand %vm273, %vm300
    %vm457 = vmand %vm273, %vm301
    %vm458 = vmand %vm273, %vm302
    %vm459 = vmand %vm274, %vm299
    %vm460 = vmand %vm274, %vm300
    %vm461 = vmand %vm274, %vm301
    %vm462 = vmand %vm274, %vm302
    %vm463 = vmand %vm275, %vm299
    %vm464 = vmand %vm275, %vm300
    %vm465 = vmand %vm275, %vm301
    %vm466 = vmand %vm275, %vm302
    %vm467 = vmand %vm276, %vm299
    %vm468 = vmand %vm276, %vm300
    %vm469 = vmand %vm276, %vm301
    %vm470 = vmand %vm276, %vm302
    %vm471 = vmand %vm277, %vm299
    %vm472 = vmand %vm277, %vm300
    %vm473 = vmand %vm277, %vm301
    %vm474 = vmand %vm277, %vm302
    %vm475 = vmand %vm278, %vm299
    %vm476 = vmand %vm278, %vm300
    %vm477 = vmand %vm278, %vm301
    %vm478 = vmand %vm278, %vm302
    %vm479 = vmand %vm279, %vm299
    %vm480 = vmand %vm279, %vm300
    %vm481 = vmand %vm279, %vm301
    %vm482 = vmand %vm279, %vm302
    %vm483 = vmand %vm280, %vm299
    %vm484 = vmand %vm280, %vm300
    %vm485 = vmand %vm280, %vm301
    %vm486 = vmand %vm280, %vm302
    %vm487 = vmand %vm281, %vm299
    %vm488 = vmand %vm281, %vm300
    %vm489 = vmand %vm281, %vm301
    %vm490 = vmand %vm281, %vm302
    %vm491 = vmand %vm282, %vm299
    %vm492 = vmand %vm282, %vm300
    %vm493 = vmand %vm282, %vm301
    %vm494 = vmand %vm282, %vm302
    %vm495 = vmand %vm283, %vm299
    %vm496 = vmand %vm283, %vm300
    %vm497 = vmand %vm283, %vm301
    %vm498 = vmand %vm283, %vm302
    %vm499 = vmand %vm284, %vm299
    %vm500 = vmand %vm284, %vm300
    %vm501 = vmand %vm284, %vm301
    %vm502 = vmand %vm284, %vm302
    %vm503 = vmand %vm285, %vm299
    %vm504 = vmand %vm285, %vm300
    %vm505 = vmand %vm285, %vm301
    %vm506 = vmand %vm285, %vm302
    %vm507 = vmand %vm286, %vm299
    %vm508 = vmand %vm286, %vm300
    %vm509 = vmand %vm286, %vm301
    %vm510 = vmand %vm286, %vm302
    %vm511 = vmand %vm287, %vm299
    %vm512 = vmand %vm287, %vm300
    %vm513 = vmand %vm287, %vm301
    %vm514 = vmand %vm287, %vm302
    %vm515 = vmand %vm288, %vm299
    %vm516 = vmand %vm288, %vm300
    %vm517 = vmand %vm288, %vm301
    %vm518 = vmand %vm288, %vm302
    %vm519 = vmand %vm289, %vm299
    %vm520 = vmand %vm289, %vm300
    %vm521 = vmand %vm289, %vm301
    %vm522 = vmand %vm289, %vm302
    %vm523 = vmand %vm290, %vm299
    %vm524 = vmand %vm290, %vm300
    %vm525 = vmand %vm290, %vm301
    %vm526 = vmand %vm290, %vm302
    %vm527 = vmand %vm291, %vm299
    %vm528 = vmand %vm291, %vm300
    %vm529 = vmand %vm291, %vm301
    %vm530 = vmand %vm291, %vm302
    %vm531 = vmand %vm292, %vm299
    %vm532 = vmand %vm292, %vm300
    %vm533 = vmand %vm292, %vm301
    %vm534 = vmand %vm292, %vm302
    %vm535 = vmand %vm293, %vm299
    %vm536 = vmand %vm293, %vm300
    %vm537 = vmand %vm293, %vm301
    %vm538 = vmand %vm293, %vm302
    %vm539 = vmand %vm294, %vm299
    %vm540 = vmand %vm294, %vm300
    %vm541 = vmand %vm294, %vm301
    %vm542 = vmand %vm294, %vm302
    %vm543 = vmand %vm295, %vm299
    %vm544 = vmand %vm295, %vm300
    %vm545 = vmand %vm295, %vm301
    %vm546 = vmand %vm295, %vm302
    %vm547 = vmand %vm296, %vm299
    %vm548 = vmand %vm296, %vm300
    %vm549 = vmand %vm296, %vm301
    %vm550 = vmand %vm296, %vm302
    %vm551 = vmand %vm297, %vm299
    %vm552 = vmand %vm297, %vm300
    %vm553 = vmand %vm297, %vm301
    %vm554 = vmand %vm297, %vm302
    %vm555 = vmand %vm298, %vm299
    %vm556 = vmand %vm298, %vm300
    %vm557 = vmand %vm298, %vm301
    %vm558 = vmand %vm298, %vm302
    %v559 = vld [vmem:[#allocation3] sm:$0xff]
    %v560 = vld [vmem:[#allocation3 + $0x8] sm:$0xff]
    %v561 = vld [vmem:[#allocation3 + $0x10] sm:$0xff]
    %v562 = vld [vmem:[#allocation3 + $0x18] sm:$0xff]
    %v563 = vld [vmem:[#allocation3 + $0x20] sm:$0xff]
    %v564 = vld [vmem:[#allocation3 + $0x28] sm:$0xff]
    %v565 = vld [vmem:[#allocation3 + $0x30] sm:$0xff]
    %v566 = vld [vmem:[#allocation3 + $0x38] sm:$0xff]
    %v567 = vld [vmem:[#allocation3 + $0x40] sm:$0xff]
    %v568 = vld [vmem:[#allocation3 + $0x48] sm:$0xff]
    %v569 = vld [vmem:[#allocation3 + $0x50] sm:$0xff]
    %v570 = vld [vmem:[#allocation3 + $0x58] sm:$0xff]
    %v571 = vld [vmem:[#allocation3 + $0x60] sm:$0xff]
    %v572 = vld [vmem:[#allocation3 + $0x68] sm:$0xff]
    %v573 = vld [vmem:[#allocation3 + $0x70] sm:$0xff]
    %v574 = vld [vmem:[#allocation3 + $0x78] sm:$0xff]
    %v575 = vld [vmem:[#allocation3 + $0x80] sm:$0xff]
    %v576 = vld [vmem:[#allocation3 + $0x88] sm:$0xff]
    %v577 = vld [vmem:[#allocation3 + $0x90] sm:$0xff]
    %v578 = vld [vmem:[#allocation3 + $0x98] sm:$0xff]
    %v579 = vld [vmem:[#allocation3 + $0xa0] sm:$0xff]
    %v580 = vld [vmem:[#allocation3 + $0xa8] sm:$0xff]
    %v581 = vld [vmem:[#allocation3 + $0xb0] sm:$0xff]
    %v582 = vld [vmem:[#allocation3 + $0xb8] sm:$0xff]
    %v583 = vld [vmem:[#allocation3 + $0xc0] sm:$0xff]
    %v584 = vld [vmem:[#allocation3 + $0xc8] sm:$0xff]
    %v585 = vld [vmem:[#allocation3 + $0xd0] sm:$0xff]
    %v586 = vld [vmem:[#allocation3 + $0xd8] sm:$0xff]
    %v587 = vld [vmem:[#allocation3 + $0xe0] sm:$0xff]
    %v588 = vld [vmem:[#allocation3 + $0xe8] sm:$0xff]
    %v589 = vld [vmem:[#allocation3 + $0xf0] sm:$0xff]
    %v590 = vld [vmem:[#allocation3 + $0xf8] sm:$0xff]
    %v591 = vld [vmem:[#allocation3 + $0x100] sm:$0xff]
    %v592 = vld [vmem:[#allocation3 + $0x108] sm:$0xff]
    %v593 = vld [vmem:[#allocation3 + $0x110] sm:$0xff]
    %v594 = vld [vmem:[#allocation3 + $0x118] sm:$0xff]
    %v595 = vld [vmem:[#allocation3 + $0x120] sm:$0xff]
    %v596 = vld [vmem:[#allocation3 + $0x128] sm:$0xff]
    %v597 = vld [vmem:[#allocation3 + $0x130] sm:$0xff]
    %v598 = vld [vmem:[#allocation3 + $0x138] sm:$0xff]
    %v599 = vld [vmem:[#allocation3 + $0x140] sm:$0xff]
    %v600 = vld [vmem:[#allocation3 + $0x148] sm:$0xff]
    %v601 = vld [vmem:[#allocation3 + $0x150] sm:$0xff]
    %v602 = vld [vmem:[#allocation3 + $0x158] sm:$0xff]
    %v603 = vld [vmem:[#allocation3 + $0x160] sm:$0xff]
    %v604 = vld [vmem:[#allocation3 + $0x168] sm:$0xff]
    %v605 = vld [vmem:[#allocation3 + $0x170] sm:$0xff]
    %v606 = vld [vmem:[#allocation3 + $0x178] sm:$0xff]
    %v607 = vld [vmem:[#allocation3 + $0x180] sm:$0xff]
    %v608 = vld [vmem:[#allocation3 + $0x188] sm:$0xff]
    %v609 = vld [vmem:[#allocation3 + $0x190] sm:$0xff]
    %v610 = vld [vmem:[#allocation3 + $0x198] sm:$0xff]
    %v611 = vld [vmem:[#allocation3 + $0x1a0] sm:$0xff]
    %v612 = vld [vmem:[#allocation3 + $0x1a8] sm:$0xff]
    %v613 = vld [vmem:[#allocation3 + $0x1b0] sm:$0xff]
    %v614 = vld [vmem:[#allocation3 + $0x1b8] sm:$0xff]
    %v615 = vld [vmem:[#allocation3 + $0x1c0] sm:$0xff]
    %v616 = vld [vmem:[#allocation3 + $0x1c8] sm:$0xff]
    %v617 = vld [vmem:[#allocation3 + $0x1d0] sm:$0xff]
    %v618 = vld [vmem:[#allocation3 + $0x1d8] sm:$0xff]
    %v619 = vld [vmem:[#allocation3 + $0x1e0] sm:$0xff]
    %v620 = vld [vmem:[#allocation3 + $0x1e8] sm:$0xff]
    %v621 = vld [vmem:[#allocation3 + $0x1f0] sm:$0xff]
    %v622 = vld [vmem:[#allocation3 + $0x1f8] sm:$0xff]
    %v623 = vld [vmem:[#allocation3 + $0x200] sm:$0xff]
    %v624 = vld [vmem:[#allocation3 + $0x208] sm:$0xff]
    %v625 = vld [vmem:[#allocation3 + $0x210] sm:$0xff]
    %v626 = vld [vmem:[#allocation3 + $0x218] sm:$0xff]
    %v627 = vld [vmem:[#allocation3 + $0x220] sm:$0xff]
    %v628 = vld [vmem:[#allocation3 + $0x228] sm:$0xff]
    %v629 = vld [vmem:[#allocation3 + $0x230] sm:$0xff]
    %v630 = vld [vmem:[#allocation3 + $0x238] sm:$0xff]
    %v631 = vld [vmem:[#allocation3 + $0x240] sm:$0xff]
    %v632 = vld [vmem:[#allocation3 + $0x248] sm:$0xff]
    %v633 = vld [vmem:[#allocation3 + $0x250] sm:$0xff]
    %v634 = vld [vmem:[#allocation3 + $0x258] sm:$0xff]
    %v635 = vld [vmem:[#allocation3 + $0x260] sm:$0xff]
    %v636 = vld [vmem:[#allocation3 + $0x268] sm:$0xff]
    %v637 = vld [vmem:[#allocation3 + $0x270] sm:$0xff]
    %v638 = vld [vmem:[#allocation3 + $0x278] sm:$0xff]
    %v639 = vld [vmem:[#allocation3 + $0x280] sm:$0xff]
    %v640 = vld [vmem:[#allocation3 + $0x288] sm:$0xff]
    %v641 = vld [vmem:[#allocation3 + $0x290] sm:$0xff]
    %v642 = vld [vmem:[#allocation3 + $0x298] sm:$0xff]
    %v643 = vld [vmem:[#allocation3 + $0x2a0] sm:$0xff]
    %v644 = vld [vmem:[#allocation3 + $0x2a8] sm:$0xff]
    %v645 = vld [vmem:[#allocation3 + $0x2b0] sm:$0xff]
    %v646 = vld [vmem:[#allocation3 + $0x2b8] sm:$0xff]
    %v647 = vld [vmem:[#allocation3 + $0x2c0] sm:$0xff]
    %v648 = vld [vmem:[#allocation3 + $0x2c8] sm:$0xff]
    %v649 = vld [vmem:[#allocation3 + $0x2d0] sm:$0xff]
    %v650 = vld [vmem:[#allocation3 + $0x2d8] sm:$0xff]
    %v651 = vld [vmem:[#allocation3 + $0x2e0] sm:$0xff]
    %v652 = vld [vmem:[#allocation3 + $0x2e8] sm:$0xff]
    %v653 = vld [vmem:[#allocation3 + $0x2f0] sm:$0xff]
    %v654 = vld [vmem:[#allocation3 + $0x2f8] sm:$0xff]
    %v655 = vld [vmem:[#allocation3 + $0x300] sm:$0xff]
    %v656 = vld [vmem:[#allocation3 + $0x308] sm:$0xff]
    %v657 = vld [vmem:[#allocation3 + $0x310] sm:$0xff]
    %v658 = vld [vmem:[#allocation3 + $0x318] sm:$0xff]
    %v659 = vld [vmem:[#allocation3 + $0x320] sm:$0xff]
    %v660 = vld [vmem:[#allocation3 + $0x328] sm:$0xff]
    %v661 = vld [vmem:[#allocation3 + $0x330] sm:$0xff]
    %v662 = vld [vmem:[#allocation3 + $0x338] sm:$0xff]
    %v663 = vld [vmem:[#allocation3 + $0x340] sm:$0xff]
    %v664 = vld [vmem:[#allocation3 + $0x348] sm:$0xff]
    %v665 = vld [vmem:[#allocation3 + $0x350] sm:$0xff]
    %v666 = vld [vmem:[#allocation3 + $0x358] sm:$0xff]
    %v667 = vld [vmem:[#allocation3 + $0x360] sm:$0xff]
    %v668 = vld [vmem:[#allocation3 + $0x368] sm:$0xff]
    %v669 = vld [vmem:[#allocation3 + $0x370] sm:$0xff]
    %v670 = vld [vmem:[#allocation3 + $0x378] sm:$0xff]
    %v671 = vld [vmem:[#allocation3 + $0x380] sm:$0xff]
    %v672 = vld [vmem:[#allocation3 + $0x388] sm:$0xff]
    %v673 = vld [vmem:[#allocation3 + $0x390] sm:$0xff]
    %v674 = vld [vmem:[#allocation3 + $0x398] sm:$0xff]
    %v675 = vld [vmem:[#allocation3 + $0x3a0] sm:$0xff]
    %v676 = vld [vmem:[#allocation3 + $0x3a8] sm:$0xff]
    %v677 = vld [vmem:[#allocation3 + $0x3b0] sm:$0xff]
    %v678 = vld [vmem:[#allocation3 + $0x3b8] sm:$0xff]
    %v679 = vld [vmem:[#allocation3 + $0x3c0] sm:$0xff]
    %v680 = vld [vmem:[#allocation3 + $0x3c8] sm:$0xff]
    %v681 = vld [vmem:[#allocation3 + $0x3d0] sm:$0xff]
    %v682 = vld [vmem:[#allocation3 + $0x3d8] sm:$0xff]
    %v683 = vld [vmem:[#allocation3 + $0x3e0] sm:$0xff]
    %v684 = vld [vmem:[#allocation3 + $0x3e8] sm:$0xff]
    %v685 = vld [vmem:[#allocation3 + $0x3f0] sm:$0xff]
    %v686 = vld [vmem:[#allocation3 + $0x3f8] sm:$0xff]
    %v687 = vld [vmem:[#allocation3 + $0x400] sm:$0xff]
    %v688 = vld [vmem:[#allocation3 + $0x408] sm:$0xff]
    %v689 = vld [vmem:[#allocation3 + $0x410] sm:$0xff]
    %v690 = vld [vmem:[#allocation3 + $0x418] sm:$0xff]
    %v691 = vld [vmem:[#allocation3 + $0x420] sm:$0xff]
    %v692 = vld [vmem:[#allocation3 + $0x428] sm:$0xff]
    %v693 = vld [vmem:[#allocation3 + $0x430] sm:$0xff]
    %v694 = vld [vmem:[#allocation3 + $0x438] sm:$0xff]
    %v695 = vld [vmem:[#allocation3 + $0x440] sm:$0xff]
    %v696 = vld [vmem:[#allocation3 + $0x448] sm:$0xff]
    %v697 = vld [vmem:[#allocation3 + $0x450] sm:$0xff]
    %v698 = vld [vmem:[#allocation3 + $0x458] sm:$0xff]
    %v699 = vld [vmem:[#allocation3 + $0x460] sm:$0xff]
    %v700 = vld [vmem:[#allocation3 + $0x468] sm:$0xff]
    %v701 = vld [vmem:[#allocation3 + $0x470] sm:$0xff]
    %v702 = vld [vmem:[#allocation3 + $0x478] sm:$0xff]
    %v703 = vld [vmem:[#allocation3 + $0x480] sm:$0xff]
    %v704 = vld [vmem:[#allocation3 + $0x488] sm:$0xff]
    %v705 = vld [vmem:[#allocation3 + $0x490] sm:$0xff]
    %v706 = vld [vmem:[#allocation3 + $0x498] sm:$0xff]
    %v707 = vld [vmem:[#allocation3 + $0x4a0] sm:$0xff]
    %v708 = vld [vmem:[#allocation3 + $0x4a8] sm:$0xff]
    %v709 = vld [vmem:[#allocation3 + $0x4b0] sm:$0xff]
    %v710 = vld [vmem:[#allocation3 + $0x4b8] sm:$0xff]
    %v711 = vld [vmem:[#allocation3 + $0x4c0] sm:$0xff]
    %v712 = vld [vmem:[#allocation3 + $0x4c8] sm:$0xff]
    %v713 = vld [vmem:[#allocation3 + $0x4d0] sm:$0xff]
    %v714 = vld [vmem:[#allocation3 + $0x4d8] sm:$0xff]
    %v715 = vld [vmem:[#allocation3 + $0x4e0] sm:$0xff]
    %v716 = vld [vmem:[#allocation3 + $0x4e8] sm:$0xff]
    %v717 = vld [vmem:[#allocation3 + $0x4f0] sm:$0xff]
    %v718 = vld [vmem:[#allocation3 + $0x4f8] sm:$0xff]
    %v719 = vld [vmem:[#allocation3 + $0x500] sm:$0xff]
    %v720 = vld [vmem:[#allocation3 + $0x508] sm:$0xff]
    %v721 = vld [vmem:[#allocation3 + $0x510] sm:$0xff]
    %v722 = vld [vmem:[#allocation3 + $0x518] sm:$0xff]
    %v723 = vld [vmem:[#allocation3 + $0x520] sm:$0xff]
    %v724 = vld [vmem:[#allocation3 + $0x528] sm:$0xff]
    %v725 = vld [vmem:[#allocation3 + $0x530] sm:$0xff]
    %v726 = vld [vmem:[#allocation3 + $0x538] sm:$0xff]
    %v727 = vld [vmem:[#allocation3 + $0x540] sm:$0xff]
    %v728 = vld [vmem:[#allocation3 + $0x548] sm:$0xff]
    %v729 = vld [vmem:[#allocation3 + $0x550] sm:$0xff]
    %v730 = vld [vmem:[#allocation3 + $0x558] sm:$0xff]
    %v731 = vld [vmem:[#allocation3 + $0x560] sm:$0xff]
    %v732 = vld [vmem:[#allocation3 + $0x568] sm:$0xff]
    %v733 = vld [vmem:[#allocation3 + $0x570] sm:$0xff]
    %v734 = vld [vmem:[#allocation3 + $0x578] sm:$0xff]
    %v735 = vld [vmem:[#allocation3 + $0x580] sm:$0xff]
    %v736 = vld [vmem:[#allocation3 + $0x588] sm:$0xff]
    %v737 = vld [vmem:[#allocation3 + $0x590] sm:$0xff]
    %v738 = vld [vmem:[#allocation3 + $0x598] sm:$0xff]
    %v739 = vld [vmem:[#allocation3 + $0x5a0] sm:$0xff]
    %v740 = vld [vmem:[#allocation3 + $0x5a8] sm:$0xff]
    %v741 = vld [vmem:[#allocation3 + $0x5b0] sm:$0xff]
    %v742 = vld [vmem:[#allocation3 + $0x5b8] sm:$0xff]
    %v743 = vld [vmem:[#allocation3 + $0x5c0] sm:$0xff]
    %v744 = vld [vmem:[#allocation3 + $0x5c8] sm:$0xff]
    %v745 = vld [vmem:[#allocation3 + $0x5d0] sm:$0xff]
    %v746 = vld [vmem:[#allocation3 + $0x5d8] sm:$0xff]
    %v747 = vld [vmem:[#allocation3 + $0x5e0] sm:$0xff]
    %v748 = vld [vmem:[#allocation3 + $0x5e8] sm:$0xff]
    %v749 = vld [vmem:[#allocation3 + $0x5f0] sm:$0xff]
    %v750 = vld [vmem:[#allocation3 + $0x5f8] sm:$0xff]
    %v751 = vld [vmem:[#allocation3 + $0x600] sm:$0xff]
    %v752 = vld [vmem:[#allocation3 + $0x608] sm:$0xff]
    %v753 = vld [vmem:[#allocation3 + $0x610] sm:$0xff]
    %v754 = vld [vmem:[#allocation3 + $0x618] sm:$0xff]
    %v755 = vld [vmem:[#allocation3 + $0x620] sm:$0xff]
    %v756 = vld [vmem:[#allocation3 + $0x628] sm:$0xff]
    %v757 = vld [vmem:[#allocation3 + $0x630] sm:$0xff]
    %v758 = vld [vmem:[#allocation3 + $0x638] sm:$0xff]
    %v759 = vld [vmem:[#allocation3 + $0x640] sm:$0xff]
    %v760 = vld [vmem:[#allocation3 + $0x648] sm:$0xff]
    %v761 = vld [vmem:[#allocation3 + $0x650] sm:$0xff]
    %v762 = vld [vmem:[#allocation3 + $0x658] sm:$0xff]
    %v763 = vld [vmem:[#allocation3 + $0x660] sm:$0xff]
    %v764 = vld [vmem:[#allocation3 + $0x668] sm:$0xff]
    %v765 = vld [vmem:[#allocation3 + $0x670] sm:$0xff]
    %v766 = vld [vmem:[#allocation3 + $0x678] sm:$0xff]
    %v767 = vld [vmem:[#allocation3 + $0x680] sm:$0xff]
    %v768 = vld [vmem:[#allocation3 + $0x688] sm:$0xff]
    %v769 = vld [vmem:[#allocation3 + $0x690] sm:$0xff]
    %v770 = vld [vmem:[#allocation3 + $0x698] sm:$0xff]
    %v771 = vld [vmem:[#allocation3 + $0x6a0] sm:$0xff]
    %v772 = vld [vmem:[#allocation3 + $0x6a8] sm:$0xff]
    %v773 = vld [vmem:[#allocation3 + $0x6b0] sm:$0xff]
    %v774 = vld [vmem:[#allocation3 + $0x6b8] sm:$0xff]
    %v775 = vld [vmem:[#allocation3 + $0x6c0] sm:$0xff]
    %v776 = vld [vmem:[#allocation3 + $0x6c8] sm:$0xff]
    %v777 = vld [vmem:[#allocation3 + $0x6d0] sm:$0xff]
    %v778 = vld [vmem:[#allocation3 + $0x6d8] sm:$0xff]
    %v779 = vld [vmem:[#allocation3 + $0x6e0] sm:$0xff]
    %v780 = vld [vmem:[#allocation3 + $0x6e8] sm:$0xff]
    %v781 = vld [vmem:[#allocation3 + $0x6f0] sm:$0xff]
    %v782 = vld [vmem:[#allocation3 + $0x6f8] sm:$0xff]
    %v783 = vld [vmem:[#allocation3 + $0x700] sm:$0xff]
    %v784 = vld [vmem:[#allocation3 + $0x708] sm:$0xff]
    %v785 = vld [vmem:[#allocation3 + $0x710] sm:$0xff]
    %v786 = vld [vmem:[#allocation3 + $0x718] sm:$0xff]
    %v787 = vld [vmem:[#allocation3 + $0x720] sm:$0xff]
    %v788 = vld [vmem:[#allocation3 + $0x728] sm:$0xff]
    %v789 = vld [vmem:[#allocation3 + $0x730] sm:$0xff]
    %v790 = vld [vmem:[#allocation3 + $0x738] sm:$0xff]
    %v791 = vld [vmem:[#allocation3 + $0x740] sm:$0xff]
    %v792 = vld [vmem:[#allocation3 + $0x748] sm:$0xff]
    %v793 = vld [vmem:[#allocation3 + $0x750] sm:$0xff]
    %v794 = vld [vmem:[#allocation3 + $0x758] sm:$0xff]
    %v795 = vld [vmem:[#allocation3 + $0x760] sm:$0xff]
    %v796 = vld [vmem:[#allocation3 + $0x768] sm:$0xff]
    %v797 = vld [vmem:[#allocation3 + $0x770] sm:$0xff]
    %v798 = vld [vmem:[#allocation3 + $0x778] sm:$0xff]
    %v799 = vld [vmem:[#allocation3 + $0x780] sm:$0xff]
    %v800 = vld [vmem:[#allocation3 + $0x788] sm:$0xff]
    %v801 = vld [vmem:[#allocation3 + $0x790] sm:$0xff]
    %v802 = vld [vmem:[#allocation3 + $0x798] sm:$0xff]
    %v803 = vld [vmem:[#allocation3 + $0x7a0] sm:$0xff]
    %v804 = vld [vmem:[#allocation3 + $0x7a8] sm:$0xff]
    %v805 = vld [vmem:[#allocation3 + $0x7b0] sm:$0xff]
    %v806 = vld [vmem:[#allocation3 + $0x7b8] sm:$0xff]
    %v807 = vld [vmem:[#allocation3 + $0x7c0] sm:$0xff]
    %v808 = vld [vmem:[#allocation3 + $0x7c8] sm:$0xff]
    %v809 = vld [vmem:[#allocation3 + $0x7d0] sm:$0xff]
    %v810 = vld [vmem:[#allocation3 + $0x7d8] sm:$0xff]
    %v811 = vld [vmem:[#allocation3 + $0x7e0] sm:$0xff]
    %v812 = vld [vmem:[#allocation3 + $0x7e8] sm:$0xff]
    %v813 = vld [vmem:[#allocation3 + $0x7f0] sm:$0xff]
    %v814 = vld [vmem:[#allocation3 + $0x7f8] sm:$0xff]
    %v815 = vsel %vm303, %v559, 0.0
    %v816 = vsel %vm304, %v560, 0.0
    %v817 = vsel %vm305, %v561, 0.0
    %v818 = vsel %vm306, %v562, 0.0
    %v819 = vsel %vm307, %v563, 0.0
    %v820 = vsel %vm308, %v564, 0.0
    %v821 = vsel %vm309, %v565, 0.0
    %v822 = vsel %vm310, %v566, 0.0
    %v823 = vsel %vm311, %v567, 0.0
    %v824 = vsel %vm312, %v568, 0.0
    %v825 = vsel %vm313, %v569, 0.0
    %v826 = vsel %vm314, %v570, 0.0
    %v827 = vsel %vm315, %v571, 0.0
    %v828 = vsel %vm316, %v572, 0.0
    %v829 = vsel %vm317, %v573, 0.0
    %v830 = vsel %vm318, %v574, 0.0
    %v831 = vsel %vm319, %v575, 0.0
    %v832 = vsel %vm320, %v576, 0.0
    %v833 = vsel %vm321, %v577, 0.0
    %v834 = vsel %vm322, %v578, 0.0
    %v835 = vsel %vm323, %v579, 0.0
    %v836 = vsel %vm324, %v580, 0.0
    %v837 = vsel %vm325, %v581, 0.0
    %v838 = vsel %vm326, %v582, 0.0
    %v839 = vsel %vm327, %v583, 0.0
    %v840 = vsel %vm328, %v584, 0.0
    %v841 = vsel %vm329, %v585, 0.0
    %v842 = vsel %vm330, %v586, 0.0
    %v843 = vsel %vm331, %v587, 0.0
    %v844 = vsel %vm332, %v588, 0.0
    %v845 = vsel %vm333, %v589, 0.0
    %v846 = vsel %vm334, %v590, 0.0
    %v847 = vsel %vm335, %v591, 0.0
    %v848 = vsel %vm336, %v592, 0.0
    %v849 = vsel %vm337, %v593, 0.0
    %v850 = vsel %vm338, %v594, 0.0
    %v851 = vsel %vm339, %v595, 0.0
    %v852 = vsel %vm340, %v596, 0.0
    %v853 = vsel %vm341, %v597, 0.0
    %v854 = vsel %vm342, %v598, 0.0
    %v855 = vsel %vm343, %v599, 0.0
    %v856 = vsel %vm344, %v600, 0.0
    %v857 = vsel %vm345, %v601, 0.0
    %v858 = vsel %vm346, %v602, 0.0
    %v859 = vsel %vm347, %v603, 0.0
    %v860 = vsel %vm348, %v604, 0.0
    %v861 = vsel %vm349, %v605, 0.0
    %v862 = vsel %vm350, %v606, 0.0
    %v863 = vsel %vm351, %v607, 0.0
    %v864 = vsel %vm352, %v608, 0.0
    %v865 = vsel %vm353, %v609, 0.0
    %v866 = vsel %vm354, %v610, 0.0
    %v867 = vsel %vm355, %v611, 0.0
    %v868 = vsel %vm356, %v612, 0.0
    %v869 = vsel %vm357, %v613, 0.0
    %v870 = vsel %vm358, %v614, 0.0
    %v871 = vsel %vm359, %v615, 0.0
    %v872 = vsel %vm360, %v616, 0.0
    %v873 = vsel %vm361, %v617, 0.0
    %v874 = vsel %vm362, %v618, 0.0
    %v875 = vsel %vm363, %v619, 0.0
    %v876 = vsel %vm364, %v620, 0.0
    %v877 = vsel %vm365, %v621, 0.0
    %v878 = vsel %vm366, %v622, 0.0
    %v879 = vsel %vm367, %v623, 0.0
    %v880 = vsel %vm368, %v624, 0.0
    %v881 = vsel %vm369, %v625, 0.0
    %v882 = vsel %vm370, %v626, 0.0
    %v883 = vsel %vm371, %v627, 0.0
    %v884 = vsel %vm372, %v628, 0.0
    %v885 = vsel %vm373, %v629, 0.0
    %v886 = vsel %vm374, %v630, 0.0
    %v887 = vsel %vm375, %v631, 0.0
    %v888 = vsel %vm376, %v632, 0.0
    %v889 = vsel %vm377, %v633, 0.0
    %v890 = vsel %vm378, %v634, 0.0
    %v891 = vsel %vm379, %v635, 0.0
    %v892 = vsel %vm380, %v636, 0.0
    %v893 = vsel %vm381, %v637, 0.0
    %v894 = vsel %vm382, %v638, 0.0
    %v895 = vsel %vm383, %v639, 0.0
    %v896 = vsel %vm384, %v640, 0.0
    %v897 = vsel %vm385, %v641, 0.0
    %v898 = vsel %vm386, %v642, 0.0
    %v899 = vsel %vm387, %v643, 0.0
    %v900 = vsel %vm388, %v644, 0.0
    %v901 = vsel %vm389, %v645, 0.0
    %v902 = vsel %vm390, %v646, 0.0
    %v903 = vsel %vm391, %v647, 0.0
    %v904 = vsel %vm392, %v648, 0.0
    %v905 = vsel %vm393, %v649, 0.0
    %v906 = vsel %vm394, %v650, 0.0
    %v907 = vsel %vm395, %v651, 0.0
    %v908 = vsel %vm396, %v652, 0.0
    %v909 = vsel %vm397, %v653, 0.0
    %v910 = vsel %vm398, %v654, 0.0
    %v911 = vsel %vm399, %v655, 0.0
    %v912 = vsel %vm400, %v656, 0.0
    %v913 = vsel %vm401, %v657, 0.0
    %v914 = vsel %vm402, %v658, 0.0
    %v915 = vsel %vm403, %v659, 0.0
    %v916 = vsel %vm404, %v660, 0.0
    %v917 = vsel %vm405, %v661, 0.0
    %v918 = vsel %vm406, %v662, 0.0
    %v919 = vsel %vm407, %v663, 0.0
    %v920 = vsel %vm408, %v664, 0.0
    %v921 = vsel %vm409, %v665, 0.0
    %v922 = vsel %vm410, %v666, 0.0
    %v923 = vsel %vm411, %v667, 0.0
    %v924 = vsel %vm412, %v668, 0.0
    %v925 = vsel %vm413, %v669, 0.0
    %v926 = vsel %vm414, %v670, 0.0
    %v927 = vsel %vm415, %v671, 0.0
    %v928 = vsel %vm416, %v672, 0.0
    %v929 = vsel %vm417, %v673, 0.0
    %v930 = vsel %vm418, %v674, 0.0
    %v931 = vsel %vm419, %v675, 0.0
    %v932 = vsel %vm420, %v676, 0.0
    %v933 = vsel %vm421, %v677, 0.0
    %v934 = vsel %vm422, %v678, 0.0
    %v935 = vsel %vm423, %v679, 0.0
    %v936 = vsel %vm424, %v680, 0.0
    %v937 = vsel %vm425, %v681, 0.0
    %v938 = vsel %vm426, %v682, 0.0
    %v939 = vsel %vm427, %v683, 0.0
    %v940 = vsel %vm428, %v684, 0.0
    %v941 = vsel %vm429, %v685, 0.0
    %v942 = vsel %vm430, %v686, 0.0
    %v943 = vsel %vm431, %v687, 0.0
    %v944 = vsel %vm432, %v688, 0.0
    %v945 = vsel %vm433, %v689, 0.0
    %v946 = vsel %vm434, %v690, 0.0
    %v947 = vsel %vm435, %v691, 0.0
    %v948 = vsel %vm436, %v692, 0.0
    %v949 = vsel %vm437, %v693, 0.0
    %v950 = vsel %vm438, %v694, 0.0
    %v951 = vsel %vm439, %v695, 0.0
    %v952 = vsel %vm440, %v696, 0.0
    %v953 = vsel %vm441, %v697, 0.0
    %v954 = vsel %vm442, %v698, 0.0
    %v955 = vsel %vm443, %v699, 0.0
    %v956 = vsel %vm444, %v700, 0.0
    %v957 = vsel %vm445, %v701, 0.0
    %v958 = vsel %vm446, %v702, 0.0
    %v959 = vsel %vm447, %v703, 0.0
    %v960 = vsel %vm448, %v704, 0.0
    %v961 = vsel %vm449, %v705, 0.0
    %v962 = vsel %vm450, %v706, 0.0
    %v963 = vsel %vm451, %v707, 0.0
    %v964 = vsel %vm452, %v708, 0.0
    %v965 = vsel %vm453, %v709, 0.0
    %v966 = vsel %vm454, %v710, 0.0
    %v967 = vsel %vm455, %v711, 0.0
    %v968 = vsel %vm456, %v712, 0.0
    %v969 = vsel %vm457, %v713, 0.0
    %v970 = vsel %vm458, %v714, 0.0
    %v971 = vsel %vm459, %v715, 0.0
    %v972 = vsel %vm460, %v716, 0.0
    %v973 = vsel %vm461, %v717, 0.0
    %v974 = vsel %vm462, %v718, 0.0
    %v975 = vsel %vm463, %v719, 0.0
    %v976 = vsel %vm464, %v720, 0.0
    %v977 = vsel %vm465, %v721, 0.0
    %v978 = vsel %vm466, %v722, 0.0
    %v979 = vsel %vm467, %v723, 0.0
    %v980 = vsel %vm468, %v724, 0.0
    %v981 = vsel %vm469, %v725, 0.0
    %v982 = vsel %vm470, %v726, 0.0
    %v983 = vsel %vm471, %v727, 0.0
    %v984 = vsel %vm472, %v728, 0.0
    %v985 = vsel %vm473, %v729, 0.0
    %v986 = vsel %vm474, %v730, 0.0
    %v987 = vsel %vm475, %v731, 0.0
    %v988 = vsel %vm476, %v732, 0.0
    %v989 = vsel %vm477, %v733, 0.0
    %v990 = vsel %vm478, %v734, 0.0
    %v991 = vsel %vm479, %v735, 0.0
    %v992 = vsel %vm480, %v736, 0.0
    %v993 = vsel %vm481, %v737, 0.0
    %v994 = vsel %vm482, %v738, 0.0
    %v995 = vsel %vm483, %v739, 0.0
    %v996 = vsel %vm484, %v740, 0.0
    %v997 = vsel %vm485, %v741, 0.0
    %v998 = vsel %vm486, %v742, 0.0
    %v999 = vsel %vm487, %v743, 0.0
    %v1000 = vsel %vm488, %v744, 0.0
    %v1001 = vsel %vm489, %v745, 0.0
    %v1002 = vsel %vm490, %v746, 0.0
    %v1003 = vsel %vm491, %v747, 0.0
    %v1004 = vsel %vm492, %v748, 0.0
    %v1005 = vsel %vm493, %v749, 0.0
    %v1006 = vsel %vm494, %v750, 0.0
    %v1007 = vsel %vm495, %v751, 0.0
    %v1008 = vsel %vm496, %v752, 0.0
    %v1009 = vsel %vm497, %v753, 0.0
    %v1010 = vsel %vm498, %v754, 0.0
    %v1011 = vsel %vm499, %v755, 0.0
    %v1012 = vsel %vm500, %v756, 0.0
    %v1013 = vsel %vm501, %v757, 0.0
    %v1014 = vsel %vm502, %v758, 0.0
    %v1015 = vsel %vm503, %v759, 0.0
    %v1016 = vsel %vm504, %v760, 0.0
    %v1017 = vsel %vm505, %v761, 0.0
    %v1018 = vsel %vm506, %v762, 0.0
    %v1019 = vsel %vm507, %v763, 0.0
    %v1020 = vsel %vm508, %v764, 0.0
    %v1021 = vsel %vm509, %v765, 0.0
    %v1022 = vsel %vm510, %v766, 0.0
    %v1023 = vsel %vm511, %v767, 0.0
    %v1024 = vsel %vm512, %v768, 0.0
    %v1025 = vsel %vm513, %v769, 0.0
    %v1026 = vsel %vm514, %v770, 0.0
    %v1027 = vsel %vm515, %v771, 0.0
    %v1028 = vsel %vm516, %v772, 0.0
    %v1029 = vsel %vm517, %v773, 0.0
    %v1030 = vsel %vm518, %v774, 0.0
    %v1031 = vsel %vm519, %v775, 0.0
    %v1032 = vsel %vm520, %v776, 0.0
    %v1033 = vsel %vm521, %v777, 0.0
    %v1034 = vsel %vm522, %v778, 0.0
    %v1035 = vsel %vm523, %v779, 0.0
    %v1036 = vsel %vm524, %v780, 0.0
    %v1037 = vsel %vm525, %v781, 0.0
    %v1038 = vsel %vm526, %v782, 0.0
    %v1039 = vsel %vm527, %v783, 0.0
    %v1040 = vsel %vm528, %v784, 0.0
    %v1041 = vsel %vm529, %v785, 0.0
    %v1042 = vsel %vm530, %v786, 0.0
    %v1043 = vsel %vm531, %v787, 0.0
    %v1044 = vsel %vm532, %v788, 0.0
    %v1045 = vsel %vm533, %v789, 0.0
    %v1046 = vsel %vm534, %v790, 0.0
    %v1047 = vsel %vm535, %v791, 0.0
    %v1048 = vsel %vm536, %v792, 0.0
    %v1049 = vsel %vm537, %v793, 0.0
    %v1050 = vsel %vm538, %v794, 0.0
    %v1051 = vsel %vm539, %v795, 0.0
    %v1052 = vsel %vm540, %v796, 0.0
    %v1053 = vsel %vm541, %v797, 0.0
    %v1054 = vsel %vm542, %v798, 0.0
    %v1055 = vsel %vm543, %v799, 0.0
    %v1056 = vsel %vm544, %v800, 0.0
    %v1057 = vsel %vm545, %v801, 0.0
    %v1058 = vsel %vm546, %v802, 0.0
    %v1059 = vsel %vm547, %v803, 0.0
    %v1060 = vsel %vm548, %v804, 0.0
    %v1061 = vsel %vm549, %v805, 0.0
    %v1062 = vsel %vm550, %v806, 0.0
    %v1063 = vsel %vm551, %v807, 0.0
    %v1064 = vsel %vm552, %v808, 0.0
    %v1065 = vsel %vm553, %v809, 0.0
    %v1066 = vsel %vm554, %v810, 0.0
    %v1067 = vsel %vm555, %v811, 0.0
    %v1068 = vsel %vm556, %v812, 0.0
    %v1069 = vsel %vm557, %v813, 0.0
    %v1070 = vsel %vm558, %v814, 0.0
    %v1071 = vpack.c.bf16 %v819, %v815
    %v1072 = vpack.c.bf16 %v820, %v816
    %v1073 = vpack.c.bf16 %v821, %v817
    %v1074 = vpack.c.bf16 %v822, %v818
    %v1075 = vpack.c.bf16 %v827, %v823
    %v1076 = vpack.c.bf16 %v828, %v824
    %v1077 = vpack.c.bf16 %v829, %v825
    %v1078 = vpack.c.bf16 %v830, %v826
    %v1079 = vpack.c.bf16 %v835, %v831
    %v1080 = vpack.c.bf16 %v836, %v832
    %v1081 = vpack.c.bf16 %v837, %v833
    %v1082 = vpack.c.bf16 %v838, %v834
    %v1083 = vpack.c.bf16 %v843, %v839
    %v1084 = vpack.c.bf16 %v844, %v840
    %v1085 = vpack.c.bf16 %v845, %v841
    %v1086 = vpack.c.bf16 %v846, %v842
    %v1087 = vpack.c.bf16 %v851, %v847
    %v1088 = vpack.c.bf16 %v852, %v848
    %v1089 = vpack.c.bf16 %v853, %v849
    %v1090 = vpack.c.bf16 %v854, %v850
    %v1091 = vpack.c.bf16 %v859, %v855
    %v1092 = vpack.c.bf16 %v860, %v856
    %v1093 = vpack.c.bf16 %v861, %v857
    %v1094 = vpack.c.bf16 %v862, %v858
    %v1095 = vpack.c.bf16 %v867, %v863
    %v1096 = vpack.c.bf16 %v868, %v864
    %v1097 = vpack.c.bf16 %v869, %v865
    %v1098 = vpack.c.bf16 %v870, %v866
    %v1099 = vpack.c.bf16 %v875, %v871
    %v1100 = vpack.c.bf16 %v876, %v872
    %v1101 = vpack.c.bf16 %v877, %v873
    %v1102 = vpack.c.bf16 %v878, %v874
    %v1103 = vpack.c.bf16 %v883, %v879
    %v1104 = vpack.c.bf16 %v884, %v880
    %v1105 = vpack.c.bf16 %v885, %v881
    %v1106 = vpack.c.bf16 %v886, %v882
    %v1107 = vpack.c.bf16 %v891, %v887
    %v1108 = vpack.c.bf16 %v892, %v888
    %v1109 = vpack.c.bf16 %v893, %v889
    %v1110 = vpack.c.bf16 %v894, %v890
    %v1111 = vpack.c.bf16 %v899, %v895
    %v1112 = vpack.c.bf16 %v900, %v896
    %v1113 = vpack.c.bf16 %v901, %v897
    %v1114 = vpack.c.bf16 %v902, %v898
    %v1115 = vpack.c.bf16 %v907, %v903
    %v1116 = vpack.c.bf16 %v908, %v904
    %v1117 = vpack.c.bf16 %v909, %v905
    %v1118 = vpack.c.bf16 %v910, %v906
    %v1119 = vpack.c.bf16 %v915, %v911
    %v1120 = vpack.c.bf16 %v916, %v912
    %v1121 = vpack.c.bf16 %v917, %v913
    %v1122 = vpack.c.bf16 %v918, %v914
    %v1123 = vpack.c.bf16 %v923, %v919
    %v1124 = vpack.c.bf16 %v924, %v920
    %v1125 = vpack.c.bf16 %v925, %v921
    %v1126 = vpack.c.bf16 %v926, %v922
    %v1127 = vpack.c.bf16 %v931, %v927
    %v1128 = vpack.c.bf16 %v932, %v928
    %v1129 = vpack.c.bf16 %v933, %v929
    %v1130 = vpack.c.bf16 %v934, %v930
    %v1131 = vpack.c.bf16 %v939, %v935
    %v1132 = vpack.c.bf16 %v940, %v936
    %v1133 = vpack.c.bf16 %v941, %v937
    %v1134 = vpack.c.bf16 %v942, %v938
    %v1135 = vpack.c.bf16 %v947, %v943
    %v1136 = vpack.c.bf16 %v948, %v944
    %v1137 = vpack.c.bf16 %v949, %v945
    %v1138 = vpack.c.bf16 %v950, %v946
    %v1139 = vpack.c.bf16 %v955, %v951
    %v1140 = vpack.c.bf16 %v956, %v952
    %v1141 = vpack.c.bf16 %v957, %v953
    %v1142 = vpack.c.bf16 %v958, %v954
    %v1143 = vpack.c.bf16 %v963, %v959
    %v1144 = vpack.c.bf16 %v964, %v960
    %v1145 = vpack.c.bf16 %v965, %v961
    %v1146 = vpack.c.bf16 %v966, %v962
    %v1147 = vpack.c.bf16 %v971, %v967
    %v1148 = vpack.c.bf16 %v972, %v968
    %v1149 = vpack.c.bf16 %v973, %v969
    %v1150 = vpack.c.bf16 %v974, %v970
    %v1151 = vpack.c.bf16 %v979, %v975
    %v1152 = vpack.c.bf16 %v980, %v976
    %v1153 = vpack.c.bf16 %v981, %v977
    %v1154 = vpack.c.bf16 %v982, %v978
    %v1155 = vpack.c.bf16 %v987, %v983
    %v1156 = vpack.c.bf16 %v988, %v984
    %v1157 = vpack.c.bf16 %v989, %v985
    %v1158 = vpack.c.bf16 %v990, %v986
    %v1159 = vpack.c.bf16 %v995, %v991
    %v1160 = vpack.c.bf16 %v996, %v992
    %v1161 = vpack.c.bf16 %v997, %v993
    %v1162 = vpack.c.bf16 %v998, %v994
    %v1163 = vpack.c.bf16 %v1003, %v999
    %v1164 = vpack.c.bf16 %v1004, %v1000
    %v1165 = vpack.c.bf16 %v1005, %v1001
    %v1166 = vpack.c.bf16 %v1006, %v1002
    %v1167 = vpack.c.bf16 %v1011, %v1007
    %v1168 = vpack.c.bf16 %v1012, %v1008
    %v1169 = vpack.c.bf16 %v1013, %v1009
    %v1170 = vpack.c.bf16 %v1014, %v1010
    %v1171 = vpack.c.bf16 %v1019, %v1015
    %v1172 = vpack.c.bf16 %v1020, %v1016
    %v1173 = vpack.c.bf16 %v1021, %v1017
    %v1174 = vpack.c.bf16 %v1022, %v1018
    %v1175 = vpack.c.bf16 %v1027, %v1023
    %v1176 = vpack.c.bf16 %v1028, %v1024
    %v1177 = vpack.c.bf16 %v1029, %v1025
    %v1178 = vpack.c.bf16 %v1030, %v1026
    %v1179 = vpack.c.bf16 %v1035, %v1031
    %v1180 = vpack.c.bf16 %v1036, %v1032
    %v1181 = vpack.c.bf16 %v1037, %v1033
    %v1182 = vpack.c.bf16 %v1038, %v1034
    %v1183 = vpack.c.bf16 %v1043, %v1039
    %v1184 = vpack.c.bf16 %v1044, %v1040
    %v1185 = vpack.c.bf16 %v1045, %v1041
    %v1186 = vpack.c.bf16 %v1046, %v1042
    %v1187 = vpack.c.bf16 %v1051, %v1047
    %v1188 = vpack.c.bf16 %v1052, %v1048
    %v1189 = vpack.c.bf16 %v1053, %v1049
    %v1190 = vpack.c.bf16 %v1054, %v1050
    %v1191 = vpack.c.bf16 %v1059, %v1055
    %v1192 = vpack.c.bf16 %v1060, %v1056
    %v1193 = vpack.c.bf16 %v1061, %v1057
    %v1194 = vpack.c.bf16 %v1062, %v1058
    %v1195 = vpack.c.bf16 %v1067, %v1063
    %v1196 = vpack.c.bf16 %v1068, %v1064
    %v1197 = vpack.c.bf16 %v1069, %v1065
    %v1198 = vpack.c.bf16 %v1070, %v1066
    %v1327 = vunpack.c.l.b16 %v1071
    %v1328 = vunpack.c.l.b16 %v1072
    %v1329 = vunpack.c.l.b16 %v1073
    %v1330 = vunpack.c.l.b16 %v1074
    %v1331 = vunpack.c.h.b16 %v1071
    %v1332 = vunpack.c.h.b16 %v1072
    %v1333 = vunpack.c.h.b16 %v1073
    %v1334 = vunpack.c.h.b16 %v1074
    %v1335 = vunpack.c.l.b16 %v1075
    %v1336 = vunpack.c.l.b16 %v1076
    %v1337 = vunpack.c.l.b16 %v1077
    %v1338 = vunpack.c.l.b16 %v1078
    %v1339 = vunpack.c.h.b16 %v1075
    %v1340 = vunpack.c.h.b16 %v1076
    %v1341 = vunpack.c.h.b16 %v1077
    %v1342 = vunpack.c.h.b16 %v1078
    %v1343 = vunpack.c.l.b16 %v1079
    %v1344 = vunpack.c.l.b16 %v1080
    %v1345 = vunpack.c.l.b16 %v1081
    %v1346 = vunpack.c.l.b16 %v1082
    %v1347 = vunpack.c.h.b16 %v1079
    %v1348 = vunpack.c.h.b16 %v1080
    %v1349 = vunpack.c.h.b16 %v1081
    %v1350 = vunpack.c.h.b16 %v1082
    %v1351 = vunpack.c.l.b16 %v1083
    %v1352 = vunpack.c.l.b16 %v1084
    %v1353 = vunpack.c.l.b16 %v1085
    %v1354 = vunpack.c.l.b16 %v1086
    %v1355 = vunpack.c.h.b16 %v1083
    %v1356 = vunpack.c.h.b16 %v1084
    %v1357 = vunpack.c.h.b16 %v1085
    %v1358 = vunpack.c.h.b16 %v1086
    %v1359 = vunpack.c.l.b16 %v1087
    %v1360 = vunpack.c.l.b16 %v1088
    %v1361 = vunpack.c.l.b16 %v1089
    %v1362 = vunpack.c.l.b16 %v1090
    %v1363 = vunpack.c.h.b16 %v1087
    %v1364 = vunpack.c.h.b16 %v1088
    %v1365 = vunpack.c.h.b16 %v1089
    %v1366 = vunpack.c.h.b16 %v1090
    %v1367 = vunpack.c.l.b16 %v1091
    %v1368 = vunpack.c.l.b16 %v1092
    %v1369 = vunpack.c.l.b16 %v1093
    %v1370 = vunpack.c.l.b16 %v1094
    %v1371 = vunpack.c.h.b16 %v1091
    %v1372 = vunpack.c.h.b16 %v1092
    %v1373 = vunpack.c.h.b16 %v1093
    %v1374 = vunpack.c.h.b16 %v1094
    %v1375 = vunpack.c.l.b16 %v1095
    %v1376 = vunpack.c.l.b16 %v1096
    %v1377 = vunpack.c.l.b16 %v1097
    %v1378 = vunpack.c.l.b16 %v1098
    %v1379 = vunpack.c.h.b16 %v1095
    %v1380 = vunpack.c.h.b16 %v1096
    %v1381 = vunpack.c.h.b16 %v1097
    %v1382 = vunpack.c.h.b16 %v1098
    %v1383 = vunpack.c.l.b16 %v1099
    %v1384 = vunpack.c.l.b16 %v1100
    %v1385 = vunpack.c.l.b16 %v1101
    %v1386 = vunpack.c.l.b16 %v1102
    %v1387 = vunpack.c.h.b16 %v1099
    %v1388 = vunpack.c.h.b16 %v1100
    %v1389 = vunpack.c.h.b16 %v1101
    %v1390 = vunpack.c.h.b16 %v1102
    %v1391 = vunpack.c.l.b16 %v1103
    %v1392 = vunpack.c.l.b16 %v1104
    %v1393 = vunpack.c.l.b16 %v1105
    %v1394 = vunpack.c.l.b16 %v1106
    %v1395 = vunpack.c.h.b16 %v1103
    %v1396 = vunpack.c.h.b16 %v1104
    %v1397 = vunpack.c.h.b16 %v1105
    %v1398 = vunpack.c.h.b16 %v1106
    %v1399 = vunpack.c.l.b16 %v1107
    %v1400 = vunpack.c.l.b16 %v1108
    %v1401 = vunpack.c.l.b16 %v1109
    %v1402 = vunpack.c.l.b16 %v1110
    %v1403 = vunpack.c.h.b16 %v1107
    %v1404 = vunpack.c.h.b16 %v1108
    %v1405 = vunpack.c.h.b16 %v1109
    %v1406 = vunpack.c.h.b16 %v1110
    %v1407 = vunpack.c.l.b16 %v1111
    %v1408 = vunpack.c.l.b16 %v1112
    %v1409 = vunpack.c.l.b16 %v1113
    %v1410 = vunpack.c.l.b16 %v1114
    %v1411 = vunpack.c.h.b16 %v1111
    %v1412 = vunpack.c.h.b16 %v1112
    %v1413 = vunpack.c.h.b16 %v1113
    %v1414 = vunpack.c.h.b16 %v1114
    %v1415 = vunpack.c.l.b16 %v1115
    %v1416 = vunpack.c.l.b16 %v1116
    %v1417 = vunpack.c.l.b16 %v1117
    %v1418 = vunpack.c.l.b16 %v1118
    %v1419 = vunpack.c.h.b16 %v1115
    %v1420 = vunpack.c.h.b16 %v1116
    %v1421 = vunpack.c.h.b16 %v1117
    %v1422 = vunpack.c.h.b16 %v1118
    %v1423 = vunpack.c.l.b16 %v1119
    %v1424 = vunpack.c.l.b16 %v1120
    %v1425 = vunpack.c.l.b16 %v1121
    %v1426 = vunpack.c.l.b16 %v1122
    %v1427 = vunpack.c.h.b16 %v1119
    %v1428 = vunpack.c.h.b16 %v1120
    %v1429 = vunpack.c.h.b16 %v1121
    %v1430 = vunpack.c.h.b16 %v1122
    %v1431 = vunpack.c.l.b16 %v1123
    %v1432 = vunpack.c.l.b16 %v1124
    %v1433 = vunpack.c.l.b16 %v1125
    %v1434 = vunpack.c.l.b16 %v1126
    %v1435 = vunpack.c.h.b16 %v1123
    %v1436 = vunpack.c.h.b16 %v1124
    %v1437 = vunpack.c.h.b16 %v1125
    %v1438 = vunpack.c.h.b16 %v1126
    %v1439 = vunpack.c.l.b16 %v1127
    %v1440 = vunpack.c.l.b16 %v1128
    %v1441 = vunpack.c.l.b16 %v1129
    %v1442 = vunpack.c.l.b16 %v1130
    %v1443 = vunpack.c.h.b16 %v1127
    %v1444 = vunpack.c.h.b16 %v1128
    %v1445 = vunpack.c.h.b16 %v1129
    %v1446 = vunpack.c.h.b16 %v1130
    %v1447 = vunpack.c.l.b16 %v1131
    %v1448 = vunpack.c.l.b16 %v1132
    %v1449 = vunpack.c.l.b16 %v1133
    %v1450 = vunpack.c.l.b16 %v1134
    %v1451 = vunpack.c.h.b16 %v1131
    %v1452 = vunpack.c.h.b16 %v1132
    %v1453 = vunpack.c.h.b16 %v1133
    %v1454 = vunpack.c.h.b16 %v1134
    %v1455 = vunpack.c.l.b16 %v1135
    %v1456 = vunpack.c.l.b16 %v1136
    %v1457 = vunpack.c.l.b16 %v1137
    %v1458 = vunpack.c.l.b16 %v1138
    %v1459 = vunpack.c.h.b16 %v1135
    %v1460 = vunpack.c.h.b16 %v1136
    %v1461 = vunpack.c.h.b16 %v1137
    %v1462 = vunpack.c.h.b16 %v1138
    %v1463 = vunpack.c.l.b16 %v1139
    %v1464 = vunpack.c.l.b16 %v1140
    %v1465 = vunpack.c.l.b16 %v1141
    %v1466 = vunpack.c.l.b16 %v1142
    %v1467 = vunpack.c.h.b16 %v1139
    %v1468 = vunpack.c.h.b16 %v1140
    %v1469 = vunpack.c.h.b16 %v1141
    %v1470 = vunpack.c.h.b16 %v1142
    %v1471 = vunpack.c.l.b16 %v1143
    %v1472 = vunpack.c.l.b16 %v1144
    %v1473 = vunpack.c.l.b16 %v1145
    %v1474 = vunpack.c.l.b16 %v1146
    %v1475 = vunpack.c.h.b16 %v1143
    %v1476 = vunpack.c.h.b16 %v1144
    %v1477 = vunpack.c.h.b16 %v1145
    %v1478 = vunpack.c.h.b16 %v1146
    %v1479 = vunpack.c.l.b16 %v1147
    %v1480 = vunpack.c.l.b16 %v1148
    %v1481 = vunpack.c.l.b16 %v1149
    %v1482 = vunpack.c.l.b16 %v1150
    %v1483 = vunpack.c.h.b16 %v1147
    %v1484 = vunpack.c.h.b16 %v1148
    %v1485 = vunpack.c.h.b16 %v1149
    %v1486 = vunpack.c.h.b16 %v1150
    %v1487 = vunpack.c.l.b16 %v1151
    %v1488 = vunpack.c.l.b16 %v1152
    %v1489 = vunpack.c.l.b16 %v1153
    %v1490 = vunpack.c.l.b16 %v1154
    %v1491 = vunpack.c.h.b16 %v1151
    %v1492 = vunpack.c.h.b16 %v1152
    %v1493 = vunpack.c.h.b16 %v1153
    %v1494 = vunpack.c.h.b16 %v1154
    %v1495 = vunpack.c.l.b16 %v1155
    %v1496 = vunpack.c.l.b16 %v1156
    %v1497 = vunpack.c.l.b16 %v1157
    %v1498 = vunpack.c.l.b16 %v1158
    %v1499 = vunpack.c.h.b16 %v1155
    %v1500 = vunpack.c.h.b16 %v1156
    %v1501 = vunpack.c.h.b16 %v1157
    %v1502 = vunpack.c.h.b16 %v1158
    %v1503 = vunpack.c.l.b16 %v1159
    %v1504 = vunpack.c.l.b16 %v1160
    %v1505 = vunpack.c.l.b16 %v1161
    %v1506 = vunpack.c.l.b16 %v1162
    %v1507 = vunpack.c.h.b16 %v1159
    %v1508 = vunpack.c.h.b16 %v1160
    %v1509 = vunpack.c.h.b16 %v1161
    %v1510 = vunpack.c.h.b16 %v1162
    %v1511 = vunpack.c.l.b16 %v1163
    %v1512 = vunpack.c.l.b16 %v1164
    %v1513 = vunpack.c.l.b16 %v1165
    %v1514 = vunpack.c.l.b16 %v1166
    %v1515 = vunpack.c.h.b16 %v1163
    %v1516 = vunpack.c.h.b16 %v1164
    %v1517 = vunpack.c.h.b16 %v1165
    %v1518 = vunpack.c.h.b16 %v1166
    %v1519 = vunpack.c.l.b16 %v1167
    %v1520 = vunpack.c.l.b16 %v1168
    %v1521 = vunpack.c.l.b16 %v1169
    %v1522 = vunpack.c.l.b16 %v1170
    %v1523 = vunpack.c.h.b16 %v1167
    %v1524 = vunpack.c.h.b16 %v1168
    %v1525 = vunpack.c.h.b16 %v1169
    %v1526 = vunpack.c.h.b16 %v1170
    %v1527 = vunpack.c.l.b16 %v1171
    %v1528 = vunpack.c.l.b16 %v1172
    %v1529 = vunpack.c.l.b16 %v1173
    %v1530 = vunpack.c.l.b16 %v1174
    %v1531 = vunpack.c.h.b16 %v1171
    %v1532 = vunpack.c.h.b16 %v1172
    %v1533 = vunpack.c.h.b16 %v1173
    %v1534 = vunpack.c.h.b16 %v1174
    %v1535 = vunpack.c.l.b16 %v1175
    %v1536 = vunpack.c.l.b16 %v1176
    %v1537 = vunpack.c.l.b16 %v1177
    %v1538 = vunpack.c.l.b16 %v1178
    %v1539 = vunpack.c.h.b16 %v1175
    %v1540 = vunpack.c.h.b16 %v1176
    %v1541 = vunpack.c.h.b16 %v1177
    %v1542 = vunpack.c.h.b16 %v1178
    %v1543 = vunpack.c.l.b16 %v1179
    %v1544 = vunpack.c.l.b16 %v1180
    %v1545 = vunpack.c.l.b16 %v1181
    %v1546 = vunpack.c.l.b16 %v1182
    %v1547 = vunpack.c.h.b16 %v1179
    %v1548 = vunpack.c.h.b16 %v1180
    %v1549 = vunpack.c.h.b16 %v1181
    %v1550 = vunpack.c.h.b16 %v1182
    %v1551 = vunpack.c.l.b16 %v1183
    %v1552 = vunpack.c.l.b16 %v1184
    %v1553 = vunpack.c.l.b16 %v1185
    %v1554 = vunpack.c.l.b16 %v1186
    %v1555 = vunpack.c.h.b16 %v1183
    %v1556 = vunpack.c.h.b16 %v1184
    %v1557 = vunpack.c.h.b16 %v1185
    %v1558 = vunpack.c.h.b16 %v1186
    %v1559 = vunpack.c.l.b16 %v1187
    %v1560 = vunpack.c.l.b16 %v1188
    %v1561 = vunpack.c.l.b16 %v1189
    %v1562 = vunpack.c.l.b16 %v1190
    %v1563 = vunpack.c.h.b16 %v1187
    %v1564 = vunpack.c.h.b16 %v1188
    %v1565 = vunpack.c.h.b16 %v1189
    %v1566 = vunpack.c.h.b16 %v1190
    %v1567 = vunpack.c.l.b16 %v1191
    %v1568 = vunpack.c.l.b16 %v1192
    %v1569 = vunpack.c.l.b16 %v1193
    %v1570 = vunpack.c.l.b16 %v1194
    %v1571 = vunpack.c.h.b16 %v1191
    %v1572 = vunpack.c.h.b16 %v1192
    %v1573 = vunpack.c.h.b16 %v1193
    %v1574 = vunpack.c.h.b16 %v1194
    %v1575 = vunpack.c.l.b16 %v1195
    %v1576 = vunpack.c.l.b16 %v1196
    %v1577 = vunpack.c.l.b16 %v1197
    %v1578 = vunpack.c.l.b16 %v1198
    %v1579 = vunpack.c.h.b16 %v1195
    %v1580 = vunpack.c.h.b16 %v1196
    %v1581 = vunpack.c.h.b16 %v1197
    %v1582 = vunpack.c.h.b16 %v1198
    %v1583 = vpack.c.b16 %v1328, %v1327
    %v1584 = vpack.c.b16 %v1330, %v1329
    %v1585 = vpack.c.b16 %v1332, %v1331
    %v1586 = vpack.c.b16 %v1334, %v1333
    %v1587 = vpack.c.b16 %v1336, %v1335
    %v1588 = vpack.c.b16 %v1338, %v1337
    %v1589 = vpack.c.b16 %v1340, %v1339
    %v1590 = vpack.c.b16 %v1342, %v1341
    %v1591 = vpack.c.b16 %v1344, %v1343
    %v1592 = vpack.c.b16 %v1346, %v1345
    %v1593 = vpack.c.b16 %v1348, %v1347
    %v1594 = vpack.c.b16 %v1350, %v1349
    %v1595 = vpack.c.b16 %v1352, %v1351
    %v1596 = vpack.c.b16 %v1354, %v1353
    %v1597 = vpack.c.b16 %v1356, %v1355
    %v1598 = vpack.c.b16 %v1358, %v1357
    %v1599 = vpack.c.b16 %v1360, %v1359
    %v1600 = vpack.c.b16 %v1362, %v1361
    %v1601 = vpack.c.b16 %v1364, %v1363
    %v1602 = vpack.c.b16 %v1366, %v1365
    %v1603 = vpack.c.b16 %v1368, %v1367
    %v1604 = vpack.c.b16 %v1370, %v1369
    %v1605 = vpack.c.b16 %v1372, %v1371
    %v1606 = vpack.c.b16 %v1374, %v1373
    %v1607 = vpack.c.b16 %v1376, %v1375
    %v1608 = vpack.c.b16 %v1378, %v1377
    %v1609 = vpack.c.b16 %v1380, %v1379
    %v1610 = vpack.c.b16 %v1382, %v1381
    %v1611 = vpack.c.b16 %v1384, %v1383
    %v1612 = vpack.c.b16 %v1386, %v1385
    %v1613 = vpack.c.b16 %v1388, %v1387
    %v1614 = vpack.c.b16 %v1390, %v1389
    %v1615 = vpack.c.b16 %v1392, %v1391
    %v1616 = vpack.c.b16 %v1394, %v1393
    %v1617 = vpack.c.b16 %v1396, %v1395
    %v1618 = vpack.c.b16 %v1398, %v1397
    %v1619 = vpack.c.b16 %v1400, %v1399
    %v1620 = vpack.c.b16 %v1402, %v1401
    %v1621 = vpack.c.b16 %v1404, %v1403
    %v1622 = vpack.c.b16 %v1406, %v1405
    %v1623 = vpack.c.b16 %v1408, %v1407
    %v1624 = vpack.c.b16 %v1410, %v1409
    %v1625 = vpack.c.b16 %v1412, %v1411
    %v1626 = vpack.c.b16 %v1414, %v1413
    %v1627 = vpack.c.b16 %v1416, %v1415
    %v1628 = vpack.c.b16 %v1418, %v1417
    %v1629 = vpack.c.b16 %v1420, %v1419
    %v1630 = vpack.c.b16 %v1422, %v1421
    %v1631 = vpack.c.b16 %v1424, %v1423
    %v1632 = vpack.c.b16 %v1426, %v1425
    %v1633 = vpack.c.b16 %v1428, %v1427
    %v1634 = vpack.c.b16 %v1430, %v1429
    %v1635 = vpack.c.b16 %v1432, %v1431
    %v1636 = vpack.c.b16 %v1434, %v1433
    %v1637 = vpack.c.b16 %v1436, %v1435
    %v1638 = vpack.c.b16 %v1438, %v1437
    %v1639 = vpack.c.b16 %v1440, %v1439
    %v1640 = vpack.c.b16 %v1442, %v1441
    %v1641 = vpack.c.b16 %v1444, %v1443
    %v1642 = vpack.c.b16 %v1446, %v1445
    %v1643 = vpack.c.b16 %v1448, %v1447
    %v1644 = vpack.c.b16 %v1450, %v1449
    %v1645 = vpack.c.b16 %v1452, %v1451
    %v1646 = vpack.c.b16 %v1454, %v1453
    %v1647 = vpack.c.b16 %v1456, %v1455
    %v1648 = vpack.c.b16 %v1458, %v1457
    %v1649 = vpack.c.b16 %v1460, %v1459
    %v1650 = vpack.c.b16 %v1462, %v1461
    %v1651 = vpack.c.b16 %v1464, %v1463
    %v1652 = vpack.c.b16 %v1466, %v1465
    %v1653 = vpack.c.b16 %v1468, %v1467
    %v1654 = vpack.c.b16 %v1470, %v1469
    %v1655 = vpack.c.b16 %v1472, %v1471
    %v1656 = vpack.c.b16 %v1474, %v1473
    %v1657 = vpack.c.b16 %v1476, %v1475
    %v1658 = vpack.c.b16 %v1478, %v1477
    %v1659 = vpack.c.b16 %v1480, %v1479
    %v1660 = vpack.c.b16 %v1482, %v1481
    %v1661 = vpack.c.b16 %v1484, %v1483
    %v1662 = vpack.c.b16 %v1486, %v1485
    %v1663 = vpack.c.b16 %v1488, %v1487
    %v1664 = vpack.c.b16 %v1490, %v1489
    %v1665 = vpack.c.b16 %v1492, %v1491
    %v1666 = vpack.c.b16 %v1494, %v1493
    %v1667 = vpack.c.b16 %v1496, %v1495
    %v1668 = vpack.c.b16 %v1498, %v1497
    %v1669 = vpack.c.b16 %v1500, %v1499
    %v1670 = vpack.c.b16 %v1502, %v1501
    %v1671 = vpack.c.b16 %v1504, %v1503
    %v1672 = vpack.c.b16 %v1506, %v1505
    %v1673 = vpack.c.b16 %v1508, %v1507
    %v1674 = vpack.c.b16 %v1510, %v1509
    %v1675 = vpack.c.b16 %v1512, %v1511
    %v1676 = vpack.c.b16 %v1514, %v1513
    %v1677 = vpack.c.b16 %v1516, %v1515
    %v1678 = vpack.c.b16 %v1518, %v1517
    %v1679 = vpack.c.b16 %v1520, %v1519
    %v1680 = vpack.c.b16 %v1522, %v1521
    %v1681 = vpack.c.b16 %v1524, %v1523
    %v1682 = vpack.c.b16 %v1526, %v1525
    %v1683 = vpack.c.b16 %v1528, %v1527
    %v1684 = vpack.c.b16 %v1530, %v1529
    %v1685 = vpack.c.b16 %v1532, %v1531
    %v1686 = vpack.c.b16 %v1534, %v1533
    %v1687 = vpack.c.b16 %v1536, %v1535
    %v1688 = vpack.c.b16 %v1538, %v1537
    %v1689 = vpack.c.b16 %v1540, %v1539
    %v1690 = vpack.c.b16 %v1542, %v1541
    %v1691 = vpack.c.b16 %v1544, %v1543
    %v1692 = vpack.c.b16 %v1546, %v1545
    %v1693 = vpack.c.b16 %v1548, %v1547
    %v1694 = vpack.c.b16 %v1550, %v1549
    %v1695 = vpack.c.b16 %v1552, %v1551
    %v1696 = vpack.c.b16 %v1554, %v1553
    %v1697 = vpack.c.b16 %v1556, %v1555
    %v1698 = vpack.c.b16 %v1558, %v1557
    %v1699 = vpack.c.b16 %v1560, %v1559
    %v1700 = vpack.c.b16 %v1562, %v1561
    %v1701 = vpack.c.b16 %v1564, %v1563
    %v1702 = vpack.c.b16 %v1566, %v1565
    %v1703 = vpack.c.b16 %v1568, %v1567
    %v1704 = vpack.c.b16 %v1570, %v1569
    %v1705 = vpack.c.b16 %v1572, %v1571
    %v1706 = vpack.c.b16 %v1574, %v1573
    %v1707 = vpack.c.b16 %v1576, %v1575
    %v1708 = vpack.c.b16 %v1578, %v1577
    %v1709 = vpack.c.b16 %v1580, %v1579
    %v1710 = vpack.c.b16 %v1582, %v1581
    %1839 = vst [vmem:[#allocation6] sm:$0xff] %v1583
    %1840 = vst [vmem:[#allocation6 + $0x8] sm:$0xff] %v1584
    %1841 = vst [vmem:[#allocation6 + $0x10] sm:$0xff] %v1585
    %1842 = vst [vmem:[#allocation6 + $0x18] sm:$0xff] %v1586
    %1843 = vst [vmem:[#allocation6 + $0x20] sm:$0xff] %v1587
    %1844 = vst [vmem:[#allocation6 + $0x28] sm:$0xff] %v1588
    %1845 = vst [vmem:[#allocation6 + $0x30] sm:$0xff] %v1589
    %1846 = vst [vmem:[#allocation6 + $0x38] sm:$0xff] %v1590
    %1847 = vst [vmem:[#allocation6 + $0x40] sm:$0xff] %v1591
    %1848 = vst [vmem:[#allocation6 + $0x48] sm:$0xff] %v1592
    %1849 = vst [vmem:[#allocation6 + $0x50] sm:$0xff] %v1593
    %1850 = vst [vmem:[#allocation6 + $0x58] sm:$0xff] %v1594
    %1851 = vst [vmem:[#allocation6 + $0x60] sm:$0xff] %v1595
    %1852 = vst [vmem:[#allocation6 + $0x68] sm:$0xff] %v1596
    %1853 = vst [vmem:[#allocation6 + $0x70] sm:$0xff] %v1597
    %1854 = vst [vmem:[#allocation6 + $0x78] sm:$0xff] %v1598
    %1855 = vst [vmem:[#allocation6 + $0x80] sm:$0xff] %v1599
    %1856 = vst [vmem:[#allocation6 + $0x88] sm:$0xff] %v1600
    %1857 = vst [vmem:[#allocation6 + $0x90] sm:$0xff] %v1601
    %1858 = vst [vmem:[#allocation6 + $0x98] sm:$0xff] %v1602
    %1859 = vst [vmem:[#allocation6 + $0xa0] sm:$0xff] %v1603
    %1860 = vst [vmem:[#allocation6 + $0xa8] sm:$0xff] %v1604
    %1861 = vst [vmem:[#allocation6 + $0xb0] sm:$0xff] %v1605
    %1862 = vst [vmem:[#allocation6 + $0xb8] sm:$0xff] %v1606
    %1863 = vst [vmem:[#allocation6 + $0xc0] sm:$0xff] %v1607
    %1864 = vst [vmem:[#allocation6 + $0xc8] sm:$0xff] %v1608
    %1865 = vst [vmem:[#allocation6 + $0xd0] sm:$0xff] %v1609
    %1866 = vst [vmem:[#allocation6 + $0xd8] sm:$0xff] %v1610
    %1867 = vst [vmem:[#allocation6 + $0xe0] sm:$0xff] %v1611
    %1868 = vst [vmem:[#allocation6 + $0xe8] sm:$0xff] %v1612
    %1869 = vst [vmem:[#allocation6 + $0xf0] sm:$0xff] %v1613
    %1870 = vst [vmem:[#allocation6 + $0xf8] sm:$0xff] %v1614
    %1871 = vst [vmem:[#allocation6 + $0x100] sm:$0xff] %v1615
    %1872 = vst [vmem:[#allocation6 + $0x108] sm:$0xff] %v1616
    %1873 = vst [vmem:[#allocation6 + $0x110] sm:$0xff] %v1617
    %1874 = vst [vmem:[#allocation6 + $0x118] sm:$0xff] %v1618
    %1875 = vst [vmem:[#allocation6 + $0x120] sm:$0xff] %v1619
    %1876 = vst [vmem:[#allocation6 + $0x128] sm:$0xff] %v1620
    %1877 = vst [vmem:[#allocation6 + $0x130] sm:$0xff] %v1621
    %1878 = vst [vmem:[#allocation6 + $0x138] sm:$0xff] %v1622
    %1879 = vst [vmem:[#allocation6 + $0x140] sm:$0xff] %v1623
    %1880 = vst [vmem:[#allocation6 + $0x148] sm:$0xff] %v1624
    %1881 = vst [vmem:[#allocation6 + $0x150] sm:$0xff] %v1625
    %1882 = vst [vmem:[#allocation6 + $0x158] sm:$0xff] %v1626
    %1883 = vst [vmem:[#allocation6 + $0x160] sm:$0xff] %v1627
    %1884 = vst [vmem:[#allocation6 + $0x168] sm:$0xff] %v1628
    %1885 = vst [vmem:[#allocation6 + $0x170] sm:$0xff] %v1629
    %1886 = vst [vmem:[#allocation6 + $0x178] sm:$0xff] %v1630
    %1887 = vst [vmem:[#allocation6 + $0x180] sm:$0xff] %v1631
    %1888 = vst [vmem:[#allocation6 + $0x188] sm:$0xff] %v1632
    %1889 = vst [vmem:[#allocation6 + $0x190] sm:$0xff] %v1633
    %1890 = vst [vmem:[#allocation6 + $0x198] sm:$0xff] %v1634
    %1891 = vst [vmem:[#allocation6 + $0x1a0] sm:$0xff] %v1635
    %1892 = vst [vmem:[#allocation6 + $0x1a8] sm:$0xff] %v1636
    %1893 = vst [vmem:[#allocation6 + $0x1b0] sm:$0xff] %v1637
    %1894 = vst [vmem:[#allocation6 + $0x1b8] sm:$0xff] %v1638
    %1895 = vst [vmem:[#allocation6 + $0x1c0] sm:$0xff] %v1639
    %1896 = vst [vmem:[#allocation6 + $0x1c8] sm:$0xff] %v1640
    %1897 = vst [vmem:[#allocation6 + $0x1d0] sm:$0xff] %v1641
    %1898 = vst [vmem:[#allocation6 + $0x1d8] sm:$0xff] %v1642
    %1899 = vst [vmem:[#allocation6 + $0x1e0] sm:$0xff] %v1643
    %1900 = vst [vmem:[#allocation6 + $0x1e8] sm:$0xff] %v1644
    %1901 = vst [vmem:[#allocation6 + $0x1f0] sm:$0xff] %v1645
    %1902 = vst [vmem:[#allocation6 + $0x1f8] sm:$0xff] %v1646
    %1903 = vst [vmem:[#allocation6 + $0x200] sm:$0xff] %v1647
    %1904 = vst [vmem:[#allocation6 + $0x208] sm:$0xff] %v1648
    %1905 = vst [vmem:[#allocation6 + $0x210] sm:$0xff] %v1649
    %1906 = vst [vmem:[#allocation6 + $0x218] sm:$0xff] %v1650
    %1907 = vst [vmem:[#allocation6 + $0x220] sm:$0xff] %v1651
    %1908 = vst [vmem:[#allocation6 + $0x228] sm:$0xff] %v1652
    %1909 = vst [vmem:[#allocation6 + $0x230] sm:$0xff] %v1653
    %1910 = vst [vmem:[#allocation6 + $0x238] sm:$0xff] %v1654
    %1911 = vst [vmem:[#allocation6 + $0x240] sm:$0xff] %v1655
    %1912 = vst [vmem:[#allocation6 + $0x248] sm:$0xff] %v1656
    %1913 = vst [vmem:[#allocation6 + $0x250] sm:$0xff] %v1657
    %1914 = vst [vmem:[#allocation6 + $0x258] sm:$0xff] %v1658
    %1915 = vst [vmem:[#allocation6 + $0x260] sm:$0xff] %v1659
    %1916 = vst [vmem:[#allocation6 + $0x268] sm:$0xff] %v1660
    %1917 = vst [vmem:[#allocation6 + $0x270] sm:$0xff] %v1661
    %1918 = vst [vmem:[#allocation6 + $0x278] sm:$0xff] %v1662
    %1919 = vst [vmem:[#allocation6 + $0x280] sm:$0xff] %v1663
    %1920 = vst [vmem:[#allocation6 + $0x288] sm:$0xff] %v1664
    %1921 = vst [vmem:[#allocation6 + $0x290] sm:$0xff] %v1665
    %1922 = vst [vmem:[#allocation6 + $0x298] sm:$0xff] %v1666
    %1923 = vst [vmem:[#allocation6 + $0x2a0] sm:$0xff] %v1667
    %1924 = vst [vmem:[#allocation6 + $0x2a8] sm:$0xff] %v1668
    %1925 = vst [vmem:[#allocation6 + $0x2b0] sm:$0xff] %v1669
    %1926 = vst [vmem:[#allocation6 + $0x2b8] sm:$0xff] %v1670
    %1927 = vst [vmem:[#allocation6 + $0x2c0] sm:$0xff] %v1671
    %1928 = vst [vmem:[#allocation6 + $0x2c8] sm:$0xff] %v1672
    %1929 = vst [vmem:[#allocation6 + $0x2d0] sm:$0xff] %v1673
    %1930 = vst [vmem:[#allocation6 + $0x2d8] sm:$0xff] %v1674
    %1931 = vst [vmem:[#allocation6 + $0x2e0] sm:$0xff] %v1675
    %1932 = vst [vmem:[#allocation6 + $0x2e8] sm:$0xff] %v1676
    %1933 = vst [vmem:[#allocation6 + $0x2f0] sm:$0xff] %v1677
    %1934 = vst [vmem:[#allocation6 + $0x2f8] sm:$0xff] %v1678
    %1935 = vst [vmem:[#allocation6 + $0x300] sm:$0xff] %v1679
    %1936 = vst [vmem:[#allocation6 + $0x308] sm:$0xff] %v1680
    %1937 = vst [vmem:[#allocation6 + $0x310] sm:$0xff] %v1681
    %1938 = vst [vmem:[#allocation6 + $0x318] sm:$0xff] %v1682
    %1939 = vst [vmem:[#allocation6 + $0x320] sm:$0xff] %v1683
    %1940 = vst [vmem:[#allocation6 + $0x328] sm:$0xff] %v1684
    %1941 = vst [vmem:[#allocation6 + $0x330] sm:$0xff] %v1685
    %1942 = vst [vmem:[#allocation6 + $0x338] sm:$0xff] %v1686
    %1943 = vst [vmem:[#allocation6 + $0x340] sm:$0xff] %v1687
    %1944 = vst [vmem:[#allocation6 + $0x348] sm:$0xff] %v1688
    %1945 = vst [vmem:[#allocation6 + $0x350] sm:$0xff] %v1689
    %1946 = vst [vmem:[#allocation6 + $0x358] sm:$0xff] %v1690
    %1947 = vst [vmem:[#allocation6 + $0x360] sm:$0xff] %v1691
    %1948 = vst [vmem:[#allocation6 + $0x368] sm:$0xff] %v1692
    %1949 = vst [vmem:[#allocation6 + $0x370] sm:$0xff] %v1693
    %1950 = vst [vmem:[#allocation6 + $0x378] sm:$0xff] %v1694
    %1951 = vst [vmem:[#allocation6 + $0x380] sm:$0xff] %v1695
    %1952 = vst [vmem:[#allocation6 + $0x388] sm:$0xff] %v1696
    %1953 = vst [vmem:[#allocation6 + $0x390] sm:$0xff] %v1697
    %1954 = vst [vmem:[#allocation6 + $0x398] sm:$0xff] %v1698
    %1955 = vst [vmem:[#allocation6 + $0x3a0] sm:$0xff] %v1699
    %1956 = vst [vmem:[#allocation6 + $0x3a8] sm:$0xff] %v1700
    %1957 = vst [vmem:[#allocation6 + $0x3b0] sm:$0xff] %v1701
    %1958 = vst [vmem:[#allocation6 + $0x3b8] sm:$0xff] %v1702
    %1959 = vst [vmem:[#allocation6 + $0x3c0] sm:$0xff] %v1703
    %1960 = vst [vmem:[#allocation6 + $0x3c8] sm:$0xff] %v1704
    %1961 = vst [vmem:[#allocation6 + $0x3d0] sm:$0xff] %v1705
    %1962 = vst [vmem:[#allocation6 + $0x3d8] sm:$0xff] %v1706
    %1963 = vst [vmem:[#allocation6 + $0x3e0] sm:$0xff] %v1707
    %1964 = vst [vmem:[#allocation6 + $0x3e8] sm:$0xff] %v1708
    %1965 = vst [vmem:[#allocation6 + $0x3f0] sm:$0xff] %v1709
    %1966 = vst [vmem:[#allocation6 + $0x3f8] sm:$0xff] %v1710
    %v1967 = vld [vmem:[#allocation2] sm:$0xff]
    %v1968 = vld [vmem:[#allocation2 + $0x8] sm:$0xff]
    %v1969 = vld [vmem:[#allocation2 + $0x10] sm:$0xff]
    %v1970 = vld [vmem:[#allocation2 + $0x18] sm:$0xff]
    %v1971 = vld [vmem:[#allocation2 + $0x20] sm:$0xff]
    %v1972 = vld [vmem:[#allocation2 + $0x28] sm:$0xff]
    %v1973 = vld [vmem:[#allocation2 + $0x30] sm:$0xff]
    %v1974 = vld [vmem:[#allocation2 + $0x38] sm:$0xff]
    %v1975 = vld [vmem:[#allocation2 + $0x40] sm:$0xff]
    %v1976 = vld [vmem:[#allocation2 + $0x48] sm:$0xff]
    %v1977 = vld [vmem:[#allocation2 + $0x50] sm:$0xff]
    %v1978 = vld [vmem:[#allocation2 + $0x58] sm:$0xff]
    %v1979 = vld [vmem:[#allocation2 + $0x60] sm:$0xff]
    %v1980 = vld [vmem:[#allocation2 + $0x68] sm:$0xff]
    %v1981 = vld [vmem:[#allocation2 + $0x70] sm:$0xff]
    %v1982 = vld [vmem:[#allocation2 + $0x78] sm:$0xff]
    %v1983 = vld [vmem:[#allocation2 + $0x80] sm:$0xff]
    %v1984 = vld [vmem:[#allocation2 + $0x88] sm:$0xff]
    %v1985 = vld [vmem:[#allocation2 + $0x90] sm:$0xff]
    %v1986 = vld [vmem:[#allocation2 + $0x98] sm:$0xff]
    %v1987 = vld [vmem:[#allocation2 + $0xa0] sm:$0xff]
    %v1988 = vld [vmem:[#allocation2 + $0xa8] sm:$0xff]
    %v1989 = vld [vmem:[#allocation2 + $0xb0] sm:$0xff]
    %v1990 = vld [vmem:[#allocation2 + $0xb8] sm:$0xff]
    %v1991 = vld [vmem:[#allocation2 + $0xc0] sm:$0xff]
    %v1992 = vld [vmem:[#allocation2 + $0xc8] sm:$0xff]
    %v1993 = vld [vmem:[#allocation2 + $0xd0] sm:$0xff]
    %v1994 = vld [vmem:[#allocation2 + $0xd8] sm:$0xff]
    %v1995 = vld [vmem:[#allocation2 + $0xe0] sm:$0xff]
    %v1996 = vld [vmem:[#allocation2 + $0xe8] sm:$0xff]
    %v1997 = vld [vmem:[#allocation2 + $0xf0] sm:$0xff]
    %v1998 = vld [vmem:[#allocation2 + $0xf8] sm:$0xff]
    %v1999 = vld [vmem:[#allocation2 + $0x100] sm:$0xff]
    %v2000 = vld [vmem:[#allocation2 + $0x108] sm:$0xff]
    %v2001 = vld [vmem:[#allocation2 + $0x110] sm:$0xff]
    %v2002 = vld [vmem:[#allocation2 + $0x118] sm:$0xff]
    %v2003 = vld [vmem:[#allocation2 + $0x120] sm:$0xff]
    %v2004 = vld [vmem:[#allocation2 + $0x128] sm:$0xff]
    %v2005 = vld [vmem:[#allocation2 + $0x130] sm:$0xff]
    %v2006 = vld [vmem:[#allocation2 + $0x138] sm:$0xff]
    %v2007 = vld [vmem:[#allocation2 + $0x140] sm:$0xff]
    %v2008 = vld [vmem:[#allocation2 + $0x148] sm:$0xff]
    %v2009 = vld [vmem:[#allocation2 + $0x150] sm:$0xff]
    %v2010 = vld [vmem:[#allocation2 + $0x158] sm:$0xff]
    %v2011 = vld [vmem:[#allocation2 + $0x160] sm:$0xff]
    %v2012 = vld [vmem:[#allocation2 + $0x168] sm:$0xff]
    %v2013 = vld [vmem:[#allocation2 + $0x170] sm:$0xff]
    %v2014 = vld [vmem:[#allocation2 + $0x178] sm:$0xff]
    %v2015 = vld [vmem:[#allocation2 + $0x180] sm:$0xff]
    %v2016 = vld [vmem:[#allocation2 + $0x188] sm:$0xff]
    %v2017 = vld [vmem:[#allocation2 + $0x190] sm:$0xff]
    %v2018 = vld [vmem:[#allocation2 + $0x198] sm:$0xff]
    %v2019 = vld [vmem:[#allocation2 + $0x1a0] sm:$0xff]
    %v2020 = vld [vmem:[#allocation2 + $0x1a8] sm:$0xff]
    %v2021 = vld [vmem:[#allocation2 + $0x1b0] sm:$0xff]
    %v2022 = vld [vmem:[#allocation2 + $0x1b8] sm:$0xff]
    %v2023 = vld [vmem:[#allocation2 + $0x1c0] sm:$0xff]
    %v2024 = vld [vmem:[#allocation2 + $0x1c8] sm:$0xff]
    %v2025 = vld [vmem:[#allocation2 + $0x1d0] sm:$0xff]
    %v2026 = vld [vmem:[#allocation2 + $0x1d8] sm:$0xff]
    %v2027 = vld [vmem:[#allocation2 + $0x1e0] sm:$0xff]
    %v2028 = vld [vmem:[#allocation2 + $0x1e8] sm:$0xff]
    %v2029 = vld [vmem:[#allocation2 + $0x1f0] sm:$0xff]
    %v2030 = vld [vmem:[#allocation2 + $0x1f8] sm:$0xff]
    %v2031 = vadd.f32 %v1967, %v815
    %v2032 = vadd.f32 %v1968, %v819
    %v2033 = vadd.f32 %v1969, %v823
    %v2034 = vadd.f32 %v1970, %v827
    %v2035 = vadd.f32 %v1971, %v831
    %v2036 = vadd.f32 %v1972, %v835
    %v2037 = vadd.f32 %v1973, %v839
    %v2038 = vadd.f32 %v1974, %v843
    %v2039 = vadd.f32 %v1975, %v847
    %v2040 = vadd.f32 %v1976, %v851
    %v2041 = vadd.f32 %v1977, %v855
    %v2042 = vadd.f32 %v1978, %v859
    %v2043 = vadd.f32 %v1979, %v863
    %v2044 = vadd.f32 %v1980, %v867
    %v2045 = vadd.f32 %v1981, %v871
    %v2046 = vadd.f32 %v1982, %v875
    %v2047 = vadd.f32 %v1983, %v879
    %v2048 = vadd.f32 %v1984, %v883
    %v2049 = vadd.f32 %v1985, %v887
    %v2050 = vadd.f32 %v1986, %v891
    %v2051 = vadd.f32 %v1987, %v895
    %v2052 = vadd.f32 %v1988, %v899
    %v2053 = vadd.f32 %v1989, %v903
    %v2054 = vadd.f32 %v1990, %v907
    %v2055 = vadd.f32 %v1991, %v911
    %v2056 = vadd.f32 %v1992, %v915
    %v2057 = vadd.f32 %v1993, %v919
    %v2058 = vadd.f32 %v1994, %v923
    %v2059 = vadd.f32 %v1995, %v927
    %v2060 = vadd.f32 %v1996, %v931
    %v2061 = vadd.f32 %v1997, %v935
    %v2062 = vadd.f32 %v1998, %v939
    %v2063 = vadd.f32 %v1999, %v943
    %v2064 = vadd.f32 %v2000, %v947
    %v2065 = vadd.f32 %v2001, %v951
    %v2066 = vadd.f32 %v2002, %v955
    %v2067 = vadd.f32 %v2003, %v959
    %v2068 = vadd.f32 %v2004, %v963
    %v2069 = vadd.f32 %v2005, %v967
    %v2070 = vadd.f32 %v2006, %v971
    %v2071 = vadd.f32 %v2007, %v975
    %v2072 = vadd.f32 %v2008, %v979
    %v2073 = vadd.f32 %v2009, %v983
    %v2074 = vadd.f32 %v2010, %v987
    %v2075 = vadd.f32 %v2011, %v991
    %v2076 = vadd.f32 %v2012, %v995
    %v2077 = vadd.f32 %v2013, %v999
    %v2078 = vadd.f32 %v2014, %v1003
    %v2079 = vadd.f32 %v2015, %v1007
    %v2080 = vadd.f32 %v2016, %v1011
    %v2081 = vadd.f32 %v2017, %v1015
    %v2082 = vadd.f32 %v2018, %v1019
    %v2083 = vadd.f32 %v2019, %v1023
    %v2084 = vadd.f32 %v2020, %v1027
    %v2085 = vadd.f32 %v2021, %v1031
    %v2086 = vadd.f32 %v2022, %v1035
    %v2087 = vadd.f32 %v2023, %v1039
    %v2088 = vadd.f32 %v2024, %v1043
    %v2089 = vadd.f32 %v2025, %v1047
    %v2090 = vadd.f32 %v2026, %v1051
    %v2091 = vadd.f32 %v2027, %v1055
    %v2092 = vadd.f32 %v2028, %v1059
    %v2093 = vadd.f32 %v2029, %v1063
    %v2094 = vadd.f32 %v2030, %v1067
    %2095 = vst [vmem:[#allocation2] sm:$0xff] %v2031
    %2096 = vst [vmem:[#allocation2 + $0x8] sm:$0xff] %v2032
    %2097 = vst [vmem:[#allocation2 + $0x10] sm:$0xff] %v2033
    %2098 = vst [vmem:[#allocation2 + $0x18] sm:$0xff] %v2034
    %2099 = vst [vmem:[#allocation2 + $0x20] sm:$0xff] %v2035
    %2100 = vst [vmem:[#allocation2 + $0x28] sm:$0xff] %v2036
    %2101 = vst [vmem:[#allocation2 + $0x30] sm:$0xff] %v2037
    %2102 = vst [vmem:[#allocation2 + $0x38] sm:$0xff] %v2038
    %2103 = vst [vmem:[#allocation2 + $0x40] sm:$0xff] %v2039
    %2104 = vst [vmem:[#allocation2 + $0x48] sm:$0xff] %v2040
    %2105 = vst [vmem:[#allocation2 + $0x50] sm:$0xff] %v2041
    %2106 = vst [vmem:[#allocation2 + $0x58] sm:$0xff] %v2042
    %2107 = vst [vmem:[#allocation2 + $0x60] sm:$0xff] %v2043
    %2108 = vst [vmem:[#allocation2 + $0x68] sm:$0xff] %v2044
    %2109 = vst [vmem:[#allocation2 + $0x70] sm:$0xff] %v2045
    %2110 = vst [vmem:[#allocation2 + $0x78] sm:$0xff] %v2046
    %2111 = vst [vmem:[#allocation2 + $0x80] sm:$0xff] %v2047
    %2112 = vst [vmem:[#allocation2 + $0x88] sm:$0xff] %v2048
    %2113 = vst [vmem:[#allocation2 + $0x90] sm:$0xff] %v2049
    %2114 = vst [vmem:[#allocation2 + $0x98] sm:$0xff] %v2050
    %2115 = vst [vmem:[#allocation2 + $0xa0] sm:$0xff] %v2051
    %2116 = vst [vmem:[#allocation2 + $0xa8] sm:$0xff] %v2052
    %2117 = vst [vmem:[#allocation2 + $0xb0] sm:$0xff] %v2053
    %2118 = vst [vmem:[#allocation2 + $0xb8] sm:$0xff] %v2054
    %2119 = vst [vmem:[#allocation2 + $0xc0] sm:$0xff] %v2055
    %2120 = vst [vmem:[#allocation2 + $0xc8] sm:$0xff] %v2056
    %2121 = vst [vmem:[#allocation2 + $0xd0] sm:$0xff] %v2057
    %2122 = vst [vmem:[#allocation2 + $0xd8] sm:$0xff] %v2058
    %2123 = vst [vmem:[#allocation2 + $0xe0] sm:$0xff] %v2059
    %2124 = vst [vmem:[#allocation2 + $0xe8] sm:$0xff] %v2060
    %2125 = vst [vmem:[#allocation2 + $0xf0] sm:$0xff] %v2061
    %2126 = vst [vmem:[#allocation2 + $0xf8] sm:$0xff] %v2062
    %2127 = vst [vmem:[#allocation2 + $0x100] sm:$0xff] %v2063
    %2128 = vst [vmem:[#allocation2 + $0x108] sm:$0xff] %v2064
    %2129 = vst [vmem:[#allocation2 + $0x110] sm:$0xff] %v2065
    %2130 = vst [vmem:[#allocation2 + $0x118] sm:$0xff] %v2066
    %2131 = vst [vmem:[#allocation2 + $0x120] sm:$0xff] %v2067
    %2132 = vst [vmem:[#allocation2 + $0x128] sm:$0xff] %v2068
    %2133 = vst [vmem:[#allocation2 + $0x130] sm:$0xff] %v2069
    %2134 = vst [vmem:[#allocation2 + $0x138] sm:$0xff] %v2070
    %2135 = vst [vmem:[#allocation2 + $0x140] sm:$0xff] %v2071
    %2136 = vst [vmem:[#allocation2 + $0x148] sm:$0xff] %v2072
    %2137 = vst [vmem:[#allocation2 + $0x150] sm:$0xff] %v2073
    %2138 = vst [vmem:[#allocation2 + $0x158] sm:$0xff] %v2074
    %2139 = vst [vmem:[#allocation2 + $0x160] sm:$0xff] %v2075
    %2140 = vst [vmem:[#allocation2 + $0x168] sm:$0xff] %v2076
    %2141 = vst [vmem:[#allocation2 + $0x170] sm:$0xff] %v2077
    %2142 = vst [vmem:[#allocation2 + $0x178] sm:$0xff] %v2078
    %2143 = vst [vmem:[#allocation2 + $0x180] sm:$0xff] %v2079
    %2144 = vst [vmem:[#allocation2 + $0x188] sm:$0xff] %v2080
    %2145 = vst [vmem:[#allocation2 + $0x190] sm:$0xff] %v2081
    %2146 = vst [vmem:[#allocation2 + $0x198] sm:$0xff] %v2082
    %2147 = vst [vmem:[#allocation2 + $0x1a0] sm:$0xff] %v2083
    %2148 = vst [vmem:[#allocation2 + $0x1a8] sm:$0xff] %v2084
    %2149 = vst [vmem:[#allocation2 + $0x1b0] sm:$0xff] %v2085
    %2150 = vst [vmem:[#allocation2 + $0x1b8] sm:$0xff] %v2086
    %2151 = vst [vmem:[#allocation2 + $0x1c0] sm:$0xff] %v2087
    %2152 = vst [vmem:[#allocation2 + $0x1c8] sm:$0xff] %v2088
    %2153 = vst [vmem:[#allocation2 + $0x1d0] sm:$0xff] %v2089
    %2154 = vst [vmem:[#allocation2 + $0x1d8] sm:$0xff] %v2090
    %2155 = vst [vmem:[#allocation2 + $0x1e0] sm:$0xff] %v2091
    %2156 = vst [vmem:[#allocation2 + $0x1e8] sm:$0xff] %v2092
    %2157 = vst [vmem:[#allocation2 + $0x1f0] sm:$0xff] %v2093
    %2158 = vst [vmem:[#allocation2 + $0x1f8] sm:$0xff] %v2094
    %v2159 = vld [vmem:[#allocation2] sm:$0xff]
    %v2160 = vld [vmem:[#allocation2 + $0x8] sm:$0xff]
    %v2161 = vld [vmem:[#allocation2 + $0x10] sm:$0xff]
    %v2162 = vld [vmem:[#allocation2 + $0x18] sm:$0xff]
    %v2163 = vld [vmem:[#allocation2 + $0x20] sm:$0xff]
    %v2164 = vld [vmem:[#allocation2 + $0x28] sm:$0xff]
    %v2165 = vld [vmem:[#allocation2 + $0x30] sm:$0xff]
    %v2166 = vld [vmem:[#allocation2 + $0x38] sm:$0xff]
    %v2167 = vld [vmem:[#allocation2 + $0x40] sm:$0xff]
    %v2168 = vld [vmem:[#allocation2 + $0x48] sm:$0xff]
    %v2169 = vld [vmem:[#allocation2 + $0x50] sm:$0xff]
    %v2170 = vld [vmem:[#allocation2 + $0x58] sm:$0xff]
    %v2171 = vld [vmem:[#allocation2 + $0x60] sm:$0xff]
    %v2172 = vld [vmem:[#allocation2 + $0x68] sm:$0xff]
    %v2173 = vld [vmem:[#allocation2 + $0x70] sm:$0xff]
    %v2174 = vld [vmem:[#allocation2 + $0x78] sm:$0xff]
    %v2175 = vld [vmem:[#allocation2 + $0x80] sm:$0xff]
    %v2176 = vld [vmem:[#allocation2 + $0x88] sm:$0xff]
    %v2177 = vld [vmem:[#allocation2 + $0x90] sm:$0xff]
    %v2178 = vld [vmem:[#allocation2 + $0x98] sm:$0xff]
    %v2179 = vld [vmem:[#allocation2 + $0xa0] sm:$0xff]
    %v2180 = vld [vmem:[#allocation2 + $0xa8] sm:$0xff]
    %v2181 = vld [vmem:[#allocation2 + $0xb0] sm:$0xff]
    %v2182 = vld [vmem:[#allocation2 + $0xb8] sm:$0xff]
    %v2183 = vld [vmem:[#allocation2 + $0xc0] sm:$0xff]
    %v2184 = vld [vmem:[#allocation2 + $0xc8] sm:$0xff]
    %v2185 = vld [vmem:[#allocation2 + $0xd0] sm:$0xff]
    %v2186 = vld [vmem:[#allocation2 + $0xd8] sm:$0xff]
    %v2187 = vld [vmem:[#allocation2 + $0xe0] sm:$0xff]
    %v2188 = vld [vmem:[#allocation2 + $0xe8] sm:$0xff]
    %v2189 = vld [vmem:[#allocation2 + $0xf0] sm:$0xff]
    %v2190 = vld [vmem:[#allocation2 + $0xf8] sm:$0xff]
    %v2191 = vld [vmem:[#allocation2 + $0x100] sm:$0xff]
    %v2192 = vld [vmem:[#allocation2 + $0x108] sm:$0xff]
    %v2193 = vld [vmem:[#allocation2 + $0x110] sm:$0xff]
    %v2194 = vld [vmem:[#allocation2 + $0x118] sm:$0xff]
    %v2195 = vld [vmem:[#allocation2 + $0x120] sm:$0xff]
    %v2196 = vld [vmem:[#allocation2 + $0x128] sm:$0xff]
    %v2197 = vld [vmem:[#allocation2 + $0x130] sm:$0xff]
    %v2198 = vld [vmem:[#allocation2 + $0x138] sm:$0xff]
    %v2199 = vld [vmem:[#allocation2 + $0x140] sm:$0xff]
    %v2200 = vld [vmem:[#allocation2 + $0x148] sm:$0xff]
    %v2201 = vld [vmem:[#allocation2 + $0x150] sm:$0xff]
    %v2202 = vld [vmem:[#allocation2 + $0x158] sm:$0xff]
    %v2203 = vld [vmem:[#allocation2 + $0x160] sm:$0xff]
    %v2204 = vld [vmem:[#allocation2 + $0x168] sm:$0xff]
    %v2205 = vld [vmem:[#allocation2 + $0x170] sm:$0xff]
    %v2206 = vld [vmem:[#allocation2 + $0x178] sm:$0xff]
    %v2207 = vld [vmem:[#allocation2 + $0x180] sm:$0xff]
    %v2208 = vld [vmem:[#allocation2 + $0x188] sm:$0xff]
    %v2209 = vld [vmem:[#allocation2 + $0x190] sm:$0xff]
    %v2210 = vld [vmem:[#allocation2 + $0x198] sm:$0xff]
    %v2211 = vld [vmem:[#allocation2 + $0x1a0] sm:$0xff]
    %v2212 = vld [vmem:[#allocation2 + $0x1a8] sm:$0xff]
    %v2213 = vld [vmem:[#allocation2 + $0x1b0] sm:$0xff]
    %v2214 = vld [vmem:[#allocation2 + $0x1b8] sm:$0xff]
    %v2215 = vld [vmem:[#allocation2 + $0x1c0] sm:$0xff]
    %v2216 = vld [vmem:[#allocation2 + $0x1c8] sm:$0xff]
    %v2217 = vld [vmem:[#allocation2 + $0x1d0] sm:$0xff]
    %v2218 = vld [vmem:[#allocation2 + $0x1d8] sm:$0xff]
    %v2219 = vld [vmem:[#allocation2 + $0x1e0] sm:$0xff]
    %v2220 = vld [vmem:[#allocation2 + $0x1e8] sm:$0xff]
    %v2221 = vld [vmem:[#allocation2 + $0x1f0] sm:$0xff]
    %v2222 = vld [vmem:[#allocation2 + $0x1f8] sm:$0xff]
    %v2223 = vadd.f32 %v2159, %v816
    %v2224 = vadd.f32 %v2160, %v820
    %v2225 = vadd.f32 %v2161, %v824
    %v2226 = vadd.f32 %v2162, %v828
    %v2227 = vadd.f32 %v2163, %v832
    %v2228 = vadd.f32 %v2164, %v836
    %v2229 = vadd.f32 %v2165, %v840
    %v2230 = vadd.f32 %v2166, %v844
    %v2231 = vadd.f32 %v2167, %v848
    %v2232 = vadd.f32 %v2168, %v852
    %v2233 = vadd.f32 %v2169, %v856
    %v2234 = vadd.f32 %v2170, %v860
    %v2235 = vadd.f32 %v2171, %v864
    %v2236 = vadd.f32 %v2172, %v868
    %v2237 = vadd.f32 %v2173, %v872
    %v2238 = vadd.f32 %v2174, %v876
    %v2239 = vadd.f32 %v2175, %v880
    %v2240 = vadd.f32 %v2176, %v884
    %v2241 = vadd.f32 %v2177, %v888
    %v2242 = vadd.f32 %v2178, %v892
    %v2243 = vadd.f32 %v2179, %v896
    %v2244 = vadd.f32 %v2180, %v900
    %v2245 = vadd.f32 %v2181, %v904
    %v2246 = vadd.f32 %v2182, %v908
    %v2247 = vadd.f32 %v2183, %v912
    %v2248 = vadd.f32 %v2184, %v916
    %v2249 = vadd.f32 %v2185, %v920
    %v2250 = vadd.f32 %v2186, %v924
    %v2251 = vadd.f32 %v2187, %v928
    %v2252 = vadd.f32 %v2188, %v932
    %v2253 = vadd.f32 %v2189, %v936
    %v2254 = vadd.f32 %v2190, %v940
    %v2255 = vadd.f32 %v2191, %v944
    %v2256 = vadd.f32 %v2192, %v948
    %v2257 = vadd.f32 %v2193, %v952
    %v2258 = vadd.f32 %v2194, %v956
    %v2259 = vadd.f32 %v2195, %v960
    %v2260 = vadd.f32 %v2196, %v964
    %v2261 = vadd.f32 %v2197, %v968
    %v2262 = vadd.f32 %v2198, %v972
    %v2263 = vadd.f32 %v2199, %v976
    %v2264 = vadd.f32 %v2200, %v980
    %v2265 = vadd.f32 %v2201, %v984
    %v2266 = vadd.f32 %v2202, %v988
    %v2267 = vadd.f32 %v2203, %v992
    %v2268 = vadd.f32 %v2204, %v996
    %v2269 = vadd.f32 %v2205, %v1000
    %v2270 = vadd.f32 %v2206, %v1004
    %v2271 = vadd.f32 %v2207, %v1008
    %v2272 = vadd.f32 %v2208, %v1012
    %v2273 = vadd.f32 %v2209, %v1016
    %v2274 = vadd.f32 %v2210, %v1020
    %v2275 = vadd.f32 %v2211, %v1024
    %v2276 = vadd.f32 %v2212, %v1028
    %v2277 = vadd.f32 %v2213, %v1032
    %v2278 = vadd.f32 %v2214, %v1036
    %v2279 = vadd.f32 %v2215, %v1040
    %v2280 = vadd.f32 %v2216, %v1044
    %v2281 = vadd.f32 %v2217, %v1048
    %v2282 = vadd.f32 %v2218, %v1052
    %v2283 = vadd.f32 %v2219, %v1056
    %v2284 = vadd.f32 %v2220, %v1060
    %v2285 = vadd.f32 %v2221, %v1064
    %v2286 = vadd.f32 %v2222, %v1068
    %2287 = vst [vmem:[#allocation2] sm:$0xff] %v2223
    %2288 = vst [vmem:[#allocation2 + $0x8] sm:$0xff] %v2224
    %2289 = vst [vmem:[#allocation2 + $0x10] sm:$0xff] %v2225
    %2290 = vst [vmem:[#allocation2 + $0x18] sm:$0xff] %v2226
    %2291 = vst [vmem:[#allocation2 + $0x20] sm:$0xff] %v2227
    %2292 = vst [vmem:[#allocation2 + $0x28] sm:$0xff] %v2228
    %2293 = vst [vmem:[#allocation2 + $0x30] sm:$0xff] %v2229
    %2294 = vst [vmem:[#allocation2 + $0x38] sm:$0xff] %v2230
    %2295 = vst [vmem:[#allocation2 + $0x40] sm:$0xff] %v2231
    %2296 = vst [vmem:[#allocation2 + $0x48] sm:$0xff] %v2232
    %2297 = vst [vmem:[#allocation2 + $0x50] sm:$0xff] %v2233
    %2298 = vst [vmem:[#allocation2 + $0x58] sm:$0xff] %v2234
    %2299 = vst [vmem:[#allocation2 + $0x60] sm:$0xff] %v2235
    %2300 = vst [vmem:[#allocation2 + $0x68] sm:$0xff] %v2236
    %2301 = vst [vmem:[#allocation2 + $0x70] sm:$0xff] %v2237
    %2302 = vst [vmem:[#allocation2 + $0x78] sm:$0xff] %v2238
    %2303 = vst [vmem:[#allocation2 + $0x80] sm:$0xff] %v2239
    %2304 = vst [vmem:[#allocation2 + $0x88] sm:$0xff] %v2240
    %2305 = vst [vmem:[#allocation2 + $0x90] sm:$0xff] %v2241
    %2306 = vst [vmem:[#allocation2 + $0x98] sm:$0xff] %v2242
    %2307 = vst [vmem:[#allocation2 + $0xa0] sm:$0xff] %v2243
    %2308 = vst [vmem:[#allocation2 + $0xa8] sm:$0xff] %v2244
    %2309 = vst [vmem:[#allocation2 + $0xb0] sm:$0xff] %v2245
    %2310 = vst [vmem:[#allocation2 + $0xb8] sm:$0xff] %v2246
    %2311 = vst [vmem:[#allocation2 + $0xc0] sm:$0xff] %v2247
    %2312 = vst [vmem:[#allocation2 + $0xc8] sm:$0xff] %v2248
    %2313 = vst [vmem:[#allocation2 + $0xd0] sm:$0xff] %v2249
    %2314 = vst [vmem:[#allocation2 + $0xd8] sm:$0xff] %v2250
    %2315 = vst [vmem:[#allocation2 + $0xe0] sm:$0xff] %v2251
    %2316 = vst [vmem:[#allocation2 + $0xe8] sm:$0xff] %v2252
    %2317 = vst [vmem:[#allocation2 + $0xf0] sm:$0xff] %v2253
    %2318 = vst [vmem:[#allocation2 + $0xf8] sm:$0xff] %v2254
    %2319 = vst [vmem:[#allocation2 + $0x100] sm:$0xff] %v2255
    %2320 = vst [vmem:[#allocation2 + $0x108] sm:$0xff] %v2256
    %2321 = vst [vmem:[#allocation2 + $0x110] sm:$0xff] %v2257
    %2322 = vst [vmem:[#allocation2 + $0x118] sm:$0xff] %v2258
    %2323 = vst [vmem:[#allocation2 + $0x120] sm:$0xff] %v2259
    %2324 = vst [vmem:[#allocation2 + $0x128] sm:$0xff] %v2260
    %2325 = vst [vmem:[#allocation2 + $0x130] sm:$0xff] %v2261
    %2326 = vst [vmem:[#allocation2 + $0x138] sm:$0xff] %v2262
    %2327 = vst [vmem:[#allocation2 + $0x140] sm:$0xff] %v2263
    %2328 = vst [vmem:[#allocation2 + $0x148] sm:$0xff] %v2264
    %2329 = vst [vmem:[#allocation2 + $0x150] sm:$0xff] %v2265
    %2330 = vst [vmem:[#allocation2 + $0x158] sm:$0xff] %v2266
    %2331 = vst [vmem:[#allocation2 + $0x160] sm:$0xff] %v2267
    %2332 = vst [vmem:[#allocation2 + $0x168] sm:$0xff] %v2268
    %2333 = vst [vmem:[#allocation2 + $0x170] sm:$0xff] %v2269
    %2334 = vst [vmem:[#allocation2 + $0x178] sm:$0xff] %v2270
    %2335 = vst [vmem:[#allocation2 + $0x180] sm:$0xff] %v2271
    %2336 = vst [vmem:[#allocation2 + $0x188] sm:$0xff] %v2272
    %2337 = vst [vmem:[#allocation2 + $0x190] sm:$0xff] %v2273
    %2338 = vst [vmem:[#allocation2 + $0x198] sm:$0xff] %v2274
    %2339 = vst [vmem:[#allocation2 + $0x1a0] sm:$0xff] %v2275
    %2340 = vst [vmem:[#allocation2 + $0x1a8] sm:$0xff] %v2276
    %2341 = vst [vmem:[#allocation2 + $0x1b0] sm:$0xff] %v2277
    %2342 = vst [vmem:[#allocation2 + $0x1b8] sm:$0xff] %v2278
    %2343 = vst [vmem:[#allocation2 + $0x1c0] sm:$0xff] %v2279
    %2344 = vst [vmem:[#allocation2 + $0x1c8] sm:$0xff] %v2280
    %2345 = vst [vmem:[#allocation2 + $0x1d0] sm:$0xff] %v2281
    %2346 = vst [vmem:[#allocation2 + $0x1d8] sm:$0xff] %v2282
    %2347 = vst [vmem:[#allocation2 + $0x1e0] sm:$0xff] %v2283
    %2348 = vst [vmem:[#allocation2 + $0x1e8] sm:$0xff] %v2284
    %2349 = vst [vmem:[#allocation2 + $0x1f0] sm:$0xff] %v2285
    %2350 = vst [vmem:[#allocation2 + $0x1f8] sm:$0xff] %v2286
    %v2351 = vld [vmem:[#allocation2] sm:$0xff]
    %v2352 = vld [vmem:[#allocation2 + $0x8] sm:$0xff]
    %v2353 = vld [vmem:[#allocation2 + $0x10] sm:$0xff]
    %v2354 = vld [vmem:[#allocation2 + $0x18] sm:$0xff]
    %v2355 = vld [vmem:[#allocation2 + $0x20] sm:$0xff]
    %v2356 = vld [vmem:[#allocation2 + $0x28] sm:$0xff]
    %v2357 = vld [vmem:[#allocation2 + $0x30] sm:$0xff]
    %v2358 = vld [vmem:[#allocation2 + $0x38] sm:$0xff]
    %v2359 = vld [vmem:[#allocation2 + $0x40] sm:$0xff]
    %v2360 = vld [vmem:[#allocation2 + $0x48] sm:$0xff]
    %v2361 = vld [vmem:[#allocation2 + $0x50] sm:$0xff]
    %v2362 = vld [vmem:[#allocation2 + $0x58] sm:$0xff]
    %v2363 = vld [vmem:[#allocation2 + $0x60] sm:$0xff]
    %v2364 = vld [vmem:[#allocation2 + $0x68] sm:$0xff]
    %v2365 = vld [vmem:[#allocation2 + $0x70] sm:$0xff]
    %v2366 = vld [vmem:[#allocation2 + $0x78] sm:$0xff]
    %v2367 = vld [vmem:[#allocation2 + $0x80] sm:$0xff]
    %v2368 = vld [vmem:[#allocation2 + $0x88] sm:$0xff]
    %v2369 = vld [vmem:[#allocation2 + $0x90] sm:$0xff]
    %v2370 = vld [vmem:[#allocation2 + $0x98] sm:$0xff]
    %v2371 = vld [vmem:[#allocation2 + $0xa0] sm:$0xff]
    %v2372 = vld [vmem:[#allocation2 + $0xa8] sm:$0xff]
    %v2373 = vld [vmem:[#allocation2 + $0xb0] sm:$0xff]
    %v2374 = vld [vmem:[#allocation2 + $0xb8] sm:$0xff]
    %v2375 = vld [vmem:[#allocation2 + $0xc0] sm:$0xff]
    %v2376 = vld [vmem:[#allocation2 + $0xc8] sm:$0xff]
    %v2377 = vld [vmem:[#allocation2 + $0xd0] sm:$0xff]
    %v2378 = vld [vmem:[#allocation2 + $0xd8] sm:$0xff]
    %v2379 = vld [vmem:[#allocation2 + $0xe0] sm:$0xff]
    %v2380 = vld [vmem:[#allocation2 + $0xe8] sm:$0xff]
    %v2381 = vld [vmem:[#allocation2 + $0xf0] sm:$0xff]
    %v2382 = vld [vmem:[#allocation2 + $0xf8] sm:$0xff]
    %v2383 = vld [vmem:[#allocation2 + $0x100] sm:$0xff]
    %v2384 = vld [vmem:[#allocation2 + $0x108] sm:$0xff]
    %v2385 = vld [vmem:[#allocation2 + $0x110] sm:$0xff]
    %v2386 = vld [vmem:[#allocation2 + $0x118] sm:$0xff]
    %v2387 = vld [vmem:[#allocation2 + $0x120] sm:$0xff]
    %v2388 = vld [vmem:[#allocation2 + $0x128] sm:$0xff]
    %v2389 = vld [vmem:[#allocation2 + $0x130] sm:$0xff]
    %v2390 = vld [vmem:[#allocation2 + $0x138] sm:$0xff]
    %v2391 = vld [vmem:[#allocation2 + $0x140] sm:$0xff]
    %v2392 = vld [vmem:[#allocation2 + $0x148] sm:$0xff]
    %v2393 = vld [vmem:[#allocation2 + $0x150] sm:$0xff]
    %v2394 = vld [vmem:[#allocation2 + $0x158] sm:$0xff]
    %v2395 = vld [vmem:[#allocation2 + $0x160] sm:$0xff]
    %v2396 = vld [vmem:[#allocation2 + $0x168] sm:$0xff]
    %v2397 = vld [vmem:[#allocation2 + $0x170] sm:$0xff]
    %v2398 = vld [vmem:[#allocation2 + $0x178] sm:$0xff]
    %v2399 = vld [vmem:[#allocation2 + $0x180] sm:$0xff]
    %v2400 = vld [vmem:[#allocation2 + $0x188] sm:$0xff]
    %v2401 = vld [vmem:[#allocation2 + $0x190] sm:$0xff]
    %v2402 = vld [vmem:[#allocation2 + $0x198] sm:$0xff]
    %v2403 = vld [vmem:[#allocation2 + $0x1a0] sm:$0xff]
    %v2404 = vld [vmem:[#allocation2 + $0x1a8] sm:$0xff]
    %v2405 = vld [vmem:[#allocation2 + $0x1b0] sm:$0xff]
    %v2406 = vld [vmem:[#allocation2 + $0x1b8] sm:$0xff]
    %v2407 = vld [vmem:[#allocation2 + $0x1c0] sm:$0xff]
    %v2408 = vld [vmem:[#allocation2 + $0x1c8] sm:$0xff]
    %v2409 = vld [vmem:[#allocation2 + $0x1d0] sm:$0xff]
    %v2410 = vld [vmem:[#allocation2 + $0x1d8] sm:$0xff]
    %v2411 = vld [vmem:[#allocation2 + $0x1e0] sm:$0xff]
    %v2412 = vld [vmem:[#allocation2 + $0x1e8] sm:$0xff]
    %v2413 = vld [vmem:[#allocation2 + $0x1f0] sm:$0xff]
    %v2414 = vld [vmem:[#allocation2 + $0x1f8] sm:$0xff]
    %v2415 = vadd.f32 %v2351, %v817
    %v2416 = vadd.f32 %v2352, %v821
    %v2417 = vadd.f32 %v2353, %v825
    %v2418 = vadd.f32 %v2354, %v829
    %v2419 = vadd.f32 %v2355, %v833
    %v2420 = vadd.f32 %v2356, %v837
    %v2421 = vadd.f32 %v2357, %v841
    %v2422 = vadd.f32 %v2358, %v845
    %v2423 = vadd.f32 %v2359, %v849
    %v2424 = vadd.f32 %v2360, %v853
    %v2425 = vadd.f32 %v2361, %v857
    %v2426 = vadd.f32 %v2362, %v861
    %v2427 = vadd.f32 %v2363, %v865
    %v2428 = vadd.f32 %v2364, %v869
    %v2429 = vadd.f32 %v2365, %v873
    %v2430 = vadd.f32 %v2366, %v877
    %v2431 = vadd.f32 %v2367, %v881
    %v2432 = vadd.f32 %v2368, %v885
    %v2433 = vadd.f32 %v2369, %v889
    %v2434 = vadd.f32 %v2370, %v893
    %v2435 = vadd.f32 %v2371, %v897
    %v2436 = vadd.f32 %v2372, %v901
    %v2437 = vadd.f32 %v2373, %v905
    %v2438 = vadd.f32 %v2374, %v909
    %v2439 = vadd.f32 %v2375, %v913
    %v2440 = vadd.f32 %v2376, %v917
    %v2441 = vadd.f32 %v2377, %v921
    %v2442 = vadd.f32 %v2378, %v925
    %v2443 = vadd.f32 %v2379, %v929
    %v2444 = vadd.f32 %v2380, %v933
    %v2445 = vadd.f32 %v2381, %v937
    %v2446 = vadd.f32 %v2382, %v941
    %v2447 = vadd.f32 %v2383, %v945
    %v2448 = vadd.f32 %v2384, %v949
    %v2449 = vadd.f32 %v2385, %v953
    %v2450 = vadd.f32 %v2386, %v957
    %v2451 = vadd.f32 %v2387, %v961
    %v2452 = vadd.f32 %v2388, %v965
    %v2453 = vadd.f32 %v2389, %v969
    %v2454 = vadd.f32 %v2390, %v973
    %v2455 = vadd.f32 %v2391, %v977
    %v2456 = vadd.f32 %v2392, %v981
    %v2457 = vadd.f32 %v2393, %v985
    %v2458 = vadd.f32 %v2394, %v989
    %v2459 = vadd.f32 %v2395, %v993
    %v2460 = vadd.f32 %v2396, %v997
    %v2461 = vadd.f32 %v2397, %v1001
    %v2462 = vadd.f32 %v2398, %v1005
    %v2463 = vadd.f32 %v2399, %v1009
    %v2464 = vadd.f32 %v2400, %v1013
    %v2465 = vadd.f32 %v2401, %v1017
    %v2466 = vadd.f32 %v2402, %v1021
    %v2467 = vadd.f32 %v2403, %v1025
    %v2468 = vadd.f32 %v2404, %v1029
    %v2469 = vadd.f32 %v2405, %v1033
    %v2470 = vadd.f32 %v2406, %v1037
    %v2471 = vadd.f32 %v2407, %v1041
    %v2472 = vadd.f32 %v2408, %v1045
    %v2473 = vadd.f32 %v2409, %v1049
    %v2474 = vadd.f32 %v2410, %v1053
    %v2475 = vadd.f32 %v2411, %v1057
    %v2476 = vadd.f32 %v2412, %v1061
    %v2477 = vadd.f32 %v2413, %v1065
    %v2478 = vadd.f32 %v2414, %v1069
    %2479 = vst [vmem:[#allocation2] sm:$0xff] %v2415
    %2480 = vst [vmem:[#allocation2 + $0x8] sm:$0xff] %v2416
    %2481 = vst [vmem:[#allocation2 + $0x10] sm:$0xff] %v2417
    %2482 = vst [vmem:[#allocation2 + $0x18] sm:$0xff] %v2418
    %2483 = vst [vmem:[#allocation2 + $0x20] sm:$0xff] %v2419
    %2484 = vst [vmem:[#allocation2 + $0x28] sm:$0xff] %v2420
    %2485 = vst [vmem:[#allocation2 + $0x30] sm:$0xff] %v2421
    %2486 = vst [vmem:[#allocation2 + $0x38] sm:$0xff] %v2422
    %2487 = vst [vmem:[#allocation2 + $0x40] sm:$0xff] %v2423
    %2488 = vst [vmem:[#allocation2 + $0x48] sm:$0xff] %v2424
    %2489 = vst [vmem:[#allocation2 + $0x50] sm:$0xff] %v2425
    %2490 = vst [vmem:[#allocation2 + $0x58] sm:$0xff] %v2426
    %2491 = vst [vmem:[#allocation2 + $0x60] sm:$0xff] %v2427
    %2492 = vst [vmem:[#allocation2 + $0x68] sm:$0xff] %v2428
    %2493 = vst [vmem:[#allocation2 + $0x70] sm:$0xff] %v2429
    %2494 = vst [vmem:[#allocation2 + $0x78] sm:$0xff] %v2430
    %2495 = vst [vmem:[#allocation2 + $0x80] sm:$0xff] %v2431
    %2496 = vst [vmem:[#allocation2 + $0x88] sm:$0xff] %v2432
    %2497 = vst [vmem:[#allocation2 + $0x90] sm:$0xff] %v2433
    %2498 = vst [vmem:[#allocation2 + $0x98] sm:$0xff] %v2434
    %2499 = vst [vmem:[#allocation2 + $0xa0] sm:$0xff] %v2435
    %2500 = vst [vmem:[#allocation2 + $0xa8] sm:$0xff] %v2436
    %2501 = vst [vmem:[#allocation2 + $0xb0] sm:$0xff] %v2437
    %2502 = vst [vmem:[#allocation2 + $0xb8] sm:$0xff] %v2438
    %2503 = vst [vmem:[#allocation2 + $0xc0] sm:$0xff] %v2439
    %2504 = vst [vmem:[#allocation2 + $0xc8] sm:$0xff] %v2440
    %2505 = vst [vmem:[#allocation2 + $0xd0] sm:$0xff] %v2441
    %2506 = vst [vmem:[#allocation2 + $0xd8] sm:$0xff] %v2442
    %2507 = vst [vmem:[#allocation2 + $0xe0] sm:$0xff] %v2443
    %2508 = vst [vmem:[#allocation2 + $0xe8] sm:$0xff] %v2444
    %2509 = vst [vmem:[#allocation2 + $0xf0] sm:$0xff] %v2445
    %2510 = vst [vmem:[#allocation2 + $0xf8] sm:$0xff] %v2446
    %2511 = vst [vmem:[#allocation2 + $0x100] sm:$0xff] %v2447
    %2512 = vst [vmem:[#allocation2 + $0x108] sm:$0xff] %v2448
    %2513 = vst [vmem:[#allocation2 + $0x110] sm:$0xff] %v2449
    %2514 = vst [vmem:[#allocation2 + $0x118] sm:$0xff] %v2450
    %2515 = vst [vmem:[#allocation2 + $0x120] sm:$0xff] %v2451
    %2516 = vst [vmem:[#allocation2 + $0x128] sm:$0xff] %v2452
    %2517 = vst [vmem:[#allocation2 + $0x130] sm:$0xff] %v2453
    %2518 = vst [vmem:[#allocation2 + $0x138] sm:$0xff] %v2454
    %2519 = vst [vmem:[#allocation2 + $0x140] sm:$0xff] %v2455
    %2520 = vst [vmem:[#allocation2 + $0x148] sm:$0xff] %v2456
    %2521 = vst [vmem:[#allocation2 + $0x150] sm:$0xff] %v2457
    %2522 = vst [vmem:[#allocation2 + $0x158] sm:$0xff] %v2458
    %2523 = vst [vmem:[#allocation2 + $0x160] sm:$0xff] %v2459
    %2524 = vst [vmem:[#allocation2 + $0x168] sm:$0xff] %v2460
    %2525 = vst [vmem:[#allocation2 + $0x170] sm:$0xff] %v2461
    %2526 = vst [vmem:[#allocation2 + $0x178] sm:$0xff] %v2462
    %2527 = vst [vmem:[#allocation2 + $0x180] sm:$0xff] %v2463
    %2528 = vst [vmem:[#allocation2 + $0x188] sm:$0xff] %v2464
    %2529 = vst [vmem:[#allocation2 + $0x190] sm:$0xff] %v2465
    %2530 = vst [vmem:[#allocation2 + $0x198] sm:$0xff] %v2466
    %2531 = vst [vmem:[#allocation2 + $0x1a0] sm:$0xff] %v2467
    %2532 = vst [vmem:[#allocation2 + $0x1a8] sm:$0xff] %v2468
    %2533 = vst [vmem:[#allocation2 + $0x1b0] sm:$0xff] %v2469
    %2534 = vst [vmem:[#allocation2 + $0x1b8] sm:$0xff] %v2470
    %2535 = vst [vmem:[#allocation2 + $0x1c0] sm:$0xff] %v2471
    %2536 = vst [vmem:[#allocation2 + $0x1c8] sm:$0xff] %v2472
    %2537 = vst [vmem:[#allocation2 + $0x1d0] sm:$0xff] %v2473
    %2538 = vst [vmem:[#allocation2 + $0x1d8] sm:$0xff] %v2474
    %2539 = vst [vmem:[#allocation2 + $0x1e0] sm:$0xff] %v2475
    %2540 = vst [vmem:[#allocation2 + $0x1e8] sm:$0xff] %v2476
    %2541 = vst [vmem:[#allocation2 + $0x1f0] sm:$0xff] %v2477
    %2542 = vst [vmem:[#allocation2 + $0x1f8] sm:$0xff] %v2478
    %v2543 = vld [vmem:[#allocation2] sm:$0xff]
    %v2544 = vld [vmem:[#allocation2 + $0x8] sm:$0xff]
    %v2545 = vld [vmem:[#allocation2 + $0x10] sm:$0xff]
    %v2546 = vld [vmem:[#allocation2 + $0x18] sm:$0xff]
    %v2547 = vld [vmem:[#allocation2 + $0x20] sm:$0xff]
    %v2548 = vld [vmem:[#allocation2 + $0x28] sm:$0xff]
    %v2549 = vld [vmem:[#allocation2 + $0x30] sm:$0xff]
    %v2550 = vld [vmem:[#allocation2 + $0x38] sm:$0xff]
    %v2551 = vld [vmem:[#allocation2 + $0x40] sm:$0xff]
    %v2552 = vld [vmem:[#allocation2 + $0x48] sm:$0xff]
    %v2553 = vld [vmem:[#allocation2 + $0x50] sm:$0xff]
    %v2554 = vld [vmem:[#allocation2 + $0x58] sm:$0xff]
    %v2555 = vld [vmem:[#allocation2 + $0x60] sm:$0xff]
    %v2556 = vld [vmem:[#allocation2 + $0x68] sm:$0xff]
    %v2557 = vld [vmem:[#allocation2 + $0x70] sm:$0xff]
    %v2558 = vld [vmem:[#allocation2 + $0x78] sm:$0xff]
    %v2559 = vld [vmem:[#allocation2 + $0x80] sm:$0xff]
    %v2560 = vld [vmem:[#allocation2 + $0x88] sm:$0xff]
    %v2561 = vld [vmem:[#allocation2 + $0x90] sm:$0xff]
    %v2562 = vld [vmem:[#allocation2 + $0x98] sm:$0xff]
    %v2563 = vld [vmem:[#allocation2 + $0xa0] sm:$0xff]
    %v2564 = vld [vmem:[#allocation2 + $0xa8] sm:$0xff]
    %v2565 = vld [vmem:[#allocation2 + $0xb0] sm:$0xff]
    %v2566 = vld [vmem:[#allocation2 + $0xb8] sm:$0xff]
    %v2567 = vld [vmem:[#allocation2 + $0xc0] sm:$0xff]
    %v2568 = vld [vmem:[#allocation2 + $0xc8] sm:$0xff]
    %v2569 = vld [vmem:[#allocation2 + $0xd0] sm:$0xff]
    %v2570 = vld [vmem:[#allocation2 + $0xd8] sm:$0xff]
    %v2571 = vld [vmem:[#allocation2 + $0xe0] sm:$0xff]
    %v2572 = vld [vmem:[#allocation2 + $0xe8] sm:$0xff]
    %v2573 = vld [vmem:[#allocation2 + $0xf0] sm:$0xff]
    %v2574 = vld [vmem:[#allocation2 + $0xf8] sm:$0xff]
    %v2575 = vld [vmem:[#allocation2 + $0x100] sm:$0xff]
    %v2576 = vld [vmem:[#allocation2 + $0x108] sm:$0xff]
    %v2577 = vld [vmem:[#allocation2 + $0x110] sm:$0xff]
    %v2578 = vld [vmem:[#allocation2 + $0x118] sm:$0xff]
    %v2579 = vld [vmem:[#allocation2 + $0x120] sm:$0xff]
    %v2580 = vld [vmem:[#allocation2 + $0x128] sm:$0xff]
    %v2581 = vld [vmem:[#allocation2 + $0x130] sm:$0xff]
    %v2582 = vld [vmem:[#allocation2 + $0x138] sm:$0xff]
    %v2583 = vld [vmem:[#allocation2 + $0x140] sm:$0xff]
    %v2584 = vld [vmem:[#allocation2 + $0x148] sm:$0xff]
    %v2585 = vld [vmem:[#allocation2 + $0x150] sm:$0xff]
    %v2586 = vld [vmem:[#allocation2 + $0x158] sm:$0xff]
    %v2587 = vld [vmem:[#allocation2 + $0x160] sm:$0xff]
    %v2588 = vld [vmem:[#allocation2 + $0x168] sm:$0xff]
    %v2589 = vld [vmem:[#allocation2 + $0x170] sm:$0xff]
    %v2590 = vld [vmem:[#allocation2 + $0x178] sm:$0xff]
    %v2591 = vld [vmem:[#allocation2 + $0x180] sm:$0xff]
    %v2592 = vld [vmem:[#allocation2 + $0x188] sm:$0xff]
    %v2593 = vld [vmem:[#allocation2 + $0x190] sm:$0xff]
    %v2594 = vld [vmem:[#allocation2 + $0x198] sm:$0xff]
    %v2595 = vld [vmem:[#allocation2 + $0x1a0] sm:$0xff]
    %v2596 = vld [vmem:[#allocation2 + $0x1a8] sm:$0xff]
    %v2597 = vld [vmem:[#allocation2 + $0x1b0] sm:$0xff]
    %v2598 = vld [vmem:[#allocation2 + $0x1b8] sm:$0xff]
    %v2599 = vld [vmem:[#allocation2 + $0x1c0] sm:$0xff]
    %v2600 = vld [vmem:[#allocation2 + $0x1c8] sm:$0xff]
    %v2601 = vld [vmem:[#allocation2 + $0x1d0] sm:$0xff]
    %v2602 = vld [vmem:[#allocation2 + $0x1d8] sm:$0xff]
    %v2603 = vld [vmem:[#allocation2 + $0x1e0] sm:$0xff]
    %v2604 = vld [vmem:[#allocation2 + $0x1e8] sm:$0xff]
    %v2605 = vld [vmem:[#allocation2 + $0x1f0] sm:$0xff]
    %v2606 = vld [vmem:[#allocation2 + $0x1f8] sm:$0xff]
    %v2607 = vadd.f32 %v2543, %v818
    %v2608 = vadd.f32 %v2544, %v822
    %v2609 = vadd.f32 %v2545, %v826
    %v2610 = vadd.f32 %v2546, %v830
    %v2611 = vadd.f32 %v2547, %v834
    %v2612 = vadd.f32 %v2548, %v838
    %v2613 = vadd.f32 %v2549, %v842
    %v2614 = vadd.f32 %v2550, %v846
    %v2615 = vadd.f32 %v2551, %v850
    %v2616 = vadd.f32 %v2552, %v854
    %v2617 = vadd.f32 %v2553, %v858
    %v2618 = vadd.f32 %v2554, %v862
    %v2619 = vadd.f32 %v2555, %v866
    %v2620 = vadd.f32 %v2556, %v870
    %v2621 = vadd.f32 %v2557, %v874
    %v2622 = vadd.f32 %v2558, %v878
    %v2623 = vadd.f32 %v2559, %v882
    %v2624 = vadd.f32 %v2560, %v886
    %v2625 = vadd.f32 %v2561, %v890
    %v2626 = vadd.f32 %v2562, %v894
    %v2627 = vadd.f32 %v2563, %v898
    %v2628 = vadd.f32 %v2564, %v902
    %v2629 = vadd.f32 %v2565, %v906
    %v2630 = vadd.f32 %v2566, %v910
    %v2631 = vadd.f32 %v2567, %v914
    %v2632 = vadd.f32 %v2568, %v918
    %v2633 = vadd.f32 %v2569, %v922
    %v2634 = vadd.f32 %v2570, %v926
    %v2635 = vadd.f32 %v2571, %v930
    %v2636 = vadd.f32 %v2572, %v934
    %v2637 = vadd.f32 %v2573, %v938
    %v2638 = vadd.f32 %v2574, %v942
    %v2639 = vadd.f32 %v2575, %v946
    %v2640 = vadd.f32 %v2576, %v950
    %v2641 = vadd.f32 %v2577, %v954
    %v2642 = vadd.f32 %v2578, %v958
    %v2643 = vadd.f32 %v2579, %v962
    %v2644 = vadd.f32 %v2580, %v966
    %v2645 = vadd.f32 %v2581, %v970
    %v2646 = vadd.f32 %v2582, %v974
    %v2647 = vadd.f32 %v2583, %v978
    %v2648 = vadd.f32 %v2584, %v982
    %v2649 = vadd.f32 %v2585, %v986
    %v2650 = vadd.f32 %v2586, %v990
    %v2651 = vadd.f32 %v2587, %v994
    %v2652 = vadd.f32 %v2588, %v998
    %v2653 = vadd.f32 %v2589, %v1002
    %v2654 = vadd.f32 %v2590, %v1006
    %v2655 = vadd.f32 %v2591, %v1010
    %v2656 = vadd.f32 %v2592, %v1014
    %v2657 = vadd.f32 %v2593, %v1018
    %v2658 = vadd.f32 %v2594, %v1022
    %v2659 = vadd.f32 %v2595, %v1026
    %v2660 = vadd.f32 %v2596, %v1030
    %v2661 = vadd.f32 %v2597, %v1034
    %v2662 = vadd.f32 %v2598, %v1038
    %v2663 = vadd.f32 %v2599, %v1042
    %v2664 = vadd.f32 %v2600, %v1046
    %v2665 = vadd.f32 %v2601, %v1050
    %v2666 = vadd.f32 %v2602, %v1054
    %v2667 = vadd.f32 %v2603, %v1058
    %v2668 = vadd.f32 %v2604, %v1062
    %v2669 = vadd.f32 %v2605, %v1066
    %v2670 = vadd.f32 %v2606, %v1070
    %2671 = vst [vmem:[#allocation2] sm:$0xff] %v2607
    %2672 = vst [vmem:[#allocation2 + $0x8] sm:$0xff] %v2608
    %2673 = vst [vmem:[#allocation2 + $0x10] sm:$0xff] %v2609
    %2674 = vst [vmem:[#allocation2 + $0x18] sm:$0xff] %v2610
    %2675 = vst [vmem:[#allocation2 + $0x20] sm:$0xff] %v2611
    %2676 = vst [vmem:[#allocation2 + $0x28] sm:$0xff] %v2612
    %2677 = vst [vmem:[#allocation2 + $0x30] sm:$0xff] %v2613
    %2678 = vst [vmem:[#allocation2 + $0x38] sm:$0xff] %v2614
    %2679 = vst [vmem:[#allocation2 + $0x40] sm:$0xff] %v2615
    %2680 = vst [vmem:[#allocation2 + $0x48] sm:$0xff] %v2616
    %2681 = vst [vmem:[#allocation2 + $0x50] sm:$0xff] %v2617
    %2682 = vst [vmem:[#allocation2 + $0x58] sm:$0xff] %v2618
    %2683 = vst [vmem:[#allocation2 + $0x60] sm:$0xff] %v2619
    %2684 = vst [vmem:[#allocation2 + $0x68] sm:$0xff] %v2620
    %2685 = vst [vmem:[#allocation2 + $0x70] sm:$0xff] %v2621
    %2686 = vst [vmem:[#allocation2 + $0x78] sm:$0xff] %v2622
    %2687 = vst [vmem:[#allocation2 + $0x80] sm:$0xff] %v2623
    %2688 = vst [vmem:[#allocation2 + $0x88] sm:$0xff] %v2624
    %2689 = vst [vmem:[#allocation2 + $0x90] sm:$0xff] %v2625
    %2690 = vst [vmem:[#allocation2 + $0x98] sm:$0xff] %v2626
    %2691 = vst [vmem:[#allocation2 + $0xa0] sm:$0xff] %v2627
    %2692 = vst [vmem:[#allocation2 + $0xa8] sm:$0xff] %v2628
    %2693 = vst [vmem:[#allocation2 + $0xb0] sm:$0xff] %v2629
    %2694 = vst [vmem:[#allocation2 + $0xb8] sm:$0xff] %v2630
    %2695 = vst [vmem:[#allocation2 + $0xc0] sm:$0xff] %v2631
    %2696 = vst [vmem:[#allocation2 + $0xc8] sm:$0xff] %v2632
    %2697 = vst [vmem:[#allocation2 + $0xd0] sm:$0xff] %v2633
    %2698 = vst [vmem:[#allocation2 + $0xd8] sm:$0xff] %v2634
    %2699 = vst [vmem:[#allocation2 + $0xe0] sm:$0xff] %v2635
    %2700 = vst [vmem:[#allocation2 + $0xe8] sm:$0xff] %v2636
    %2701 = vst [vmem:[#allocation2 + $0xf0] sm:$0xff] %v2637
    %2702 = vst [vmem:[#allocation2 + $0xf8] sm:$0xff] %v2638
    %2703 = vst [vmem:[#allocation2 + $0x100] sm:$0xff] %v2639
    %2704 = vst [vmem:[#allocation2 + $0x108] sm:$0xff] %v2640
    %2705 = vst [vmem:[#allocation2 + $0x110] sm:$0xff] %v2641
    %2706 = vst [vmem:[#allocation2 + $0x118] sm:$0xff] %v2642
    %2707 = vst [vmem:[#allocation2 + $0x120] sm:$0xff] %v2643
    %2708 = vst [vmem:[#allocation2 + $0x128] sm:$0xff] %v2644
    %2709 = vst [vmem:[#allocation2 + $0x130] sm:$0xff] %v2645
    %2710 = vst [vmem:[#allocation2 + $0x138] sm:$0xff] %v2646
    %2711 = vst [vmem:[#allocation2 + $0x140] sm:$0xff] %v2647
    %2712 = vst [vmem:[#allocation2 + $0x148] sm:$0xff] %v2648
    %2713 = vst [vmem:[#allocation2 + $0x150] sm:$0xff] %v2649
    %2714 = vst [vmem:[#allocation2 + $0x158] sm:$0xff] %v2650
    %2715 = vst [vmem:[#allocation2 + $0x160] sm:$0xff] %v2651
    %2716 = vst [vmem:[#allocation2 + $0x168] sm:$0xff] %v2652
    %2717 = vst [vmem:[#allocation2 + $0x170] sm:$0xff] %v2653
    %2718 = vst [vmem:[#allocation2 + $0x178] sm:$0xff] %v2654
    %2719 = vst [vmem:[#allocation2 + $0x180] sm:$0xff] %v2655
    %2720 = vst [vmem:[#allocation2 + $0x188] sm:$0xff] %v2656
    %2721 = vst [vmem:[#allocation2 + $0x190] sm:$0xff] %v2657
    %2722 = vst [vmem:[#allocation2 + $0x198] sm:$0xff] %v2658
    %2723 = vst [vmem:[#allocation2 + $0x1a0] sm:$0xff] %v2659
    %2724 = vst [vmem:[#allocation2 + $0x1a8] sm:$0xff] %v2660
    %2725 = vst [vmem:[#allocation2 + $0x1b0] sm:$0xff] %v2661
    %2726 = vst [vmem:[#allocation2 + $0x1b8] sm:$0xff] %v2662
    %2727 = vst [vmem:[#allocation2 + $0x1c0] sm:$0xff] %v2663
    %2728 = vst [vmem:[#allocation2 + $0x1c8] sm:$0xff] %v2664
    %2729 = vst [vmem:[#allocation2 + $0x1d0] sm:$0xff] %v2665
    %2730 = vst [vmem:[#allocation2 + $0x1d8] sm:$0xff] %v2666
    %2731 = vst [vmem:[#allocation2 + $0x1e0] sm:$0xff] %v2667
    %2732 = vst [vmem:[#allocation2 + $0x1e8] sm:$0xff] %v2668
    %2733 = vst [vmem:[#allocation2 + $0x1f0] sm:$0xff] %v2669
    %2734 = vst [vmem:[#allocation2 + $0x1f8] sm:$0xff] %v2670
    // Predicated region
    $region14: #{tpu_custom_call.1} parent=1 // pred_check
      %p2735 = pneg %p25
    $region15: #{tpu_custom_call.1} parent=1 // pred_check_branch
      %2737 = sbr.rel (%p2735) target = $region17
    $region16: #{tpu_custom_call.1} parent=1 // pred_region
      %v2738 = vld [vmem:[#allocation2] sm:$0xff]
      %v2739 = vld [vmem:[#allocation2 + $0x8] sm:$0xff]
      %v2740 = vld [vmem:[#allocation2 + $0x10] sm:$0xff]
      %v2741 = vld [vmem:[#allocation2 + $0x18] sm:$0xff]
      %v2742 = vld [vmem:[#allocation2 + $0x20] sm:$0xff]
      %v2743 = vld [vmem:[#allocation2 + $0x28] sm:$0xff]
      %v2744 = vld [vmem:[#allocation2 + $0x30] sm:$0xff]
      %v2745 = vld [vmem:[#allocation2 + $0x38] sm:$0xff]
      %v2746 = vld [vmem:[#allocation2 + $0x40] sm:$0xff]
      %v2747 = vld [vmem:[#allocation2 + $0x48] sm:$0xff]
      %v2748 = vld [vmem:[#allocation2 + $0x50] sm:$0xff]
      %v2749 = vld [vmem:[#allocation2 + $0x58] sm:$0xff]
      %v2750 = vld [vmem:[#allocation2 + $0x60] sm:$0xff]
      %v2751 = vld [vmem:[#allocation2 + $0x68] sm:$0xff]
      %v2752 = vld [vmem:[#allocation2 + $0x70] sm:$0xff]
      %v2753 = vld [vmem:[#allocation2 + $0x78] sm:$0xff]
      %v2754 = vld [vmem:[#allocation2 + $0x80] sm:$0xff]
      %v2755 = vld [vmem:[#allocation2 + $0x88] sm:$0xff]
      %v2756 = vld [vmem:[#allocation2 + $0x90] sm:$0xff]
      %v2757 = vld [vmem:[#allocation2 + $0x98] sm:$0xff]
      %v2758 = vld [vmem:[#allocation2 + $0xa0] sm:$0xff]
      %v2759 = vld [vmem:[#allocation2 + $0xa8] sm:$0xff]
      %v2760 = vld [vmem:[#allocation2 + $0xb0] sm:$0xff]
      %v2761 = vld [vmem:[#allocation2 + $0xb8] sm:$0xff]
      %v2762 = vld [vmem:[#allocation2 + $0xc0] sm:$0xff]
      %v2763 = vld [vmem:[#allocation2 + $0xc8] sm:$0xff]
      %v2764 = vld [vmem:[#allocation2 + $0xd0] sm:$0xff]
      %v2765 = vld [vmem:[#allocation2 + $0xd8] sm:$0xff]
      %v2766 = vld [vmem:[#allocation2 + $0xe0] sm:$0xff]
      %v2767 = vld [vmem:[#allocation2 + $0xe8] sm:$0xff]
      %v2768 = vld [vmem:[#allocation2 + $0xf0] sm:$0xff]
      %v2769 = vld [vmem:[#allocation2 + $0xf8] sm:$0xff]
      %v2770 = vld [vmem:[#allocation2 + $0x100] sm:$0xff]
      %v2771 = vld [vmem:[#allocation2 + $0x108] sm:$0xff]
      %v2772 = vld [vmem:[#allocation2 + $0x110] sm:$0xff]
      %v2773 = vld [vmem:[#allocation2 + $0x118] sm:$0xff]
      %v2774 = vld [vmem:[#allocation2 + $0x120] sm:$0xff]
      %v2775 = vld [vmem:[#allocation2 + $0x128] sm:$0xff]
      %v2776 = vld [vmem:[#allocation2 + $0x130] sm:$0xff]
      %v2777 = vld [vmem:[#allocation2 + $0x138] sm:$0xff]
      %v2778 = vld [vmem:[#allocation2 + $0x140] sm:$0xff]
      %v2779 = vld [vmem:[#allocation2 + $0x148] sm:$0xff]
      %v2780 = vld [vmem:[#allocation2 + $0x150] sm:$0xff]
      %v2781 = vld [vmem:[#allocation2 + $0x158] sm:$0xff]
      %v2782 = vld [vmem:[#allocation2 + $0x160] sm:$0xff]
      %v2783 = vld [vmem:[#allocation2 + $0x168] sm:$0xff]
      %v2784 = vld [vmem:[#allocation2 + $0x170] sm:$0xff]
      %v2785 = vld [vmem:[#allocation2 + $0x178] sm:$0xff]
      %v2786 = vld [vmem:[#allocation2 + $0x180] sm:$0xff]
      %v2787 = vld [vmem:[#allocation2 + $0x188] sm:$0xff]
      %v2788 = vld [vmem:[#allocation2 + $0x190] sm:$0xff]
      %v2789 = vld [vmem:[#allocation2 + $0x198] sm:$0xff]
      %v2790 = vld [vmem:[#allocation2 + $0x1a0] sm:$0xff]
      %v2791 = vld [vmem:[#allocation2 + $0x1a8] sm:$0xff]
      %v2792 = vld [vmem:[#allocation2 + $0x1b0] sm:$0xff]
      %v2793 = vld [vmem:[#allocation2 + $0x1b8] sm:$0xff]
      %v2794 = vld [vmem:[#allocation2 + $0x1c0] sm:$0xff]
      %v2795 = vld [vmem:[#allocation2 + $0x1c8] sm:$0xff]
      %v2796 = vld [vmem:[#allocation2 + $0x1d0] sm:$0xff]
      %v2797 = vld [vmem:[#allocation2 + $0x1d8] sm:$0xff]
      %v2798 = vld [vmem:[#allocation2 + $0x1e0] sm:$0xff]
      %v2799 = vld [vmem:[#allocation2 + $0x1e8] sm:$0xff]
      %v2800 = vld [vmem:[#allocation2 + $0x1f0] sm:$0xff]
      %v2801 = vld [vmem:[#allocation2 + $0x1f8] sm:$0xff]
      %2802 = vadd.xlane.f32.xlu0 %v2738
      %v2803 = vpop.xlane.xlu0 %2802
      %2804 = vadd.xlane.f32.xlu0 %v2739
      %v2805 = vpop.xlane.xlu0 %2804
      %2806 = vadd.xlane.f32.xlu0 %v2740
      %v2807 = vpop.xlane.xlu0 %2806
      %2808 = vadd.xlane.f32.xlu0 %v2741
      %v2809 = vpop.xlane.xlu0 %2808
      %2810 = vadd.xlane.f32.xlu0 %v2742
      %v2811 = vpop.xlane.xlu0 %2810
      %2812 = vadd.xlane.f32.xlu0 %v2743
      %v2813 = vpop.xlane.xlu0 %2812
      %2814 = vadd.xlane.f32.xlu0 %v2744
      %v2815 = vpop.xlane.xlu0 %2814
      %2816 = vadd.xlane.f32.xlu0 %v2745
      %v2817 = vpop.xlane.xlu0 %2816
      %2818 = vadd.xlane.f32.xlu0 %v2746
      %v2819 = vpop.xlane.xlu0 %2818
      %2820 = vadd.xlane.f32.xlu0 %v2747
      %v2821 = vpop.xlane.xlu0 %2820
      %2822 = vadd.xlane.f32.xlu0 %v2748
      %v2823 = vpop.xlane.xlu0 %2822
      %2824 = vadd.xlane.f32.xlu0 %v2749
      %v2825 = vpop.xlane.xlu0 %2824
      %2826 = vadd.xlane.f32.xlu0 %v2750
      %v2827 = vpop.xlane.xlu0 %2826
      %2828 = vadd.xlane.f32.xlu0 %v2751
      %v2829 = vpop.xlane.xlu0 %2828
      %2830 = vadd.xlane.f32.xlu0 %v2752
      %v2831 = vpop.xlane.xlu0 %2830
      %2832 = vadd.xlane.f32.xlu0 %v2753
      %v2833 = vpop.xlane.xlu0 %2832
      %2834 = vadd.xlane.f32.xlu0 %v2754
      %v2835 = vpop.xlane.xlu0 %2834
      %2836 = vadd.xlane.f32.xlu0 %v2755
      %v2837 = vpop.xlane.xlu0 %2836
      %2838 = vadd.xlane.f32.xlu0 %v2756
      %v2839 = vpop.xlane.xlu0 %2838
      %2840 = vadd.xlane.f32.xlu0 %v2757
      %v2841 = vpop.xlane.xlu0 %2840
      %2842 = vadd.xlane.f32.xlu0 %v2758
      %v2843 = vpop.xlane.xlu0 %2842
      %2844 = vadd.xlane.f32.xlu0 %v2759
      %v2845 = vpop.xlane.xlu0 %2844
      %2846 = vadd.xlane.f32.xlu0 %v2760
      %v2847 = vpop.xlane.xlu0 %2846
      %2848 = vadd.xlane.f32.xlu0 %v2761
      %v2849 = vpop.xlane.xlu0 %2848
      %2850 = vadd.xlane.f32.xlu0 %v2762
      %v2851 = vpop.xlane.xlu0 %2850
      %2852 = vadd.xlane.f32.xlu0 %v2763
      %v2853 = vpop.xlane.xlu0 %2852
      %2854 = vadd.xlane.f32.xlu0 %v2764
      %v2855 = vpop.xlane.xlu0 %2854
      %2856 = vadd.xlane.f32.xlu0 %v2765
      %v2857 = vpop.xlane.xlu0 %2856
      %2858 = vadd.xlane.f32.xlu0 %v2766
      %v2859 = vpop.xlane.xlu0 %2858
      %2860 = vadd.xlane.f32.xlu0 %v2767
      %v2861 = vpop.xlane.xlu0 %2860
      %2862 = vadd.xlane.f32.xlu0 %v2768
      %v2863 = vpop.xlane.xlu0 %2862
      %2864 = vadd.xlane.f32.xlu0 %v2769
      %v2865 = vpop.xlane.xlu0 %2864
      %2866 = vadd.xlane.f32.xlu0 %v2770
      %v2867 = vpop.xlane.xlu0 %2866
      %2868 = vadd.xlane.f32.xlu0 %v2771
      %v2869 = vpop.xlane.xlu0 %2868
      %2870 = vadd.xlane.f32.xlu0 %v2772
      %v2871 = vpop.xlane.xlu0 %2870
      %2872 = vadd.xlane.f32.xlu0 %v2773
      %v2873 = vpop.xlane.xlu0 %2872
      %2874 = vadd.xlane.f32.xlu0 %v2774
      %v2875 = vpop.xlane.xlu0 %2874
      %2876 = vadd.xlane.f32.xlu0 %v2775
      %v2877 = vpop.xlane.xlu0 %2876
      %2878 = vadd.xlane.f32.xlu0 %v2776
      %v2879 = vpop.xlane.xlu0 %2878
      %2880 = vadd.xlane.f32.xlu0 %v2777
      %v2881 = vpop.xlane.xlu0 %2880
      %2882 = vadd.xlane.f32.xlu0 %v2778
      %v2883 = vpop.xlane.xlu0 %2882
      %2884 = vadd.xlane.f32.xlu0 %v2779
      %v2885 = vpop.xlane.xlu0 %2884
      %2886 = vadd.xlane.f32.xlu0 %v2780
      %v2887 = vpop.xlane.xlu0 %2886
      %2888 = vadd.xlane.f32.xlu0 %v2781
      %v2889 = vpop.xlane.xlu0 %2888
      %2890 = vadd.xlane.f32.xlu0 %v2782
      %v2891 = vpop.xlane.xlu0 %2890
      %2892 = vadd.xlane.f32.xlu0 %v2783
      %v2893 = vpop.xlane.xlu0 %2892
      %2894 = vadd.xlane.f32.xlu0 %v2784
      %v2895 = vpop.xlane.xlu0 %2894
      %2896 = vadd.xlane.f32.xlu0 %v2785
      %v2897 = vpop.xlane.xlu0 %2896
      %2898 = vadd.xlane.f32.xlu0 %v2786
      %v2899 = vpop.xlane.xlu0 %2898
      %2900 = vadd.xlane.f32.xlu0 %v2787
      %v2901 = vpop.xlane.xlu0 %2900
      %2902 = vadd.xlane.f32.xlu0 %v2788
      %v2903 = vpop.xlane.xlu0 %2902
      %2904 = vadd.xlane.f32.xlu0 %v2789
      %v2905 = vpop.xlane.xlu0 %2904
      %2906 = vadd.xlane.f32.xlu0 %v2790
      %v2907 = vpop.xlane.xlu0 %2906
      %2908 = vadd.xlane.f32.xlu0 %v2791
      %v2909 = vpop.xlane.xlu0 %2908
      %2910 = vadd.xlane.f32.xlu0 %v2792
      %v2911 = vpop.xlane.xlu0 %2910
      %2912 = vadd.xlane.f32.xlu0 %v2793
      %v2913 = vpop.xlane.xlu0 %2912
      %2914 = vadd.xlane.f32.xlu0 %v2794
      %v2915 = vpop.xlane.xlu0 %2914
      %2916 = vadd.xlane.f32.xlu0 %v2795
      %v2917 = vpop.xlane.xlu0 %2916
      %2918 = vadd.xlane.f32.xlu0 %v2796
      %v2919 = vpop.xlane.xlu0 %2918
      %2920 = vadd.xlane.f32.xlu0 %v2797
      %v2921 = vpop.xlane.xlu0 %2920
      %2922 = vadd.xlane.f32.xlu0 %v2798
      %v2923 = vpop.xlane.xlu0 %2922
      %2924 = vadd.xlane.f32.xlu0 %v2799
      %v2925 = vpop.xlane.xlu0 %2924
      %2926 = vadd.xlane.f32.xlu0 %v2800
      %v2927 = vpop.xlane.xlu0 %2926
      %2928 = vadd.xlane.f32.xlu0 %v2801
      %v2929 = vpop.xlane.xlu0 %2928
      %v2930 = vadd.f32 %v2803, 1.0
      %v2931 = vadd.f32 %v2805, 1.0
      %v2932 = vadd.f32 %v2807, 1.0
      %v2933 = vadd.f32 %v2809, 1.0
      %v2934 = vadd.f32 %v2811, 1.0
      %v2935 = vadd.f32 %v2813, 1.0
      %v2936 = vadd.f32 %v2815, 1.0
      %v2937 = vadd.f32 %v2817, 1.0
      %v2938 = vadd.f32 %v2819, 1.0
      %v2939 = vadd.f32 %v2821, 1.0
      %v2940 = vadd.f32 %v2823, 1.0
      %v2941 = vadd.f32 %v2825, 1.0
      %v2942 = vadd.f32 %v2827, 1.0
      %v2943 = vadd.f32 %v2829, 1.0
      %v2944 = vadd.f32 %v2831, 1.0
      %v2945 = vadd.f32 %v2833, 1.0
      %v2946 = vadd.f32 %v2835, 1.0
      %v2947 = vadd.f32 %v2837, 1.0
      %v2948 = vadd.f32 %v2839, 1.0
      %v2949 = vadd.f32 %v2841, 1.0
      %v2950 = vadd.f32 %v2843, 1.0
      %v2951 = vadd.f32 %v2845, 1.0
      %v2952 = vadd.f32 %v2847, 1.0
      %v2953 = vadd.f32 %v2849, 1.0
      %v2954 = vadd.f32 %v2851, 1.0
      %v2955 = vadd.f32 %v2853, 1.0
      %v2956 = vadd.f32 %v2855, 1.0
      %v2957 = vadd.f32 %v2857, 1.0
      %v2958 = vadd.f32 %v2859, 1.0
      %v2959 = vadd.f32 %v2861, 1.0
      %v2960 = vadd.f32 %v2863, 1.0
      %v2961 = vadd.f32 %v2865, 1.0
      %v2962 = vadd.f32 %v2867, 1.0
      %v2963 = vadd.f32 %v2869, 1.0
      %v2964 = vadd.f32 %v2871, 1.0
      %v2965 = vadd.f32 %v2873, 1.0
      %v2966 = vadd.f32 %v2875, 1.0
      %v2967 = vadd.f32 %v2877, 1.0
      %v2968 = vadd.f32 %v2879, 1.0
      %v2969 = vadd.f32 %v2881, 1.0
      %v2970 = vadd.f32 %v2883, 1.0
      %v2971 = vadd.f32 %v2885, 1.0
      %v2972 = vadd.f32 %v2887, 1.0
      %v2973 = vadd.f32 %v2889, 1.0
      %v2974 = vadd.f32 %v2891, 1.0
      %v2975 = vadd.f32 %v2893, 1.0
      %v2976 = vadd.f32 %v2895, 1.0
      %v2977 = vadd.f32 %v2897, 1.0
      %v2978 = vadd.f32 %v2899, 1.0
      %v2979 = vadd.f32 %v2901, 1.0
      %v2980 = vadd.f32 %v2903, 1.0
      %v2981 = vadd.f32 %v2905, 1.0
      %v2982 = vadd.f32 %v2907, 1.0
      %v2983 = vadd.f32 %v2909, 1.0
      %v2984 = vadd.f32 %v2911, 1.0
      %v2985 = vadd.f32 %v2913, 1.0
      %v2986 = vadd.f32 %v2915, 1.0
      %v2987 = vadd.f32 %v2917, 1.0
      %v2988 = vadd.f32 %v2919, 1.0
      %v2989 = vadd.f32 %v2921, 1.0
      %v2990 = vadd.f32 %v2923, 1.0
      %v2991 = vadd.f32 %v2925, 1.0
      %v2992 = vadd.f32 %v2927, 1.0
      %v2993 = vadd.f32 %v2929, 1.0
      %v2994 = vrsqrt.pop %v2930
      %v2995 = vrsqrt.pop %v2931
      %v2996 = vrsqrt.pop %v2932
      %v2997 = vrsqrt.pop %v2933
      %v2998 = vrsqrt.pop %v2934
      %v2999 = vrsqrt.pop %v2935
      %v3000 = vrsqrt.pop %v2936
      %v3001 = vrsqrt.pop %v2937
      %v3002 = vrsqrt.pop %v2938
      %v3003 = vrsqrt.pop %v2939
      %v3004 = vrsqrt.pop %v2940
      %v3005 = vrsqrt.pop %v2941
      %v3006 = vrsqrt.pop %v2942
      %v3007 = vrsqrt.pop %v2943
      %v3008 = vrsqrt.pop %v2944
      %v3009 = vrsqrt.pop %v2945
      %v3010 = vrsqrt.pop %v2946
      %v3011 = vrsqrt.pop %v2947
      %v3012 = vrsqrt.pop %v2948
      %v3013 = vrsqrt.pop %v2949
      %v3014 = vrsqrt.pop %v2950
      %v3015 = vrsqrt.pop %v2951
      %v3016 = vrsqrt.pop %v2952
      %v3017 = vrsqrt.pop %v2953
      %v3018 = vrsqrt.pop %v2954
      %v3019 = vrsqrt.pop %v2955
      %v3020 = vrsqrt.pop %v2956
      %v3021 = vrsqrt.pop %v2957
      %v3022 = vrsqrt.pop %v2958
      %v3023 = vrsqrt.pop %v2959
      %v3024 = vrsqrt.pop %v2960
      %v3025 = vrsqrt.pop %v2961
      %v3026 = vrsqrt.pop %v2962
      %v3027 = vrsqrt.pop %v2963
      %v3028 = vrsqrt.pop %v2964
      %v3029 = vrsqrt.pop %v2965
      %v3030 = vrsqrt.pop %v2966
      %v3031 = vrsqrt.pop %v2967
      %v3032 = vrsqrt.pop %v2968
      %v3033 = vrsqrt.pop %v2969
      %v3034 = vrsqrt.pop %v2970
      %v3035 = vrsqrt.pop %v2971
      %v3036 = vrsqrt.pop %v2972
      %v3037 = vrsqrt.pop %v2973
      %v3038 = vrsqrt.pop %v2974
      %v3039 = vrsqrt.pop %v2975
      %v3040 = vrsqrt.pop %v2976
      %v3041 = vrsqrt.pop %v2977
      %v3042 = vrsqrt.pop %v2978
      %v3043 = vrsqrt.pop %v2979
      %v3044 = vrsqrt.pop %v2980
      %v3045 = vrsqrt.pop %v2981
      %v3046 = vrsqrt.pop %v2982
      %v3047 = vrsqrt.pop %v2983
      %v3048 = vrsqrt.pop %v2984
      %v3049 = vrsqrt.pop %v2985
      %v3050 = vrsqrt.pop %v2986
      %v3051 = vrsqrt.pop %v2987
      %v3052 = vrsqrt.pop %v2988
      %v3053 = vrsqrt.pop %v2989
      %v3054 = vrsqrt.pop %v2990
      %v3055 = vrsqrt.pop %v2991
      %v3056 = vrsqrt.pop %v2992
      %v3057 = vrsqrt.pop %v2993
      %vm3058 = vcmask 7168
      %3059 = vst.msk [vmem:[%s2] sm:$0xff] %vm3058, %v2994
      %3060 = vst.msk [vmem:[%s2 + $0x8] sm:$0xff] %vm3058, %v2995
      %3061 = vst.msk [vmem:[%s2 + $0x10] sm:$0xff] %vm3058, %v2996
      %3062 = vst.msk [vmem:[%s2 + $0x18] sm:$0xff] %vm3058, %v2997
      %3063 = vst.msk [vmem:[%s2 + $0x20] sm:$0xff] %vm3058, %v2998
      %3064 = vst.msk [vmem:[%s2 + $0x28] sm:$0xff] %vm3058, %v2999
      %3065 = vst.msk [vmem:[%s2 + $0x30] sm:$0xff] %vm3058, %v3000
      %3066 = vst.msk [vmem:[%s2 + $0x38] sm:$0xff] %vm3058, %v3001
      %3067 = vst.msk [vmem:[%s2 + $0x40] sm:$0xff] %vm3058, %v3002
      %3068 = vst.msk [vmem:[%s2 + $0x48] sm:$0xff] %vm3058, %v3003
      %3069 = vst.msk [vmem:[%s2 + $0x50] sm:$0xff] %vm3058, %v3004
      %3070 = vst.msk [vmem:[%s2 + $0x58] sm:$0xff] %vm3058, %v3005
      %3071 = vst.msk [vmem:[%s2 + $0x60] sm:$0xff] %vm3058, %v3006
      %3072 = vst.msk [vmem:[%s2 + $0x68] sm:$0xff] %vm3058, %v3007
      %3073 = vst.msk [vmem:[%s2 + $0x70] sm:$0xff] %vm3058, %v3008
      %3074 = vst.msk [vmem:[%s2 + $0x78] sm:$0xff] %vm3058, %v3009
      %3075 = vst.msk [vmem:[%s2 + $0x80] sm:$0xff] %vm3058, %v3010
      %3076 = vst.msk [vmem:[%s2 + $0x88] sm:$0xff] %vm3058, %v3011
      %3077 = vst.msk [vmem:[%s2 + $0x90] sm:$0xff] %vm3058, %v3012
      %3078 = vst.msk [vmem:[%s2 + $0x98] sm:$0xff] %vm3058, %v3013
      %3079 = vst.msk [vmem:[%s2 + $0xa0] sm:$0xff] %vm3058, %v3014
      %3080 = vst.msk [vmem:[%s2 + $0xa8] sm:$0xff] %vm3058, %v3015
      %3081 = vst.msk [vmem:[%s2 + $0xb0] sm:$0xff] %vm3058, %v3016
      %3082 = vst.msk [vmem:[%s2 + $0xb8] sm:$0xff] %vm3058, %v3017
      %3083 = vst.msk [vmem:[%s2 + $0xc0] sm:$0xff] %vm3058, %v3018
      %3084 = vst.msk [vmem:[%s2 + $0xc8] sm:$0xff] %vm3058, %v3019
      %3085 = vst.msk [vmem:[%s2 + $0xd0] sm:$0xff] %vm3058, %v3020
      %3086 = vst.msk [vmem:[%s2 + $0xd8] sm:$0xff] %vm3058, %v3021
      %3087 = vst.msk [vmem:[%s2 + $0xe0] sm:$0xff] %vm3058, %v3022
      %3088 = vst.msk [vmem:[%s2 + $0xe8] sm:$0xff] %vm3058, %v3023
      %3089 = vst.msk [vmem:[%s2 + $0xf0] sm:$0xff] %vm3058, %v3024
      %3090 = vst.msk [vmem:[%s2 + $0xf8] sm:$0xff] %vm3058, %v3025
      %3091 = vst.msk [vmem:[%s2 + $0x100] sm:$0xff] %vm3058, %v3026
      %3092 = vst.msk [vmem:[%s2 + $0x108] sm:$0xff] %vm3058, %v3027
      %3093 = vst.msk [vmem:[%s2 + $0x110] sm:$0xff] %vm3058, %v3028
      %3094 = vst.msk [vmem:[%s2 + $0x118] sm:$0xff] %vm3058, %v3029
      %3095 = vst.msk [vmem:[%s2 + $0x120] sm:$0xff] %vm3058, %v3030
      %3096 = vst.msk [vmem:[%s2 + $0x128] sm:$0xff] %vm3058, %v3031
      %3097 = vst.msk [vmem:[%s2 + $0x130] sm:$0xff] %vm3058, %v3032
      %3098 = vst.msk [vmem:[%s2 + $0x138] sm:$0xff] %vm3058, %v3033
      %3099 = vst.msk [vmem:[%s2 + $0x140] sm:$0xff] %vm3058, %v3034
      %3100 = vst.msk [vmem:[%s2 + $0x148] sm:$0xff] %vm3058, %v3035
      %3101 = vst.msk [vmem:[%s2 + $0x150] sm:$0xff] %vm3058, %v3036
      %3102 = vst.msk [vmem:[%s2 + $0x158] sm:$0xff] %vm3058, %v3037
      %3103 = vst.msk [vmem:[%s2 + $0x160] sm:$0xff] %vm3058, %v3038
      %3104 = vst.msk [vmem:[%s2 + $0x168] sm:$0xff] %vm3058, %v3039
      %3105 = vst.msk [vmem:[%s2 + $0x170] sm:$0xff] %vm3058, %v3040
      %3106 = vst.msk [vmem:[%s2 + $0x178] sm:$0xff] %vm3058, %v3041
      %3107 = vst.msk [vmem:[%s2 + $0x180] sm:$0xff] %vm3058, %v3042
      %3108 = vst.msk [vmem:[%s2 + $0x188] sm:$0xff] %vm3058, %v3043
      %3109 = vst.msk [vmem:[%s2 + $0x190] sm:$0xff] %vm3058, %v3044
      %3110 = vst.msk [vmem:[%s2 + $0x198] sm:$0xff] %vm3058, %v3045
      %3111 = vst.msk [vmem:[%s2 + $0x1a0] sm:$0xff] %vm3058, %v3046
      %3112 = vst.msk [vmem:[%s2 + $0x1a8] sm:$0xff] %vm3058, %v3047
      %3113 = vst.msk [vmem:[%s2 + $0x1b0] sm:$0xff] %vm3058, %v3048
      %3114 = vst.msk [vmem:[%s2 + $0x1b8] sm:$0xff] %vm3058, %v3049
      %3115 = vst.msk [vmem:[%s2 + $0x1c0] sm:$0xff] %vm3058, %v3050
      %3116 = vst.msk [vmem:[%s2 + $0x1c8] sm:$0xff] %vm3058, %v3051
      %3117 = vst.msk [vmem:[%s2 + $0x1d0] sm:$0xff] %vm3058, %v3052
      %3118 = vst.msk [vmem:[%s2 + $0x1d8] sm:$0xff] %vm3058, %v3053
      %3119 = vst.msk [vmem:[%s2 + $0x1e0] sm:$0xff] %vm3058, %v3054
      %3120 = vst.msk [vmem:[%s2 + $0x1e8] sm:$0xff] %vm3058, %v3055
      %3121 = vst.msk [vmem:[%s2 + $0x1f0] sm:$0xff] %vm3058, %v3056
      %3122 = vst.msk [vmem:[%s2 + $0x1f8] sm:$0xff] %vm3058, %v3057
    $region17: #{tpu_custom_call.1} parent=1 // pred_fallthru
      _
    // Predicated region
    $region18: #{tpu_custom_call.1} parent=1 // pred_check
      _
    $region19: #{tpu_custom_call.1} parent=1 // pred_check_branch
      %3124 = sbr.rel (0) target = $region21
    $region20: #{tpu_custom_call.1} parent=1 // pred_region
      %s3126 = ssub.s32 16384, 16384
      %3127 = vsyncadd [#allocation5], %s3126
      %s3128 = sshll.u32 [#allocation6], 4
      %s3129 = int_to_ptr.vmem [resolvable:$true] %s3128
      %3134 = dma.vmem_to_hbm [thread:$0]  %s3129, 16384, %s1, [#allocation5], 256, 256, 16
    $region21: #{tpu_custom_call.1} parent=1 // pred_fallthru
      _
    // Predicated region
    $region22: #{tpu_custom_call.1} parent=1 // pred_check
      _
    $region23: #{tpu_custom_call.1} parent=1 // pred_check_branch
      %3136 = sbr.rel (0) target = $region25
    $region24: #{tpu_custom_call.1} parent=1 // pred_region
      _
    $region25: #{tpu_custom_call.1} parent=1 // pred_fallthru
      _
    // Predicated region
    $region26: #{tpu_custom_call.1} parent=1 // pred_check
      _
    $region27: #{tpu_custom_call.1} parent=1 // pred_check_branch
      %3138 = sbr.rel (0) target = $region29
    $region28: #{tpu_custom_call.1} parent=1 // pred_region
      %3139 = dma.done [#allocation5], 16384
    $region29: #{tpu_custom_call.1} parent=1 // pred_fallthru
      _
    // Predicated region
    $region30: #{tpu_custom_call.1} parent=1 // pred_check
      _
    $region31: #{tpu_custom_call.1} parent=1 // pred_check_branch
      %3141 = sbr.rel (0) target = $region33
    $region32: #{tpu_custom_call.1} parent=1 // pred_region
      _
    $region33: #{tpu_custom_call.1} parent=1 // pred_fallthru
      _
    %3142 = vsyncpa [#allocation4], 1
    %3143 = vsyncpa [#allocation5], 1

</llo_original>
